<compile_context>
chip_gen: v6e
topology: v6e:2x2x1
jax: 0.10.0
libtpu: 0.0.40
codegen_flags: <defaults>
</compile_context>

<pallas_src>
import functools

import jax
import jax.numpy as jnp
from jax import lax
from jax.experimental import pallas as pl
from jax.experimental.pallas import tpu as pltpu


def _round_up(x, m):
    return (x + m - 1) // m * m


def _cdiv(a, b):
    return (a + b - 1) // b


def slstm_kernel(
    # inputs
    x_ref, w_hbm, b_hbm, r_hbm, wo_hbm, bo_hbm,
    # outputs
    out_ref,
    # scratch
    w_vm, b_vm, r_vm, wo_vm, bo_vm,
    h_st, c_st, n_st, m_st, hist_st, pre_st, copy_sem,
    *, num_layers, hidden, time_block, seq_len, mask_tail, unroll, exact_div):
    """One (batch_block, time_block) grid step of the sLSTM recurrence.

    x_ref  : (Tb*Bb, Hp)   lane-dense input slab (rows ordered t-major, b-minor)
    w/r_hbm: (L, Hp, 4*Hp) fused [z|i|f|o] weights, staged once into VMEM
    b_hbm  : (L, 1, 4*Hp)  fused bias (bW + bR)
    wo/bo  : output projection
    h/c/n/m: (L, Bb, Hp)   persistent recurrent state (f32)
    hist_st: (Tb*Bb, Hp)   current layer's h history (next layer's matmul input)
    pre_st : (Tb*Bb, 4*Hp) hoisted x @ W + b pre-activations for current layer
    """
    tb = pl.program_id(1)
    rows = x_ref.shape[0]
    bb = rows // time_block
    mm_dtype = w_vm.dtype
    f32 = jnp.float32

    # ---- per-batch-block setup: stage grid-invariant weights (single
    # buffered) and reset the recurrent state / output block. ----
    @pl.when(tb == 0)
    def _():
        copies = [
            pltpu.make_async_copy(w_hbm, w_vm, copy_sem.at[0]),
            pltpu.make_async_copy(b_hbm, b_vm, copy_sem.at[1]),
            pltpu.make_async_copy(r_hbm, r_vm, copy_sem.at[2]),
            pltpu.make_async_copy(wo_hbm, wo_vm, copy_sem.at[3]),
            pltpu.make_async_copy(bo_hbm, bo_vm, copy_sem.at[4]),
        ]
        for cp in copies:
            cp.start()
        for cp in copies:
            cp.wait()
        h_st[...] = jnp.zeros_like(h_st)
        c_st[...] = jnp.zeros_like(c_st)
        n_st[...] = jnp.ones_like(n_st)
        m_st[...] = jnp.zeros_like(m_st)
        out_ref[...] = jnp.zeros_like(out_ref)

    for layer in range(num_layers):
        # Tall, MXU-friendly input projection for the whole time block,
        # hoisted out of the serial recurrence; bias folded in once per layer.
        x2d = x_ref[...] if layer == 0 else hist_st[...]
        pre_st[...] = (jnp.dot(x2d, w_vm[layer], preferred_element_type=f32)
                       + b_vm[layer])

        def step(t, carry, layer=layer):
            h, c, n, m = carry
            row0 = pl.multiple_of(t * bb, bb)
            # Only the small-M recurrent matmul stays on the serial path.
            pre = pre_st[pl.ds(row0, bb), :] + jnp.dot(
                h.astype(mm_dtype), r_vm[layer], preferred_element_type=f32)

            z = jnp.tanh(pre[:, 0 * hidden:1 * hidden])
            # The pre-activations ARE log(i), log(f): skip exp()/log() round-trip.
            log_i = pre[:, 1 * hidden:2 * hidden]
            log_f = pre[:, 2 * hidden:3 * hidden]
            o = jax.nn.sigmoid(pre[:, 3 * hidden:4 * hidden])

            m_new = jnp.maximum(log_f + m, log_i)
            i_hat = jnp.exp(log_i - m_new)
            f_hat = jnp.exp(log_f + m - m_new)
            c_new = f_hat * c + i_hat * z
            n_new = f_hat * n + i_hat
            if exact_div:
                h_new = o * c_new / n_new
            else:
                # EUP approximate reciprocal + one Newton step (n >= 1 always,
                # so this is well conditioned).
                r = pl.reciprocal(n_new, approx=True)
                r = r * (2.0 - n_new * r)
                h_new = o * c_new * r

            if mask_tail:
                valid = (tb * time_block + t) < seq_len
                h_new = jnp.where(valid, h_new, h)
                c_new = jnp.where(valid, c_new, c)
                n_new = jnp.where(valid, n_new, n)
                m_new = jnp.where(valid, m_new, m)

            if layer + 1 < num_layers:
                hist_st[pl.ds(row0, bb), :] = h_new.astype(mm_dtype)
            return (h_new, c_new, n_new, m_new)

        carry0 = (h_st[layer], c_st[layer], n_st[layer], m_st[layer])
        h, c, n, m = lax.fori_loop(0, time_block, step, carry0, unroll=unroll)
        # Spill state back to VMEM only at the time-block boundary.
        h_st[layer] = h
        c_st[layer] = c
        n_st[layer] = n
        m_st[layer] = m

    # Output projection after the last (valid) timestep of this batch block.
    @pl.when(tb == pl.num_programs(1) - 1)
    def _():
        h_last = h_st[num_layers - 1].astype(mm_dtype)
        out_ref[...] = (jnp.dot(h_last, wo_vm[...], preferred_element_type=f32)
                        + bo_vm[...]).astype(out_ref.dtype)


def slstm_forward(x_seq, params, *, num_layers, hidden_size, output_size,
                  time_block=16, batch_block=128,
                  matmul_dtype=jnp.bfloat16, exact_division=False):
    """x_seq: (batch, seq_len, input_size) f32 -> (batch, output_size) f32."""
    W, bW, R, bR, Wo, bo = params
    B, S, D = x_seq.shape
    assert D == hidden_size, "stacked sLSTM layers require input_size == hidden_size"
    L = num_layers
    f32 = jnp.float32

    # ---- (8,128)-aligned, gate-fused parameter layout (host-side plumbing) ----
    Hp = _round_up(hidden_size, 128)
    Op = _round_up(output_size, 128)

    # Batch blocking: large Bb (amortizes the MXU weight push), multiple of 8
    # sublanes, but keep >= 2 batch blocks when the padded batch allows so the
    # "parallel" axis can feed both TensorCores on v7x.
    Bp8 = _round_up(B, 8)
    Bb = min(_round_up(batch_block, 8), Bp8)
    if Bp8 // Bb < 2 and Bp8 >= 16:
        Bb = _round_up(_cdiv(Bp8, 2), 8)
    Bp = _round_up(B, Bb)

    # Time blocking with a masked tail block (no silent fallback to Tb=1).
    Tb = max(1, min(time_block, S))
    S_pad = _cdiv(S, Tb) * Tb
    mask_tail = (S_pad != S)
    # Sweep-able unroll; full unroll only for short time blocks to avoid spills.
    unroll = True if Tb <= 8 else 4

    Wcat = jnp.zeros((L, Hp, 4 * Hp), f32)
    Rcat = jnp.zeros((L, Hp, 4 * Hp), f32)
    bcat = jnp.zeros((L, 1, 4 * Hp), f32)
    for g in range(4):  # gate order: z, i, f, o
        Wcat = Wcat.at[:, :D, g * Hp:g * Hp + hidden_size].set(W[:, g])
        Rcat = Rcat.at[:, :hidden_size, g * Hp:g * Hp + hidden_size].set(R[:, g])
        bcat = bcat.at[:, :, g * Hp:g * Hp + hidden_size].set(bW[:, g] + bR[:, g])
    Wo_p = jnp.zeros((Hp, Op), f32).at[:hidden_size, :output_size].set(Wo)
    bo_p = jnp.zeros((1, Op), f32).at[:, :output_size].set(bo)

    # Matmul operands in bf16 (MXU-native on v6e/v7x) by default; biases and
    # all state math stay f32.
    Wcat = Wcat.astype(matmul_dtype)
    Rcat = Rcat.astype(matmul_dtype)
    Wo_p = Wo_p.astype(matmul_dtype)

    # Time-major, padded input re-laid-out into 2-D lane-dense slabs:
    # (nT, nB, Tb*Bb, Hp), slab rows ordered (t within block) major, batch minor.
    nT, nB = S_pad // Tb, Bp // Bb
    x_tm = jnp.transpose(x_seq, (1, 0, 2))
    x_p = jnp.zeros((S_pad, Bp, Hp), f32).at[:S, :B, :D].set(x_tm)
    x_p = x_p.astype(matmul_dtype)
    x_p = (x_p.reshape(nT, Tb, nB, Bb, Hp)
              .transpose(0, 2, 1, 3, 4)
              .reshape(nT, nB, Tb * Bb, Hp))

    # Generation-aware scoped-VMEM limit (v7x has only 64 MiB per TC).
    try:
        vmem_cap = int(pltpu.get_tpu_info().vmem_capacity_bytes)
    except Exception:
        vmem_cap = 128 * 1024 * 1024
    vmem_limit = int(min(100 * 1024 * 1024, (vmem_cap * 3) // 4))

    kernel = functools.partial(
        slstm_kernel, num_layers=L, hidden=Hp, time_block=Tb, seq_len=S,
        mask_tail=mask_tail, unroll=unroll, exact_div=exact_division)

    out_p = pl.pallas_call(
        kernel,
        out_shape=jax.ShapeDtypeStruct((Bp, Op), f32),
        grid_spec=pltpu.PrefetchScalarGridSpec(
            num_scalar_prefetch=0,
            # (parallel batch blocks, sequential time blocks)
            grid=(nB, nT),
            in_specs=[
                pl.BlockSpec((None, None, Tb * Bb, Hp),
                             lambda b, t: (t, b, 0, 0)),      # x slab
                pl.BlockSpec(memory_space=pl.ANY),            # Wcat (staged)
                pl.BlockSpec(memory_space=pl.ANY),            # bcat (staged)
                pl.BlockSpec(memory_space=pl.ANY),            # Rcat (staged)
                pl.BlockSpec(memory_space=pl.ANY),            # Wo   (staged)
                pl.BlockSpec(memory_space=pl.ANY),            # bo   (staged)
            ],
            out_specs=pl.BlockSpec((Bb, Op), lambda b, t: (b, 0)),
            scratch_shapes=[
                pltpu.VMEM((L, Hp, 4 * Hp), matmul_dtype),    # W (single buffer)
                pltpu.VMEM((L, 1, 4 * Hp), f32),              # fused bias
                pltpu.VMEM((L, Hp, 4 * Hp), matmul_dtype),    # R (single buffer)
                pltpu.VMEM((Hp, Op), matmul_dtype),           # Wo
                pltpu.VMEM((1, Op), f32),                     # bo
                pltpu.VMEM((L, Bb, Hp), f32),                 # h state
                pltpu.VMEM((L, Bb, Hp), f32),                 # c state
                pltpu.VMEM((L, Bb, Hp), f32),                 # n state
                pltpu.VMEM((L, Bb, Hp), f32),                 # m state
                pltpu.VMEM((Tb * Bb, Hp), matmul_dtype),      # layer h history
                pltpu.VMEM((Tb * Bb, 4 * Hp), f32),           # hoisted x@W + b
                pltpu.SemaphoreType.DMA((5,)),
            ],
        ),
        compiler_params=pltpu.CompilerParams(
            dimension_semantics=("parallel", "arbitrary"),
            vmem_limit_bytes=vmem_limit,
        ),
    )(x_p, Wcat, bcat, Rcat, Wo_p, bo_p)

    return out_p[:B, :output_size]


def slstm_reference(x_seq, params, *, num_layers, hidden_size, output_size):
    """Pure-JAX reference mirroring the PyTorch forward (incl. exp/log form)."""
    W, bW, R, bR, Wo, bo = params
    B, S, D = x_seq.shape
    h = [jnp.zeros((B, hidden_size), jnp.float32) for _ in range(num_layers)]
    c = [jnp.zeros((B, hidden_size), jnp.float32) for _ in range(num_layers)]
    n = [jnp.ones((B, hidden_size), jnp.float32) for _ in range(num_layers)]
    m = [jnp.zeros((B, hidden_size), jnp.float32) for _ in range(num_layers)]
    for t in range(S):
        x = x_seq[:, t, :]
        for l in range(num_layers):
            pre = lambda g: x @ W[l, g] + bW[l, g] + h[l] @ R[l, g] + bR[l, g]
            z = jnp.tanh(pre(0))
            i = jnp.exp(pre(1))
            f = jnp.exp(pre(2))
            o = jax.nn.sigmoid(pre(3))
            m_new = jnp.maximum(jnp.log(f) + m[l], jnp.log(i))
            i_hat = jnp.exp(jnp.log(i) - m_new)
            f_hat = jnp.exp(jnp.log(f) + m[l] - m_new)
            c[l] = f_hat * c[l] + i_hat * z
            n[l] = f_hat * n[l] + i_hat
            h[l] = o * c[l] / n[l]
            m[l] = m_new
            x = h[l]
    return x @ Wo + bo


def init_params(key, *, num_layers, input_size, hidden_size, output_size):
    assert input_size == hidden_size, "stacked sLSTM layers require input_size == hidden_size"
    ks = jax.random.split(key, 6)
    scale = 0.1
    W = scale * jax.random.normal(ks[0], (num_layers, 4, input_size, hidden_size), jnp.float32)
    bW = scale * jax.random.normal(ks[1], (num_layers, 4, 1, hidden_size), jnp.float32)
    R = scale * jax.random.normal(ks[2], (num_layers, 4, hidden_size, hidden_size), jnp.float32)
    bR = scale * jax.random.normal(ks[3], (num_layers, 4, 1, hidden_size), jnp.float32)
    Wo = scale * jax.random.normal(ks[4], (hidden_size, output_size), jnp.float32)
    bo = scale * jax.random.normal(ks[5], (1, output_size), jnp.float32)
    return (W, bW, R, bR, Wo, bo)


if __name__ == "__main__":
    batch, seq_len = 2, 8
    input_size = hidden_size = 32
    output_size = 16
    num_layers = 2

    key = jax.random.PRNGKey(0)
    k_params, k_x = jax.random.split(key)
    params = init_params(k_params, num_layers=num_layers, input_size=input_size,
                         hidden_size=hidden_size, output_size=output_size)
    x_seq = jax.random.normal(k_x, (batch, seq_len, input_size), jnp.float32)
    ref = slstm_reference(x_seq, params, num_layers=num_layers,
                          hidden_size=hidden_size, output_size=output_size)

    # 1) Full-precision path: must match the f32 reference tightly.
    out_f32 = slstm_forward(x_seq, params, num_layers=num_layers,
                            hidden_size=hidden_size, output_size=output_size,
                            matmul_dtype=jnp.float32, exact_division=True)
    out_f32 = jax.block_until_ready(out_f32)
    assert out_f32.shape == (batch, output_size)
    assert jnp.allclose(out_f32, ref, atol=1e-5, rtol=1e-5), (out_f32, ref)

    # 2) Performance default (bf16 matmul operands, approx reciprocal):
    #    loose sanity check for the reduced-precision fast path.
    out_bf16 = slstm_forward(x_seq, params, num_layers=num_layers,
                             hidden_size=hidden_size, output_size=output_size)
    out_bf16 = jax.block_until_ready(out_bf16)
    assert out_bf16.shape == (batch, output_size)
    assert jnp.allclose(out_bf16, ref, atol=1e-1, rtol=1e-1), (out_bf16, ref)

    # 3) Awkward shapes: non-divisible seq_len (masked tail time block) and a
    #    batch large enough to be split into two parallel batch blocks.
    batch2, seq2 = 18, 11
    k_x2 = jax.random.split(k_x)[0]
    x_seq2 = jax.random.normal(k_x2, (batch2, seq2, input_size), jnp.float32)
    ref2 = slstm_reference(x_seq2, params, num_layers=num_layers,
                           hidden_size=hidden_size, output_size=output_size)
    out2 = slstm_forward(x_seq2, params, num_layers=num_layers,
                         hidden_size=hidden_size, output_size=output_size,
                         time_block=4, matmul_dtype=jnp.float32,
                         exact_division=True)
    out2 = jax.block_until_ready(out2)
    assert out2.shape == (batch2, output_size)
    assert jnp.allclose(out2, ref2, atol=2e-5, rtol=2e-5), (out2, ref2)

    print("KERNEL_OK")
</pallas_src>

<mosaic_0001>
module attributes {stable_mosaic.version = 11 : i64} {
  func.func @slstm_kernel(%arg0: i32, %arg1: i32, %arg2: memref<1x1x64x128xf32, #tpu.memory_space<vmem>>, %arg3: memref<2x128x512xf32, #tpu.memory_space<any>>, %arg4: memref<2x1x512xf32, #tpu.memory_space<any>>, %arg5: memref<2x128x512xf32, #tpu.memory_space<any>>, %arg6: memref<128x128xf32, #tpu.memory_space<any>>, %arg7: memref<1x128xf32, #tpu.memory_space<any>>, %arg8: memref<8x128xf32, #tpu.memory_space<vmem>>, %arg9: memref<2x128x512xf32, #tpu.memory_space<vmem>>, %arg10: memref<2x1x512xf32, #tpu.memory_space<vmem>>, %arg11: memref<2x128x512xf32, #tpu.memory_space<vmem>>, %arg12: memref<128x128xf32, #tpu.memory_space<vmem>>, %arg13: memref<1x128xf32, #tpu.memory_space<vmem>>, %arg14: memref<2x8x128xf32, #tpu.memory_space<vmem>>, %arg15: memref<2x8x128xf32, #tpu.memory_space<vmem>>, %arg16: memref<2x8x128xf32, #tpu.memory_space<vmem>>, %arg17: memref<2x8x128xf32, #tpu.memory_space<vmem>>, %arg18: memref<64x128xf32, #tpu.memory_space<vmem>>, %arg19: memref<64x512xf32, #tpu.memory_space<vmem>>, %arg20: memref<5x!tpu.dma_semaphore, #tpu.memory_space<semaphore_mem>>) attributes {dimension_semantics = [#tpu.dimension_semantics<parallel>, #tpu.dimension_semantics<arbitrary>], iteration_bounds = array<i64: 1, 1>, scalar_prefetch = 0 : i64, scratch_operands = 12 : i64, tpu.core_type = #tpu.core_type<tc>, window_params = [{transform_indices = @transform_0, window_bounds = array<i64: 1, 1, 64, 128>}, {}, {}, {}, {}, {}, {transform_indices = @transform_6, window_bounds = array<i64: 8, 128>}]} {
    %c0_i32 = arith.constant 0 : i32
    %0 = arith.cmpi eq, %arg1, %c0_i32 : i32
    %1 = arith.extui %0 : i1 to i32
    %c0_i32_0 = arith.constant 0 : i32
    %2 = arith.cmpi ne, %1, %c0_i32_0 : i32
    scf.if %2 {
      %c0_i32_202 = arith.constant 0 : i32
      %593 = tpu.memref_slice %arg20[%c0_i32_202] : memref<5x!tpu.dma_semaphore, #tpu.memory_space<semaphore_mem>> -> memref<1x!tpu.dma_semaphore, #tpu.memory_space<semaphore_mem>>
      %594 = tpu.memref_squeeze %593 : memref<1x!tpu.dma_semaphore, #tpu.memory_space<semaphore_mem>> -> memref<!tpu.dma_semaphore, #tpu.memory_space<semaphore_mem>>
      tpu.enqueue_dma source(%arg3 : memref<2x128x512xf32, #tpu.memory_space<any>>) target(%arg9 : memref<2x128x512xf32, #tpu.memory_space<vmem>>) target_semaphore(%594 : memref<!tpu.dma_semaphore, #tpu.memory_space<semaphore_mem>>)
      %c1_i32_203 = arith.constant 1 : i32
      %595 = tpu.memref_slice %arg20[%c1_i32_203] : memref<5x!tpu.dma_semaphore, #tpu.memory_space<semaphore_mem>> -> memref<1x!tpu.dma_semaphore, #tpu.memory_space<semaphore_mem>>
      %596 = tpu.memref_squeeze %595 : memref<1x!tpu.dma_semaphore, #tpu.memory_space<semaphore_mem>> -> memref<!tpu.dma_semaphore, #tpu.memory_space<semaphore_mem>>
      tpu.enqueue_dma source(%arg4 : memref<2x1x512xf32, #tpu.memory_space<any>>) target(%arg10 : memref<2x1x512xf32, #tpu.memory_space<vmem>>) target_semaphore(%596 : memref<!tpu.dma_semaphore, #tpu.memory_space<semaphore_mem>>)
      %c2_i32_204 = arith.constant 2 : i32
      %597 = tpu.memref_slice %arg20[%c2_i32_204] : memref<5x!tpu.dma_semaphore, #tpu.memory_space<semaphore_mem>> -> memref<1x!tpu.dma_semaphore, #tpu.memory_space<semaphore_mem>>
      %598 = tpu.memref_squeeze %597 : memref<1x!tpu.dma_semaphore, #tpu.memory_space<semaphore_mem>> -> memref<!tpu.dma_semaphore, #tpu.memory_space<semaphore_mem>>
      tpu.enqueue_dma source(%arg5 : memref<2x128x512xf32, #tpu.memory_space<any>>) target(%arg11 : memref<2x128x512xf32, #tpu.memory_space<vmem>>) target_semaphore(%598 : memref<!tpu.dma_semaphore, #tpu.memory_space<semaphore_mem>>)
      %c3_i32_205 = arith.constant 3 : i32
      %599 = tpu.memref_slice %arg20[%c3_i32_205] : memref<5x!tpu.dma_semaphore, #tpu.memory_space<semaphore_mem>> -> memref<1x!tpu.dma_semaphore, #tpu.memory_space<semaphore_mem>>
      %600 = tpu.memref_squeeze %599 : memref<1x!tpu.dma_semaphore, #tpu.memory_space<semaphore_mem>> -> memref<!tpu.dma_semaphore, #tpu.memory_space<semaphore_mem>>
      tpu.enqueue_dma source(%arg6 : memref<128x128xf32, #tpu.memory_space<any>>) target(%arg12 : memref<128x128xf32, #tpu.memory_space<vmem>>) target_semaphore(%600 : memref<!tpu.dma_semaphore, #tpu.memory_space<semaphore_mem>>)
      %c4_i32_206 = arith.constant 4 : i32
      %601 = tpu.memref_slice %arg20[%c4_i32_206] : memref<5x!tpu.dma_semaphore, #tpu.memory_space<semaphore_mem>> -> memref<1x!tpu.dma_semaphore, #tpu.memory_space<semaphore_mem>>
      %602 = tpu.memref_squeeze %601 : memref<1x!tpu.dma_semaphore, #tpu.memory_space<semaphore_mem>> -> memref<!tpu.dma_semaphore, #tpu.memory_space<semaphore_mem>>
      tpu.enqueue_dma source(%arg7 : memref<1x128xf32, #tpu.memory_space<any>>) target(%arg13 : memref<1x128xf32, #tpu.memory_space<vmem>>) target_semaphore(%602 : memref<!tpu.dma_semaphore, #tpu.memory_space<semaphore_mem>>)
      %c0_i32_207 = arith.constant 0 : i32
      %603 = tpu.memref_slice %arg20[%c0_i32_207] : memref<5x!tpu.dma_semaphore, #tpu.memory_space<semaphore_mem>> -> memref<1x!tpu.dma_semaphore, #tpu.memory_space<semaphore_mem>>
      %604 = tpu.memref_squeeze %603 : memref<1x!tpu.dma_semaphore, #tpu.memory_space<semaphore_mem>> -> memref<!tpu.dma_semaphore, #tpu.memory_space<semaphore_mem>>
      tpu.wait_dma2 semaphore(%604 : memref<!tpu.dma_semaphore, #tpu.memory_space<semaphore_mem>>) src(%arg3 : memref<2x128x512xf32, #tpu.memory_space<any>>) dst(%arg9 : memref<2x128x512xf32, #tpu.memory_space<vmem>>)
      %c1_i32_208 = arith.constant 1 : i32
      %605 = tpu.memref_slice %arg20[%c1_i32_208] : memref<5x!tpu.dma_semaphore, #tpu.memory_space<semaphore_mem>> -> memref<1x!tpu.dma_semaphore, #tpu.memory_space<semaphore_mem>>
      %606 = tpu.memref_squeeze %605 : memref<1x!tpu.dma_semaphore, #tpu.memory_space<semaphore_mem>> -> memref<!tpu.dma_semaphore, #tpu.memory_space<semaphore_mem>>
      tpu.wait_dma2 semaphore(%606 : memref<!tpu.dma_semaphore, #tpu.memory_space<semaphore_mem>>) src(%arg4 : memref<2x1x512xf32, #tpu.memory_space<any>>) dst(%arg10 : memref<2x1x512xf32, #tpu.memory_space<vmem>>)
      %c2_i32_209 = arith.constant 2 : i32
      %607 = tpu.memref_slice %arg20[%c2_i32_209] : memref<5x!tpu.dma_semaphore, #tpu.memory_space<semaphore_mem>> -> memref<1x!tpu.dma_semaphore, #tpu.memory_space<semaphore_mem>>
      %608 = tpu.memref_squeeze %607 : memref<1x!tpu.dma_semaphore, #tpu.memory_space<semaphore_mem>> -> memref<!tpu.dma_semaphore, #tpu.memory_space<semaphore_mem>>
      tpu.wait_dma2 semaphore(%608 : memref<!tpu.dma_semaphore, #tpu.memory_space<semaphore_mem>>) src(%arg5 : memref<2x128x512xf32, #tpu.memory_space<any>>) dst(%arg11 : memref<2x128x512xf32, #tpu.memory_space<vmem>>)
      %c3_i32_210 = arith.constant 3 : i32
      %609 = tpu.memref_slice %arg20[%c3_i32_210] : memref<5x!tpu.dma_semaphore, #tpu.memory_space<semaphore_mem>> -> memref<1x!tpu.dma_semaphore, #tpu.memory_space<semaphore_mem>>
      %610 = tpu.memref_squeeze %609 : memref<1x!tpu.dma_semaphore, #tpu.memory_space<semaphore_mem>> -> memref<!tpu.dma_semaphore, #tpu.memory_space<semaphore_mem>>
      tpu.wait_dma2 semaphore(%610 : memref<!tpu.dma_semaphore, #tpu.memory_space<semaphore_mem>>) src(%arg6 : memref<128x128xf32, #tpu.memory_space<any>>) dst(%arg12 : memref<128x128xf32, #tpu.memory_space<vmem>>)
      %c4_i32_211 = arith.constant 4 : i32
      %611 = tpu.memref_slice %arg20[%c4_i32_211] : memref<5x!tpu.dma_semaphore, #tpu.memory_space<semaphore_mem>> -> memref<1x!tpu.dma_semaphore, #tpu.memory_space<semaphore_mem>>
      %612 = tpu.memref_squeeze %611 : memref<1x!tpu.dma_semaphore, #tpu.memory_space<semaphore_mem>> -> memref<!tpu.dma_semaphore, #tpu.memory_space<semaphore_mem>>
      tpu.wait_dma2 semaphore(%612 : memref<!tpu.dma_semaphore, #tpu.memory_space<semaphore_mem>>) src(%arg7 : memref<1x128xf32, #tpu.memory_space<any>>) dst(%arg13 : memref<1x128xf32, #tpu.memory_space<vmem>>)
      %cst_212 = arith.constant 0.000000e+00 : f32
      %613 = vector.broadcast %cst_212 : f32 to vector<2x8x128xf32>
      %c0_213 = arith.constant 0 : index
      %c0_214 = arith.constant 0 : index
      %c0_215 = arith.constant 0 : index
      %614 = vector.load %arg14[%c0_213, %c0_214, %c0_215] : memref<2x8x128xf32, #tpu.memory_space<vmem>>, vector<2x8x128xf32>
      tpu.vector_store %arg14[%c0_213, %c0_214, %c0_215], %613 {strides = array<i32>} : memref<2x8x128xf32, #tpu.memory_space<vmem>>, vector<2x8x128xf32>,
      %cst_216 = arith.constant 0.000000e+00 : f32
      %615 = vector.broadcast %cst_216 : f32 to vector<2x8x128xf32>
      %c0_217 = arith.constant 0 : index
      %c0_218 = arith.constant 0 : index
      %c0_219 = arith.constant 0 : index
      %616 = vector.load %arg15[%c0_217, %c0_218, %c0_219] : memref<2x8x128xf32, #tpu.memory_space<vmem>>, vector<2x8x128xf32>
      tpu.vector_store %arg15[%c0_217, %c0_218, %c0_219], %615 {strides = array<i32>} : memref<2x8x128xf32, #tpu.memory_space<vmem>>, vector<2x8x128xf32>,
      %cst_220 = arith.constant 1.000000e+00 : f32
      %617 = vector.broadcast %cst_220 : f32 to vector<2x8x128xf32>
      %c0_221 = arith.constant 0 : index
      %c0_222 = arith.constant 0 : index
      %c0_223 = arith.constant 0 : index
      %618 = vector.load %arg16[%c0_221, %c0_222, %c0_223] : memref<2x8x128xf32, #tpu.memory_space<vmem>>, vector<2x8x128xf32>
      tpu.vector_store %arg16[%c0_221, %c0_222, %c0_223], %617 {strides = array<i32>} : memref<2x8x128xf32, #tpu.memory_space<vmem>>, vector<2x8x128xf32>,
      %cst_224 = arith.constant 0.000000e+00 : f32
      %619 = vector.broadcast %cst_224 : f32 to vector<2x8x128xf32>
      %c0_225 = arith.constant 0 : index
      %c0_226 = arith.constant 0 : index
      %c0_227 = arith.constant 0 : index
      %620 = vector.load %arg17[%c0_225, %c0_226, %c0_227] : memref<2x8x128xf32, #tpu.memory_space<vmem>>, vector<2x8x128xf32>
      tpu.vector_store %arg17[%c0_225, %c0_226, %c0_227], %619 {strides = array<i32>} : memref<2x8x128xf32, #tpu.memory_space<vmem>>, vector<2x8x128xf32>,
      %cst_228 = arith.constant 0.000000e+00 : f32
      %621 = vector.broadcast %cst_228 : f32 to vector<8x128xf32>
      %c0_229 = arith.constant 0 : index
      %c0_230 = arith.constant 0 : index
      %622 = vector.load %arg8[%c0_229, %c0_230] : memref<8x128xf32, #tpu.memory_space<vmem>>, vector<8x128xf32>
      tpu.vector_store %arg8[%c0_229, %c0_230], %621 {strides = array<i32>} : memref<8x128xf32, #tpu.memory_space<vmem>>, vector<8x128xf32>,
    } else {
    }
    %c0 = arith.constant 0 : index
    %c0_1 = arith.constant 0 : index
    %c0_2 = arith.constant 0 : index
    %c0_3 = arith.constant 0 : index
    %3 = vector.load %arg2[%c0, %c0_1, %c0_2, %c0_3] : memref<1x1x64x128xf32, #tpu.memory_space<vmem>>, vector<1x1x64x128xf32>
    %4 = vector.shape_cast %3 : vector<1x1x64x128xf32> to vector<64x128xf32>
    %c0_4 = arith.constant 0 : index
    %c0_5 = arith.constant 0 : index
    %c0_6 = arith.constant 0 : index
    %5 = vector.load %arg9[%c0_4, %c0_5, %c0_6] : memref<2x128x512xf32, #tpu.memory_space<vmem>>, vector<1x128x512xf32>
    %6 = vector.shape_cast %5 : vector<1x128x512xf32> to vector<128x512xf32>
    %cst = arith.constant dense<0.000000e+00> : vector<64x512xf32>
    %7 = tpu.matmul %4, %6, %cst {dimension_numbers = #tpu.dot_dimension_numbers<[1], [0], [0], [1], [0, 0, 1, 1], [], []>} : vector<64x128xf32>, vector<128x512xf32>, vector<64x512xf32> -> vector<64x512xf32>
    %c0_7 = arith.constant 0 : index
    %c0_8 = arith.constant 0 : index
    %c0_9 = arith.constant 0 : index
    %8 = vector.load %arg10[%c0_7, %c0_8, %c0_9] : memref<2x1x512xf32, #tpu.memory_space<vmem>>, vector<1x1x512xf32>
    %9 = vector.shape_cast %8 : vector<1x1x512xf32> to vector<1x512xf32>
    %10 = vector.broadcast %9 : vector<1x512xf32> to vector<64x512xf32>
    %11 = arith.addf %7, %10 : vector<64x512xf32>
    %c0_10 = arith.constant 0 : index
    %c0_11 = arith.constant 0 : index
    %12 = vector.load %arg19[%c0_10, %c0_11] : memref<64x512xf32, #tpu.memory_space<vmem>>, vector<64x512xf32>
    tpu.vector_store %arg19[%c0_10, %c0_11], %11 {strides = array<i32>} : memref<64x512xf32, #tpu.memory_space<vmem>>, vector<64x512xf32>,
    %c0_12 = arith.constant 0 : index
    %c0_13 = arith.constant 0 : index
    %c0_14 = arith.constant 0 : index
    %13 = vector.load %arg14[%c0_12, %c0_13, %c0_14] : memref<2x8x128xf32, #tpu.memory_space<vmem>>, vector<1x8x128xf32>
    %14 = vector.shape_cast %13 : vector<1x8x128xf32> to vector<8x128xf32>
    %c0_15 = arith.constant 0 : index
    %c0_16 = arith.constant 0 : index
    %c0_17 = arith.constant 0 : index
    %15 = vector.load %arg15[%c0_15, %c0_16, %c0_17] : memref<2x8x128xf32, #tpu.memory_space<vmem>>, vector<1x8x128xf32>
    %16 = vector.shape_cast %15 : vector<1x8x128xf32> to vector<8x128xf32>
    %c0_18 = arith.constant 0 : index
    %c0_19 = arith.constant 0 : index
    %c0_20 = arith.constant 0 : index
    %17 = vector.load %arg16[%c0_18, %c0_19, %c0_20] : memref<2x8x128xf32, #tpu.memory_space<vmem>>, vector<1x8x128xf32>
    %18 = vector.shape_cast %17 : vector<1x8x128xf32> to vector<8x128xf32>
    %c0_21 = arith.constant 0 : index
    %c0_22 = arith.constant 0 : index
    %c0_23 = arith.constant 0 : index
    %19 = vector.load %arg17[%c0_21, %c0_22, %c0_23] : memref<2x8x128xf32, #tpu.memory_space<vmem>>, vector<1x8x128xf32>
    %20 = vector.shape_cast %19 : vector<1x8x128xf32> to vector<8x128xf32>
    %c0_i32_24 = arith.constant 0 : i32
    %c8_i32 = arith.constant 8 : i32
    %21 = arith.muli %c0_i32_24, %c8_i32 : i32
    %22 = tpu.assume_multiple %21, 8 : i32
    %23 = arith.index_cast %22 : i32 to index
    %c0_25 = arith.constant 0 : index
    %24 = vector.load %arg19[%23, %c0_25] : memref<64x512xf32, #tpu.memory_space<vmem>>, vector<8x512xf32>
    %c0_26 = arith.constant 0 : index
    %c0_27 = arith.constant 0 : index
    %c0_28 = arith.constant 0 : index
    %25 = vector.load %arg11[%c0_26, %c0_27, %c0_28] : memref<2x128x512xf32, #tpu.memory_space<vmem>>, vector<1x128x512xf32>
    %26 = vector.shape_cast %25 : vector<1x128x512xf32> to vector<128x512xf32>
    %cst_29 = arith.constant dense<0.000000e+00> : vector<8x512xf32>
    %27 = tpu.matmul %14, %26, %cst_29 {dimension_numbers = #tpu.dot_dimension_numbers<[1], [0], [0], [1], [0, 0, 1, 1], [], []>} : vector<8x128xf32>, vector<128x512xf32>, vector<8x512xf32> -> vector<8x512xf32>
    %28 = arith.addf %24, %27 : vector<8x512xf32>
    %29 = vector.extract_strided_slice %28 {offsets = [0, 0], sizes = [8, 128], strides = [1, 1]} : vector<8x512xf32> to vector<8x128xf32>
    %30 = math.tanh %29 : vector<8x128xf32>
    %31 = vector.extract_strided_slice %28 {offsets = [0, 128], sizes = [8, 128], strides = [1, 1]} : vector<8x512xf32> to vector<8x128xf32>
    %32 = vector.extract_strided_slice %28 {offsets = [0, 256], sizes = [8, 128], strides = [1, 1]} : vector<8x512xf32> to vector<8x128xf32>
    %33 = vector.extract_strided_slice %28 {offsets = [0, 384], sizes = [8, 128], strides = [1, 1]} : vector<8x512xf32> to vector<8x128xf32>
    %34 = arith.negf %33 : vector<8x128xf32>
    %35 = math.exp %34 : vector<8x128xf32>
    %cst_30 = arith.constant 1.000000e+00 : f32
    %36 = vector.broadcast %cst_30 : f32 to vector<8x128xf32>
    %37 = arith.addf %36, %35 : vector<8x128xf32>
    %38 = arith.divf %36, %37 : vector<8x128xf32>
    %39 = arith.addf %32, %20 : vector<8x128xf32>
    %40 = arith.maximumf %39, %31 : vector<8x128xf32>
    %41 = arith.subf %31, %40 : vector<8x128xf32>
    %42 = math.exp %41 : vector<8x128xf32>
    %43 = arith.addf %32, %20 : vector<8x128xf32>
    %44 = arith.subf %43, %40 : vector<8x128xf32>
    %45 = math.exp %44 : vector<8x128xf32>
    %46 = arith.mulf %45, %16 : vector<8x128xf32>
    %47 = arith.mulf %42, %30 : vector<8x128xf32>
    %48 = arith.addf %46, %47 : vector<8x128xf32>
    %49 = arith.mulf %45, %18 : vector<8x128xf32>
    %50 = arith.addf %49, %42 : vector<8x128xf32>
    %51 = arith.mulf %38, %48 : vector<8x128xf32>
    %52 = arith.divf %51, %50 : vector<8x128xf32>
    %53 = arith.index_cast %22 : i32 to index
    %c0_31 = arith.constant 0 : index
    %54 = vector.load %arg18[%53, %c0_31] : memref<64x128xf32, #tpu.memory_space<vmem>>, vector<8x128xf32>
    tpu.vector_store %arg18[%53, %c0_31], %52 {strides = array<i32>} : memref<64x128xf32, #tpu.memory_space<vmem>>, vector<8x128xf32>,
    %c1_i32 = arith.constant 1 : i32
    %c8_i32_32 = arith.constant 8 : i32
    %55 = arith.muli %c1_i32, %c8_i32_32 : i32
    %56 = tpu.assume_multiple %55, 8 : i32
    %57 = arith.index_cast %56 : i32 to index
    %c0_33 = arith.constant 0 : index
    %58 = vector.load %arg19[%57, %c0_33] : memref<64x512xf32, #tpu.memory_space<vmem>>, vector<8x512xf32>
    %c0_34 = arith.constant 0 : index
    %c0_35 = arith.constant 0 : index
    %c0_36 = arith.constant 0 : index
    %59 = vector.load %arg11[%c0_34, %c0_35, %c0_36] : memref<2x128x512xf32, #tpu.memory_space<vmem>>, vector<1x128x512xf32>
    %60 = vector.shape_cast %59 : vector<1x128x512xf32> to vector<128x512xf32>
    %cst_37 = arith.constant dense<0.000000e+00> : vector<8x512xf32>
    %61 = tpu.matmul %52, %60, %cst_37 {dimension_numbers = #tpu.dot_dimension_numbers<[1], [0], [0], [1], [0, 0, 1, 1], [], []>} : vector<8x128xf32>, vector<128x512xf32>, vector<8x512xf32> -> vector<8x512xf32>
    %62 = arith.addf %58, %61 : vector<8x512xf32>
    %63 = vector.extract_strided_slice %62 {offsets = [0, 0], sizes = [8, 128], strides = [1, 1]} : vector<8x512xf32> to vector<8x128xf32>
    %64 = math.tanh %63 : vector<8x128xf32>
    %65 = vector.extract_strided_slice %62 {offsets = [0, 128], sizes = [8, 128], strides = [1, 1]} : vector<8x512xf32> to vector<8x128xf32>
    %66 = vector.extract_strided_slice %62 {offsets = [0, 256], sizes = [8, 128], strides = [1, 1]} : vector<8x512xf32> to vector<8x128xf32>
    %67 = vector.extract_strided_slice %62 {offsets = [0, 384], sizes = [8, 128], strides = [1, 1]} : vector<8x512xf32> to vector<8x128xf32>
    %68 = arith.negf %67 : vector<8x128xf32>
    %69 = math.exp %68 : vector<8x128xf32>
    %cst_38 = arith.constant 1.000000e+00 : f32
    %70 = vector.broadcast %cst_38 : f32 to vector<8x128xf32>
    %71 = arith.addf %70, %69 : vector<8x128xf32>
    %72 = arith.divf %70, %71 : vector<8x128xf32>
    %73 = arith.addf %66, %40 : vector<8x128xf32>
    %74 = arith.maximumf %73, %65 : vector<8x128xf32>
    %75 = arith.subf %65, %74 : vector<8x128xf32>
    %76 = math.exp %75 : vector<8x128xf32>
    %77 = arith.addf %66, %40 : vector<8x128xf32>
    %78 = arith.subf %77, %74 : vector<8x128xf32>
    %79 = math.exp %78 : vector<8x128xf32>
    %80 = arith.mulf %79, %48 : vector<8x128xf32>
    %81 = arith.mulf %76, %64 : vector<8x128xf32>
    %82 = arith.addf %80, %81 : vector<8x128xf32>
    %83 = arith.mulf %79, %50 : vector<8x128xf32>
    %84 = arith.addf %83, %76 : vector<8x128xf32>
    %85 = arith.mulf %72, %82 : vector<8x128xf32>
    %86 = arith.divf %85, %84 : vector<8x128xf32>
    %87 = arith.index_cast %56 : i32 to index
    %c0_39 = arith.constant 0 : index
    %88 = vector.load %arg18[%87, %c0_39] : memref<64x128xf32, #tpu.memory_space<vmem>>, vector<8x128xf32>
    tpu.vector_store %arg18[%87, %c0_39], %86 {strides = array<i32>} : memref<64x128xf32, #tpu.memory_space<vmem>>, vector<8x128xf32>,
    %c2_i32 = arith.constant 2 : i32
    %c8_i32_40 = arith.constant 8 : i32
    %89 = arith.muli %c2_i32, %c8_i32_40 : i32
    %90 = tpu.assume_multiple %89, 8 : i32
    %91 = arith.index_cast %90 : i32 to index
    %c0_41 = arith.constant 0 : index
    %92 = vector.load %arg19[%91, %c0_41] : memref<64x512xf32, #tpu.memory_space<vmem>>, vector<8x512xf32>
    %c0_42 = arith.constant 0 : index
    %c0_43 = arith.constant 0 : index
    %c0_44 = arith.constant 0 : index
    %93 = vector.load %arg11[%c0_42, %c0_43, %c0_44] : memref<2x128x512xf32, #tpu.memory_space<vmem>>, vector<1x128x512xf32>
    %94 = vector.shape_cast %93 : vector<1x128x512xf32> to vector<128x512xf32>
    %cst_45 = arith.constant dense<0.000000e+00> : vector<8x512xf32>
    %95 = tpu.matmul %86, %94, %cst_45 {dimension_numbers = #tpu.dot_dimension_numbers<[1], [0], [0], [1], [0, 0, 1, 1], [], []>} : vector<8x128xf32>, vector<128x512xf32>, vector<8x512xf32> -> vector<8x512xf32>
    %96 = arith.addf %92, %95 : vector<8x512xf32>
    %97 = vector.extract_strided_slice %96 {offsets = [0, 0], sizes = [8, 128], strides = [1, 1]} : vector<8x512xf32> to vector<8x128xf32>
    %98 = math.tanh %97 : vector<8x128xf32>
    %99 = vector.extract_strided_slice %96 {offsets = [0, 128], sizes = [8, 128], strides = [1, 1]} : vector<8x512xf32> to vector<8x128xf32>
    %100 = vector.extract_strided_slice %96 {offsets = [0, 256], sizes = [8, 128], strides = [1, 1]} : vector<8x512xf32> to vector<8x128xf32>
    %101 = vector.extract_strided_slice %96 {offsets = [0, 384], sizes = [8, 128], strides = [1, 1]} : vector<8x512xf32> to vector<8x128xf32>
    %102 = arith.negf %101 : vector<8x128xf32>
    %103 = math.exp %102 : vector<8x128xf32>
    %cst_46 = arith.constant 1.000000e+00 : f32
    %104 = vector.broadcast %cst_46 : f32 to vector<8x128xf32>
    %105 = arith.addf %104, %103 : vector<8x128xf32>
    %106 = arith.divf %104, %105 : vector<8x128xf32>
    %107 = arith.addf %100, %74 : vector<8x128xf32>
    %108 = arith.maximumf %107, %99 : vector<8x128xf32>
    %109 = arith.subf %99, %108 : vector<8x128xf32>
    %110 = math.exp %109 : vector<8x128xf32>
    %111 = arith.addf %100, %74 : vector<8x128xf32>
    %112 = arith.subf %111, %108 : vector<8x128xf32>
    %113 = math.exp %112 : vector<8x128xf32>
    %114 = arith.mulf %113, %82 : vector<8x128xf32>
    %115 = arith.mulf %110, %98 : vector<8x128xf32>
    %116 = arith.addf %114, %115 : vector<8x128xf32>
    %117 = arith.mulf %113, %84 : vector<8x128xf32>
    %118 = arith.addf %117, %110 : vector<8x128xf32>
    %119 = arith.mulf %106, %116 : vector<8x128xf32>
    %120 = arith.divf %119, %118 : vector<8x128xf32>
    %121 = arith.index_cast %90 : i32 to index
    %c0_47 = arith.constant 0 : index
    %122 = vector.load %arg18[%121, %c0_47] : memref<64x128xf32, #tpu.memory_space<vmem>>, vector<8x128xf32>
    tpu.vector_store %arg18[%121, %c0_47], %120 {strides = array<i32>} : memref<64x128xf32, #tpu.memory_space<vmem>>, vector<8x128xf32>,
    %c3_i32 = arith.constant 3 : i32
    %c8_i32_48 = arith.constant 8 : i32
    %123 = arith.muli %c3_i32, %c8_i32_48 : i32
    %124 = tpu.assume_multiple %123, 8 : i32
    %125 = arith.index_cast %124 : i32 to index
    %c0_49 = arith.constant 0 : index
    %126 = vector.load %arg19[%125, %c0_49] : memref<64x512xf32, #tpu.memory_space<vmem>>, vector<8x512xf32>
    %c0_50 = arith.constant 0 : index
    %c0_51 = arith.constant 0 : index
    %c0_52 = arith.constant 0 : index
    %127 = vector.load %arg11[%c0_50, %c0_51, %c0_52] : memref<2x128x512xf32, #tpu.memory_space<vmem>>, vector<1x128x512xf32>
    %128 = vector.shape_cast %127 : vector<1x128x512xf32> to vector<128x512xf32>
    %cst_53 = arith.constant dense<0.000000e+00> : vector<8x512xf32>
    %129 = tpu.matmul %120, %128, %cst_53 {dimension_numbers = #tpu.dot_dimension_numbers<[1], [0], [0], [1], [0, 0, 1, 1], [], []>} : vector<8x128xf32>, vector<128x512xf32>, vector<8x512xf32> -> vector<8x512xf32>
    %130 = arith.addf %126, %129 : vector<8x512xf32>
    %131 = vector.extract_strided_slice %130 {offsets = [0, 0], sizes = [8, 128], strides = [1, 1]} : vector<8x512xf32> to vector<8x128xf32>
    %132 = math.tanh %131 : vector<8x128xf32>
    %133 = vector.extract_strided_slice %130 {offsets = [0, 128], sizes = [8, 128], strides = [1, 1]} : vector<8x512xf32> to vector<8x128xf32>
    %134 = vector.extract_strided_slice %130 {offsets = [0, 256], sizes = [8, 128], strides = [1, 1]} : vector<8x512xf32> to vector<8x128xf32>
    %135 = vector.extract_strided_slice %130 {offsets = [0, 384], sizes = [8, 128], strides = [1, 1]} : vector<8x512xf32> to vector<8x128xf32>
    %136 = arith.negf %135 : vector<8x128xf32>
    %137 = math.exp %136 : vector<8x128xf32>
    %cst_54 = arith.constant 1.000000e+00 : f32
    %138 = vector.broadcast %cst_54 : f32 to vector<8x128xf32>
    %139 = arith.addf %138, %137 : vector<8x128xf32>
    %140 = arith.divf %138, %139 : vector<8x128xf32>
    %141 = arith.addf %134, %108 : vector<8x128xf32>
    %142 = arith.maximumf %141, %133 : vector<8x128xf32>
    %143 = arith.subf %133, %142 : vector<8x128xf32>
    %144 = math.exp %143 : vector<8x128xf32>
    %145 = arith.addf %134, %108 : vector<8x128xf32>
    %146 = arith.subf %145, %142 : vector<8x128xf32>
    %147 = math.exp %146 : vector<8x128xf32>
    %148 = arith.mulf %147, %116 : vector<8x128xf32>
    %149 = arith.mulf %144, %132 : vector<8x128xf32>
    %150 = arith.addf %148, %149 : vector<8x128xf32>
    %151 = arith.mulf %147, %118 : vector<8x128xf32>
    %152 = arith.addf %151, %144 : vector<8x128xf32>
    %153 = arith.mulf %140, %150 : vector<8x128xf32>
    %154 = arith.divf %153, %152 : vector<8x128xf32>
    %155 = arith.index_cast %124 : i32 to index
    %c0_55 = arith.constant 0 : index
    %156 = vector.load %arg18[%155, %c0_55] : memref<64x128xf32, #tpu.memory_space<vmem>>, vector<8x128xf32>
    tpu.vector_store %arg18[%155, %c0_55], %154 {strides = array<i32>} : memref<64x128xf32, #tpu.memory_space<vmem>>, vector<8x128xf32>,
    %c4_i32 = arith.constant 4 : i32
    %c8_i32_56 = arith.constant 8 : i32
    %157 = arith.muli %c4_i32, %c8_i32_56 : i32
    %158 = tpu.assume_multiple %157, 8 : i32
    %159 = arith.index_cast %158 : i32 to index
    %c0_57 = arith.constant 0 : index
    %160 = vector.load %arg19[%159, %c0_57] : memref<64x512xf32, #tpu.memory_space<vmem>>, vector<8x512xf32>
    %c0_58 = arith.constant 0 : index
    %c0_59 = arith.constant 0 : index
    %c0_60 = arith.constant 0 : index
    %161 = vector.load %arg11[%c0_58, %c0_59, %c0_60] : memref<2x128x512xf32, #tpu.memory_space<vmem>>, vector<1x128x512xf32>
    %162 = vector.shape_cast %161 : vector<1x128x512xf32> to vector<128x512xf32>
    %cst_61 = arith.constant dense<0.000000e+00> : vector<8x512xf32>
    %163 = tpu.matmul %154, %162, %cst_61 {dimension_numbers = #tpu.dot_dimension_numbers<[1], [0], [0], [1], [0, 0, 1, 1], [], []>} : vector<8x128xf32>, vector<128x512xf32>, vector<8x512xf32> -> vector<8x512xf32>
    %164 = arith.addf %160, %163 : vector<8x512xf32>
    %165 = vector.extract_strided_slice %164 {offsets = [0, 0], sizes = [8, 128], strides = [1, 1]} : vector<8x512xf32> to vector<8x128xf32>
    %166 = math.tanh %165 : vector<8x128xf32>
    %167 = vector.extract_strided_slice %164 {offsets = [0, 128], sizes = [8, 128], strides = [1, 1]} : vector<8x512xf32> to vector<8x128xf32>
    %168 = vector.extract_strided_slice %164 {offsets = [0, 256], sizes = [8, 128], strides = [1, 1]} : vector<8x512xf32> to vector<8x128xf32>
    %169 = vector.extract_strided_slice %164 {offsets = [0, 384], sizes = [8, 128], strides = [1, 1]} : vector<8x512xf32> to vector<8x128xf32>
    %170 = arith.negf %169 : vector<8x128xf32>
    %171 = math.exp %170 : vector<8x128xf32>
    %cst_62 = arith.constant 1.000000e+00 : f32
    %172 = vector.broadcast %cst_62 : f32 to vector<8x128xf32>
    %173 = arith.addf %172, %171 : vector<8x128xf32>
    %174 = arith.divf %172, %173 : vector<8x128xf32>
    %175 = arith.addf %168, %142 : vector<8x128xf32>
    %176 = arith.maximumf %175, %167 : vector<8x128xf32>
    %177 = arith.subf %167, %176 : vector<8x128xf32>
    %178 = math.exp %177 : vector<8x128xf32>
    %179 = arith.addf %168, %142 : vector<8x128xf32>
    %180 = arith.subf %179, %176 : vector<8x128xf32>
    %181 = math.exp %180 : vector<8x128xf32>
    %182 = arith.mulf %181, %150 : vector<8x128xf32>
    %183 = arith.mulf %178, %166 : vector<8x128xf32>
    %184 = arith.addf %182, %183 : vector<8x128xf32>
    %185 = arith.mulf %181, %152 : vector<8x128xf32>
    %186 = arith.addf %185, %178 : vector<8x128xf32>
    %187 = arith.mulf %174, %184 : vector<8x128xf32>
    %188 = arith.divf %187, %186 : vector<8x128xf32>
    %189 = arith.index_cast %158 : i32 to index
    %c0_63 = arith.constant 0 : index
    %190 = vector.load %arg18[%189, %c0_63] : memref<64x128xf32, #tpu.memory_space<vmem>>, vector<8x128xf32>
    tpu.vector_store %arg18[%189, %c0_63], %188 {strides = array<i32>} : memref<64x128xf32, #tpu.memory_space<vmem>>, vector<8x128xf32>,
    %c5_i32 = arith.constant 5 : i32
    %c8_i32_64 = arith.constant 8 : i32
    %191 = arith.muli %c5_i32, %c8_i32_64 : i32
    %192 = tpu.assume_multiple %191, 8 : i32
    %193 = arith.index_cast %192 : i32 to index
    %c0_65 = arith.constant 0 : index
    %194 = vector.load %arg19[%193, %c0_65] : memref<64x512xf32, #tpu.memory_space<vmem>>, vector<8x512xf32>
    %c0_66 = arith.constant 0 : index
    %c0_67 = arith.constant 0 : index
    %c0_68 = arith.constant 0 : index
    %195 = vector.load %arg11[%c0_66, %c0_67, %c0_68] : memref<2x128x512xf32, #tpu.memory_space<vmem>>, vector<1x128x512xf32>
    %196 = vector.shape_cast %195 : vector<1x128x512xf32> to vector<128x512xf32>
    %cst_69 = arith.constant dense<0.000000e+00> : vector<8x512xf32>
    %197 = tpu.matmul %188, %196, %cst_69 {dimension_numbers = #tpu.dot_dimension_numbers<[1], [0], [0], [1], [0, 0, 1, 1], [], []>} : vector<8x128xf32>, vector<128x512xf32>, vector<8x512xf32> -> vector<8x512xf32>
    %198 = arith.addf %194, %197 : vector<8x512xf32>
    %199 = vector.extract_strided_slice %198 {offsets = [0, 0], sizes = [8, 128], strides = [1, 1]} : vector<8x512xf32> to vector<8x128xf32>
    %200 = math.tanh %199 : vector<8x128xf32>
    %201 = vector.extract_strided_slice %198 {offsets = [0, 128], sizes = [8, 128], strides = [1, 1]} : vector<8x512xf32> to vector<8x128xf32>
    %202 = vector.extract_strided_slice %198 {offsets = [0, 256], sizes = [8, 128], strides = [1, 1]} : vector<8x512xf32> to vector<8x128xf32>
    %203 = vector.extract_strided_slice %198 {offsets = [0, 384], sizes = [8, 128], strides = [1, 1]} : vector<8x512xf32> to vector<8x128xf32>
    %204 = arith.negf %203 : vector<8x128xf32>
    %205 = math.exp %204 : vector<8x128xf32>
    %cst_70 = arith.constant 1.000000e+00 : f32
    %206 = vector.broadcast %cst_70 : f32 to vector<8x128xf32>
    %207 = arith.addf %206, %205 : vector<8x128xf32>
    %208 = arith.divf %206, %207 : vector<8x128xf32>
    %209 = arith.addf %202, %176 : vector<8x128xf32>
    %210 = arith.maximumf %209, %201 : vector<8x128xf32>
    %211 = arith.subf %201, %210 : vector<8x128xf32>
    %212 = math.exp %211 : vector<8x128xf32>
    %213 = arith.addf %202, %176 : vector<8x128xf32>
    %214 = arith.subf %213, %210 : vector<8x128xf32>
    %215 = math.exp %214 : vector<8x128xf32>
    %216 = arith.mulf %215, %184 : vector<8x128xf32>
    %217 = arith.mulf %212, %200 : vector<8x128xf32>
    %218 = arith.addf %216, %217 : vector<8x128xf32>
    %219 = arith.mulf %215, %186 : vector<8x128xf32>
    %220 = arith.addf %219, %212 : vector<8x128xf32>
    %221 = arith.mulf %208, %218 : vector<8x128xf32>
    %222 = arith.divf %221, %220 : vector<8x128xf32>
    %223 = arith.index_cast %192 : i32 to index
    %c0_71 = arith.constant 0 : index
    %224 = vector.load %arg18[%223, %c0_71] : memref<64x128xf32, #tpu.memory_space<vmem>>, vector<8x128xf32>
    tpu.vector_store %arg18[%223, %c0_71], %222 {strides = array<i32>} : memref<64x128xf32, #tpu.memory_space<vmem>>, vector<8x128xf32>,
    %c6_i32 = arith.constant 6 : i32
    %c8_i32_72 = arith.constant 8 : i32
    %225 = arith.muli %c6_i32, %c8_i32_72 : i32
    %226 = tpu.assume_multiple %225, 8 : i32
    %227 = arith.index_cast %226 : i32 to index
    %c0_73 = arith.constant 0 : index
    %228 = vector.load %arg19[%227, %c0_73] : memref<64x512xf32, #tpu.memory_space<vmem>>, vector<8x512xf32>
    %c0_74 = arith.constant 0 : index
    %c0_75 = arith.constant 0 : index
    %c0_76 = arith.constant 0 : index
    %229 = vector.load %arg11[%c0_74, %c0_75, %c0_76] : memref<2x128x512xf32, #tpu.memory_space<vmem>>, vector<1x128x512xf32>
    %230 = vector.shape_cast %229 : vector<1x128x512xf32> to vector<128x512xf32>
    %cst_77 = arith.constant dense<0.000000e+00> : vector<8x512xf32>
    %231 = tpu.matmul %222, %230, %cst_77 {dimension_numbers = #tpu.dot_dimension_numbers<[1], [0], [0], [1], [0, 0, 1, 1], [], []>} : vector<8x128xf32>, vector<128x512xf32>, vector<8x512xf32> -> vector<8x512xf32>
    %232 = arith.addf %228, %231 : vector<8x512xf32>
    %233 = vector.extract_strided_slice %232 {offsets = [0, 0], sizes = [8, 128], strides = [1, 1]} : vector<8x512xf32> to vector<8x128xf32>
    %234 = math.tanh %233 : vector<8x128xf32>
    %235 = vector.extract_strided_slice %232 {offsets = [0, 128], sizes = [8, 128], strides = [1, 1]} : vector<8x512xf32> to vector<8x128xf32>
    %236 = vector.extract_strided_slice %232 {offsets = [0, 256], sizes = [8, 128], strides = [1, 1]} : vector<8x512xf32> to vector<8x128xf32>
    %237 = vector.extract_strided_slice %232 {offsets = [0, 384], sizes = [8, 128], strides = [1, 1]} : vector<8x512xf32> to vector<8x128xf32>
    %238 = arith.negf %237 : vector<8x128xf32>
    %239 = math.exp %238 : vector<8x128xf32>
    %cst_78 = arith.constant 1.000000e+00 : f32
    %240 = vector.broadcast %cst_78 : f32 to vector<8x128xf32>
    %241 = arith.addf %240, %239 : vector<8x128xf32>
    %242 = arith.divf %240, %241 : vector<8x128xf32>
    %243 = arith.addf %236, %210 : vector<8x128xf32>
    %244 = arith.maximumf %243, %235 : vector<8x128xf32>
    %245 = arith.subf %235, %244 : vector<8x128xf32>
    %246 = math.exp %245 : vector<8x128xf32>
    %247 = arith.addf %236, %210 : vector<8x128xf32>
    %248 = arith.subf %247, %244 : vector<8x128xf32>
    %249 = math.exp %248 : vector<8x128xf32>
    %250 = arith.mulf %249, %218 : vector<8x128xf32>
    %251 = arith.mulf %246, %234 : vector<8x128xf32>
    %252 = arith.addf %250, %251 : vector<8x128xf32>
    %253 = arith.mulf %249, %220 : vector<8x128xf32>
    %254 = arith.addf %253, %246 : vector<8x128xf32>
    %255 = arith.mulf %242, %252 : vector<8x128xf32>
    %256 = arith.divf %255, %254 : vector<8x128xf32>
    %257 = arith.index_cast %226 : i32 to index
    %c0_79 = arith.constant 0 : index
    %258 = vector.load %arg18[%257, %c0_79] : memref<64x128xf32, #tpu.memory_space<vmem>>, vector<8x128xf32>
    tpu.vector_store %arg18[%257, %c0_79], %256 {strides = array<i32>} : memref<64x128xf32, #tpu.memory_space<vmem>>, vector<8x128xf32>,
    %c7_i32 = arith.constant 7 : i32
    %c8_i32_80 = arith.constant 8 : i32
    %259 = arith.muli %c7_i32, %c8_i32_80 : i32
    %260 = tpu.assume_multiple %259, 8 : i32
    %261 = arith.index_cast %260 : i32 to index
    %c0_81 = arith.constant 0 : index
    %262 = vector.load %arg19[%261, %c0_81] : memref<64x512xf32, #tpu.memory_space<vmem>>, vector<8x512xf32>
    %c0_82 = arith.constant 0 : index
    %c0_83 = arith.constant 0 : index
    %c0_84 = arith.constant 0 : index
    %263 = vector.load %arg11[%c0_82, %c0_83, %c0_84] : memref<2x128x512xf32, #tpu.memory_space<vmem>>, vector<1x128x512xf32>
    %264 = vector.shape_cast %263 : vector<1x128x512xf32> to vector<128x512xf32>
    %cst_85 = arith.constant dense<0.000000e+00> : vector<8x512xf32>
    %265 = tpu.matmul %256, %264, %cst_85 {dimension_numbers = #tpu.dot_dimension_numbers<[1], [0], [0], [1], [0, 0, 1, 1], [], []>} : vector<8x128xf32>, vector<128x512xf32>, vector<8x512xf32> -> vector<8x512xf32>
    %266 = arith.addf %262, %265 : vector<8x512xf32>
    %267 = vector.extract_strided_slice %266 {offsets = [0, 0], sizes = [8, 128], strides = [1, 1]} : vector<8x512xf32> to vector<8x128xf32>
    %268 = math.tanh %267 : vector<8x128xf32>
    %269 = vector.extract_strided_slice %266 {offsets = [0, 128], sizes = [8, 128], strides = [1, 1]} : vector<8x512xf32> to vector<8x128xf32>
    %270 = vector.extract_strided_slice %266 {offsets = [0, 256], sizes = [8, 128], strides = [1, 1]} : vector<8x512xf32> to vector<8x128xf32>
    %271 = vector.extract_strided_slice %266 {offsets = [0, 384], sizes = [8, 128], strides = [1, 1]} : vector<8x512xf32> to vector<8x128xf32>
    %272 = arith.negf %271 : vector<8x128xf32>
    %273 = math.exp %272 : vector<8x128xf32>
    %cst_86 = arith.constant 1.000000e+00 : f32
    %274 = vector.broadcast %cst_86 : f32 to vector<8x128xf32>
    %275 = arith.addf %274, %273 : vector<8x128xf32>
    %276 = arith.divf %274, %275 : vector<8x128xf32>
    %277 = arith.addf %270, %244 : vector<8x128xf32>
    %278 = arith.maximumf %277, %269 : vector<8x128xf32>
    %279 = arith.subf %269, %278 : vector<8x128xf32>
    %280 = math.exp %279 : vector<8x128xf32>
    %281 = arith.addf %270, %244 : vector<8x128xf32>
    %282 = arith.subf %281, %278 : vector<8x128xf32>
    %283 = math.exp %282 : vector<8x128xf32>
    %284 = arith.mulf %283, %252 : vector<8x128xf32>
    %285 = arith.mulf %280, %268 : vector<8x128xf32>
    %286 = arith.addf %284, %285 : vector<8x128xf32>
    %287 = arith.mulf %283, %254 : vector<8x128xf32>
    %288 = arith.addf %287, %280 : vector<8x128xf32>
    %289 = arith.mulf %276, %286 : vector<8x128xf32>
    %290 = arith.divf %289, %288 : vector<8x128xf32>
    %291 = arith.index_cast %260 : i32 to index
    %c0_87 = arith.constant 0 : index
    %292 = vector.load %arg18[%291, %c0_87] : memref<64x128xf32, #tpu.memory_space<vmem>>, vector<8x128xf32>
    tpu.vector_store %arg18[%291, %c0_87], %290 {strides = array<i32>} : memref<64x128xf32, #tpu.memory_space<vmem>>, vector<8x128xf32>,
    %c8_i32_88 = arith.constant 8 : i32
    %c0_89 = arith.constant 0 : index
    %c0_90 = arith.constant 0 : index
    %c0_91 = arith.constant 0 : index
    %293 = vector.load %arg14[%c0_89, %c0_90, %c0_91] : memref<2x8x128xf32, #tpu.memory_space<vmem>>, vector<1x8x128xf32>
    %294 = vector.shape_cast %293 : vector<1x8x128xf32> to vector<8x128xf32>
    %295 = vector.shape_cast %290 : vector<8x128xf32> to vector<1x8x128xf32>
    tpu.vector_store %arg14[%c0_89, %c0_90, %c0_91], %295 {strides = array<i32>} : memref<2x8x128xf32, #tpu.memory_space<vmem>>, vector<1x8x128xf32>,
    %c0_92 = arith.constant 0 : index
    %c0_93 = arith.constant 0 : index
    %c0_94 = arith.constant 0 : index
    %296 = vector.load %arg15[%c0_92, %c0_93, %c0_94] : memref<2x8x128xf32, #tpu.memory_space<vmem>>, vector<1x8x128xf32>
    %297 = vector.shape_cast %296 : vector<1x8x128xf32> to vector<8x128xf32>
    %298 = vector.shape_cast %286 : vector<8x128xf32> to vector<1x8x128xf32>
    tpu.vector_store %arg15[%c0_92, %c0_93, %c0_94], %298 {strides = array<i32>} : memref<2x8x128xf32, #tpu.memory_space<vmem>>, vector<1x8x128xf32>,
    %c0_95 = arith.constant 0 : index
    %c0_96 = arith.constant 0 : index
    %c0_97 = arith.constant 0 : index
    %299 = vector.load %arg16[%c0_95, %c0_96, %c0_97] : memref<2x8x128xf32, #tpu.memory_space<vmem>>, vector<1x8x128xf32>
    %300 = vector.shape_cast %299 : vector<1x8x128xf32> to vector<8x128xf32>
    %301 = vector.shape_cast %288 : vector<8x128xf32> to vector<1x8x128xf32>
    tpu.vector_store %arg16[%c0_95, %c0_96, %c0_97], %301 {strides = array<i32>} : memref<2x8x128xf32, #tpu.memory_space<vmem>>, vector<1x8x128xf32>,
    %c0_98 = arith.constant 0 : index
    %c0_99 = arith.constant 0 : index
    %c0_100 = arith.constant 0 : index
    %302 = vector.load %arg17[%c0_98, %c0_99, %c0_100] : memref<2x8x128xf32, #tpu.memory_space<vmem>>, vector<1x8x128xf32>
    %303 = vector.shape_cast %302 : vector<1x8x128xf32> to vector<8x128xf32>
    %304 = vector.shape_cast %278 : vector<8x128xf32> to vector<1x8x128xf32>
    tpu.vector_store %arg17[%c0_98, %c0_99, %c0_100], %304 {strides = array<i32>} : memref<2x8x128xf32, #tpu.memory_space<vmem>>, vector<1x8x128xf32>,
    %c0_101 = arith.constant 0 : index
    %c0_102 = arith.constant 0 : index
    %305 = vector.load %arg18[%c0_101, %c0_102] : memref<64x128xf32, #tpu.memory_space<vmem>>, vector<64x128xf32>
    %c1 = arith.constant 1 : index
    %c0_103 = arith.constant 0 : index
    %c0_104 = arith.constant 0 : index
    %306 = vector.load %arg9[%c1, %c0_103, %c0_104] : memref<2x128x512xf32, #tpu.memory_space<vmem>>, vector<1x128x512xf32>
    %307 = vector.shape_cast %306 : vector<1x128x512xf32> to vector<128x512xf32>
    %cst_105 = arith.constant dense<0.000000e+00> : vector<64x512xf32>
    %308 = tpu.matmul %305, %307, %cst_105 {dimension_numbers = #tpu.dot_dimension_numbers<[1], [0], [0], [1], [0, 0, 1, 1], [], []>} : vector<64x128xf32>, vector<128x512xf32>, vector<64x512xf32> -> vector<64x512xf32>
    %c1_106 = arith.constant 1 : index
    %c0_107 = arith.constant 0 : index
    %c0_108 = arith.constant 0 : index
    %309 = vector.load %arg10[%c1_106, %c0_107, %c0_108] : memref<2x1x512xf32, #tpu.memory_space<vmem>>, vector<1x1x512xf32>
    %310 = vector.shape_cast %309 : vector<1x1x512xf32> to vector<1x512xf32>
    %311 = vector.broadcast %310 : vector<1x512xf32> to vector<64x512xf32>
    %312 = arith.addf %308, %311 : vector<64x512xf32>
    %c0_109 = arith.constant 0 : index
    %c0_110 = arith.constant 0 : index
    %313 = vector.load %arg19[%c0_109, %c0_110] : memref<64x512xf32, #tpu.memory_space<vmem>>, vector<64x512xf32>
    tpu.vector_store %arg19[%c0_109, %c0_110], %312 {strides = array<i32>} : memref<64x512xf32, #tpu.memory_space<vmem>>, vector<64x512xf32>,
    %c1_111 = arith.constant 1 : index
    %c0_112 = arith.constant 0 : index
    %c0_113 = arith.constant 0 : index
    %314 = vector.load %arg14[%c1_111, %c0_112, %c0_113] : memref<2x8x128xf32, #tpu.memory_space<vmem>>, vector<1x8x128xf32>
    %315 = vector.shape_cast %314 : vector<1x8x128xf32> to vector<8x128xf32>
    %c1_114 = arith.constant 1 : index
    %c0_115 = arith.constant 0 : index
    %c0_116 = arith.constant 0 : index
    %316 = vector.load %arg15[%c1_114, %c0_115, %c0_116] : memref<2x8x128xf32, #tpu.memory_space<vmem>>, vector<1x8x128xf32>
    %317 = vector.shape_cast %316 : vector<1x8x128xf32> to vector<8x128xf32>
    %c1_117 = arith.constant 1 : index
    %c0_118 = arith.constant 0 : index
    %c0_119 = arith.constant 0 : index
    %318 = vector.load %arg16[%c1_117, %c0_118, %c0_119] : memref<2x8x128xf32, #tpu.memory_space<vmem>>, vector<1x8x128xf32>
    %319 = vector.shape_cast %318 : vector<1x8x128xf32> to vector<8x128xf32>
    %c1_120 = arith.constant 1 : index
    %c0_121 = arith.constant 0 : index
    %c0_122 = arith.constant 0 : index
    %320 = vector.load %arg17[%c1_120, %c0_121, %c0_122] : memref<2x8x128xf32, #tpu.memory_space<vmem>>, vector<1x8x128xf32>
    %321 = vector.shape_cast %320 : vector<1x8x128xf32> to vector<8x128xf32>
    %c0_i32_123 = arith.constant 0 : i32
    %c8_i32_124 = arith.constant 8 : i32
    %322 = arith.muli %c0_i32_123, %c8_i32_124 : i32
    %323 = tpu.assume_multiple %322, 8 : i32
    %324 = arith.index_cast %323 : i32 to index
    %c0_125 = arith.constant 0 : index
    %325 = vector.load %arg19[%324, %c0_125] : memref<64x512xf32, #tpu.memory_space<vmem>>, vector<8x512xf32>
    %c1_126 = arith.constant 1 : index
    %c0_127 = arith.constant 0 : index
    %c0_128 = arith.constant 0 : index
    %326 = vector.load %arg11[%c1_126, %c0_127, %c0_128] : memref<2x128x512xf32, #tpu.memory_space<vmem>>, vector<1x128x512xf32>
    %327 = vector.shape_cast %326 : vector<1x128x512xf32> to vector<128x512xf32>
    %cst_129 = arith.constant dense<0.000000e+00> : vector<8x512xf32>
    %328 = tpu.matmul %315, %327, %cst_129 {dimension_numbers = #tpu.dot_dimension_numbers<[1], [0], [0], [1], [0, 0, 1, 1], [], []>} : vector<8x128xf32>, vector<128x512xf32>, vector<8x512xf32> -> vector<8x512xf32>
    %329 = arith.addf %325, %328 : vector<8x512xf32>
    %330 = vector.extract_strided_slice %329 {offsets = [0, 0], sizes = [8, 128], strides = [1, 1]} : vector<8x512xf32> to vector<8x128xf32>
    %331 = math.tanh %330 : vector<8x128xf32>
    %332 = vector.extract_strided_slice %329 {offsets = [0, 128], sizes = [8, 128], strides = [1, 1]} : vector<8x512xf32> to vector<8x128xf32>
    %333 = vector.extract_strided_slice %329 {offsets = [0, 256], sizes = [8, 128], strides = [1, 1]} : vector<8x512xf32> to vector<8x128xf32>
    %334 = vector.extract_strided_slice %329 {offsets = [0, 384], sizes = [8, 128], strides = [1, 1]} : vector<8x512xf32> to vector<8x128xf32>
    %335 = arith.negf %334 : vector<8x128xf32>
    %336 = math.exp %335 : vector<8x128xf32>
    %cst_130 = arith.constant 1.000000e+00 : f32
    %337 = vector.broadcast %cst_130 : f32 to vector<8x128xf32>
    %338 = arith.addf %337, %336 : vector<8x128xf32>
    %339 = arith.divf %337, %338 : vector<8x128xf32>
    %340 = arith.addf %333, %321 : vector<8x128xf32>
    %341 = arith.maximumf %340, %332 : vector<8x128xf32>
    %342 = arith.subf %332, %341 : vector<8x128xf32>
    %343 = math.exp %342 : vector<8x128xf32>
    %344 = arith.addf %333, %321 : vector<8x128xf32>
    %345 = arith.subf %344, %341 : vector<8x128xf32>
    %346 = math.exp %345 : vector<8x128xf32>
    %347 = arith.mulf %346, %317 : vector<8x128xf32>
    %348 = arith.mulf %343, %331 : vector<8x128xf32>
    %349 = arith.addf %347, %348 : vector<8x128xf32>
    %350 = arith.mulf %346, %319 : vector<8x128xf32>
    %351 = arith.addf %350, %343 : vector<8x128xf32>
    %352 = arith.mulf %339, %349 : vector<8x128xf32>
    %353 = arith.divf %352, %351 : vector<8x128xf32>
    %c1_i32_131 = arith.constant 1 : i32
    %c8_i32_132 = arith.constant 8 : i32
    %354 = arith.muli %c1_i32_131, %c8_i32_132 : i32
    %355 = tpu.assume_multiple %354, 8 : i32
    %356 = arith.index_cast %355 : i32 to index
    %c0_133 = arith.constant 0 : index
    %357 = vector.load %arg19[%356, %c0_133] : memref<64x512xf32, #tpu.memory_space<vmem>>, vector<8x512xf32>
    %c1_134 = arith.constant 1 : index
    %c0_135 = arith.constant 0 : index
    %c0_136 = arith.constant 0 : index
    %358 = vector.load %arg11[%c1_134, %c0_135, %c0_136] : memref<2x128x512xf32, #tpu.memory_space<vmem>>, vector<1x128x512xf32>
    %359 = vector.shape_cast %358 : vector<1x128x512xf32> to vector<128x512xf32>
    %cst_137 = arith.constant dense<0.000000e+00> : vector<8x512xf32>
    %360 = tpu.matmul %353, %359, %cst_137 {dimension_numbers = #tpu.dot_dimension_numbers<[1], [0], [0], [1], [0, 0, 1, 1], [], []>} : vector<8x128xf32>, vector<128x512xf32>, vector<8x512xf32> -> vector<8x512xf32>
    %361 = arith.addf %357, %360 : vector<8x512xf32>
    %362 = vector.extract_strided_slice %361 {offsets = [0, 0], sizes = [8, 128], strides = [1, 1]} : vector<8x512xf32> to vector<8x128xf32>
    %363 = math.tanh %362 : vector<8x128xf32>
    %364 = vector.extract_strided_slice %361 {offsets = [0, 128], sizes = [8, 128], strides = [1, 1]} : vector<8x512xf32> to vector<8x128xf32>
    %365 = vector.extract_strided_slice %361 {offsets = [0, 256], sizes = [8, 128], strides = [1, 1]} : vector<8x512xf32> to vector<8x128xf32>
    %366 = vector.extract_strided_slice %361 {offsets = [0, 384], sizes = [8, 128], strides = [1, 1]} : vector<8x512xf32> to vector<8x128xf32>
    %367 = arith.negf %366 : vector<8x128xf32>
    %368 = math.exp %367 : vector<8x128xf32>
    %cst_138 = arith.constant 1.000000e+00 : f32
    %369 = vector.broadcast %cst_138 : f32 to vector<8x128xf32>
    %370 = arith.addf %369, %368 : vector<8x128xf32>
    %371 = arith.divf %369, %370 : vector<8x128xf32>
    %372 = arith.addf %365, %341 : vector<8x128xf32>
    %373 = arith.maximumf %372, %364 : vector<8x128xf32>
    %374 = arith.subf %364, %373 : vector<8x128xf32>
    %375 = math.exp %374 : vector<8x128xf32>
    %376 = arith.addf %365, %341 : vector<8x128xf32>
    %377 = arith.subf %376, %373 : vector<8x128xf32>
    %378 = math.exp %377 : vector<8x128xf32>
    %379 = arith.mulf %378, %349 : vector<8x128xf32>
    %380 = arith.mulf %375, %363 : vector<8x128xf32>
    %381 = arith.addf %379, %380 : vector<8x128xf32>
    %382 = arith.mulf %378, %351 : vector<8x128xf32>
    %383 = arith.addf %382, %375 : vector<8x128xf32>
    %384 = arith.mulf %371, %381 : vector<8x128xf32>
    %385 = arith.divf %384, %383 : vector<8x128xf32>
    %c2_i32_139 = arith.constant 2 : i32
    %c8_i32_140 = arith.constant 8 : i32
    %386 = arith.muli %c2_i32_139, %c8_i32_140 : i32
    %387 = tpu.assume_multiple %386, 8 : i32
    %388 = arith.index_cast %387 : i32 to index
    %c0_141 = arith.constant 0 : index
    %389 = vector.load %arg19[%388, %c0_141] : memref<64x512xf32, #tpu.memory_space<vmem>>, vector<8x512xf32>
    %c1_142 = arith.constant 1 : index
    %c0_143 = arith.constant 0 : index
    %c0_144 = arith.constant 0 : index
    %390 = vector.load %arg11[%c1_142, %c0_143, %c0_144] : memref<2x128x512xf32, #tpu.memory_space<vmem>>, vector<1x128x512xf32>
    %391 = vector.shape_cast %390 : vector<1x128x512xf32> to vector<128x512xf32>
    %cst_145 = arith.constant dense<0.000000e+00> : vector<8x512xf32>
    %392 = tpu.matmul %385, %391, %cst_145 {dimension_numbers = #tpu.dot_dimension_numbers<[1], [0], [0], [1], [0, 0, 1, 1], [], []>} : vector<8x128xf32>, vector<128x512xf32>, vector<8x512xf32> -> vector<8x512xf32>
    %393 = arith.addf %389, %392 : vector<8x512xf32>
    %394 = vector.extract_strided_slice %393 {offsets = [0, 0], sizes = [8, 128], strides = [1, 1]} : vector<8x512xf32> to vector<8x128xf32>
    %395 = math.tanh %394 : vector<8x128xf32>
    %396 = vector.extract_strided_slice %393 {offsets = [0, 128], sizes = [8, 128], strides = [1, 1]} : vector<8x512xf32> to vector<8x128xf32>
    %397 = vector.extract_strided_slice %393 {offsets = [0, 256], sizes = [8, 128], strides = [1, 1]} : vector<8x512xf32> to vector<8x128xf32>
    %398 = vector.extract_strided_slice %393 {offsets = [0, 384], sizes = [8, 128], strides = [1, 1]} : vector<8x512xf32> to vector<8x128xf32>
    %399 = arith.negf %398 : vector<8x128xf32>
    %400 = math.exp %399 : vector<8x128xf32>
    %cst_146 = arith.constant 1.000000e+00 : f32
    %401 = vector.broadcast %cst_146 : f32 to vector<8x128xf32>
    %402 = arith.addf %401, %400 : vector<8x128xf32>
    %403 = arith.divf %401, %402 : vector<8x128xf32>
    %404 = arith.addf %397, %373 : vector<8x128xf32>
    %405 = arith.maximumf %404, %396 : vector<8x128xf32>
    %406 = arith.subf %396, %405 : vector<8x128xf32>
    %407 = math.exp %406 : vector<8x128xf32>
    %408 = arith.addf %397, %373 : vector<8x128xf32>
    %409 = arith.subf %408, %405 : vector<8x128xf32>
    %410 = math.exp %409 : vector<8x128xf32>
    %411 = arith.mulf %410, %381 : vector<8x128xf32>
    %412 = arith.mulf %407, %395 : vector<8x128xf32>
    %413 = arith.addf %411, %412 : vector<8x128xf32>
    %414 = arith.mulf %410, %383 : vector<8x128xf32>
    %415 = arith.addf %414, %407 : vector<8x128xf32>
    %416 = arith.mulf %403, %413 : vector<8x128xf32>
    %417 = arith.divf %416, %415 : vector<8x128xf32>
    %c3_i32_147 = arith.constant 3 : i32
    %c8_i32_148 = arith.constant 8 : i32
    %418 = arith.muli %c3_i32_147, %c8_i32_148 : i32
    %419 = tpu.assume_multiple %418, 8 : i32
    %420 = arith.index_cast %419 : i32 to index
    %c0_149 = arith.constant 0 : index
    %421 = vector.load %arg19[%420, %c0_149] : memref<64x512xf32, #tpu.memory_space<vmem>>, vector<8x512xf32>
    %c1_150 = arith.constant 1 : index
    %c0_151 = arith.constant 0 : index
    %c0_152 = arith.constant 0 : index
    %422 = vector.load %arg11[%c1_150, %c0_151, %c0_152] : memref<2x128x512xf32, #tpu.memory_space<vmem>>, vector<1x128x512xf32>
    %423 = vector.shape_cast %422 : vector<1x128x512xf32> to vector<128x512xf32>
    %cst_153 = arith.constant dense<0.000000e+00> : vector<8x512xf32>
    %424 = tpu.matmul %417, %423, %cst_153 {dimension_numbers = #tpu.dot_dimension_numbers<[1], [0], [0], [1], [0, 0, 1, 1], [], []>} : vector<8x128xf32>, vector<128x512xf32>, vector<8x512xf32> -> vector<8x512xf32>
    %425 = arith.addf %421, %424 : vector<8x512xf32>
    %426 = vector.extract_strided_slice %425 {offsets = [0, 0], sizes = [8, 128], strides = [1, 1]} : vector<8x512xf32> to vector<8x128xf32>
    %427 = math.tanh %426 : vector<8x128xf32>
    %428 = vector.extract_strided_slice %425 {offsets = [0, 128], sizes = [8, 128], strides = [1, 1]} : vector<8x512xf32> to vector<8x128xf32>
    %429 = vector.extract_strided_slice %425 {offsets = [0, 256], sizes = [8, 128], strides = [1, 1]} : vector<8x512xf32> to vector<8x128xf32>
    %430 = vector.extract_strided_slice %425 {offsets = [0, 384], sizes = [8, 128], strides = [1, 1]} : vector<8x512xf32> to vector<8x128xf32>
    %431 = arith.negf %430 : vector<8x128xf32>
    %432 = math.exp %431 : vector<8x128xf32>
    %cst_154 = arith.constant 1.000000e+00 : f32
    %433 = vector.broadcast %cst_154 : f32 to vector<8x128xf32>
    %434 = arith.addf %433, %432 : vector<8x128xf32>
    %435 = arith.divf %433, %434 : vector<8x128xf32>
    %436 = arith.addf %429, %405 : vector<8x128xf32>
    %437 = arith.maximumf %436, %428 : vector<8x128xf32>
    %438 = arith.subf %428, %437 : vector<8x128xf32>
    %439 = math.exp %438 : vector<8x128xf32>
    %440 = arith.addf %429, %405 : vector<8x128xf32>
    %441 = arith.subf %440, %437 : vector<8x128xf32>
    %442 = math.exp %441 : vector<8x128xf32>
    %443 = arith.mulf %442, %413 : vector<8x128xf32>
    %444 = arith.mulf %439, %427 : vector<8x128xf32>
    %445 = arith.addf %443, %444 : vector<8x128xf32>
    %446 = arith.mulf %442, %415 : vector<8x128xf32>
    %447 = arith.addf %446, %439 : vector<8x128xf32>
    %448 = arith.mulf %435, %445 : vector<8x128xf32>
    %449 = arith.divf %448, %447 : vector<8x128xf32>
    %c4_i32_155 = arith.constant 4 : i32
    %c8_i32_156 = arith.constant 8 : i32
    %450 = arith.muli %c4_i32_155, %c8_i32_156 : i32
    %451 = tpu.assume_multiple %450, 8 : i32
    %452 = arith.index_cast %451 : i32 to index
    %c0_157 = arith.constant 0 : index
    %453 = vector.load %arg19[%452, %c0_157] : memref<64x512xf32, #tpu.memory_space<vmem>>, vector<8x512xf32>
    %c1_158 = arith.constant 1 : index
    %c0_159 = arith.constant 0 : index
    %c0_160 = arith.constant 0 : index
    %454 = vector.load %arg11[%c1_158, %c0_159, %c0_160] : memref<2x128x512xf32, #tpu.memory_space<vmem>>, vector<1x128x512xf32>
    %455 = vector.shape_cast %454 : vector<1x128x512xf32> to vector<128x512xf32>
    %cst_161 = arith.constant dense<0.000000e+00> : vector<8x512xf32>
    %456 = tpu.matmul %449, %455, %cst_161 {dimension_numbers = #tpu.dot_dimension_numbers<[1], [0], [0], [1], [0, 0, 1, 1], [], []>} : vector<8x128xf32>, vector<128x512xf32>, vector<8x512xf32> -> vector<8x512xf32>
    %457 = arith.addf %453, %456 : vector<8x512xf32>
    %458 = vector.extract_strided_slice %457 {offsets = [0, 0], sizes = [8, 128], strides = [1, 1]} : vector<8x512xf32> to vector<8x128xf32>
    %459 = math.tanh %458 : vector<8x128xf32>
    %460 = vector.extract_strided_slice %457 {offsets = [0, 128], sizes = [8, 128], strides = [1, 1]} : vector<8x512xf32> to vector<8x128xf32>
    %461 = vector.extract_strided_slice %457 {offsets = [0, 256], sizes = [8, 128], strides = [1, 1]} : vector<8x512xf32> to vector<8x128xf32>
    %462 = vector.extract_strided_slice %457 {offsets = [0, 384], sizes = [8, 128], strides = [1, 1]} : vector<8x512xf32> to vector<8x128xf32>
    %463 = arith.negf %462 : vector<8x128xf32>
    %464 = math.exp %463 : vector<8x128xf32>
    %cst_162 = arith.constant 1.000000e+00 : f32
    %465 = vector.broadcast %cst_162 : f32 to vector<8x128xf32>
    %466 = arith.addf %465, %464 : vector<8x128xf32>
    %467 = arith.divf %465, %466 : vector<8x128xf32>
    %468 = arith.addf %461, %437 : vector<8x128xf32>
    %469 = arith.maximumf %468, %460 : vector<8x128xf32>
    %470 = arith.subf %460, %469 : vector<8x128xf32>
    %471 = math.exp %470 : vector<8x128xf32>
    %472 = arith.addf %461, %437 : vector<8x128xf32>
    %473 = arith.subf %472, %469 : vector<8x128xf32>
    %474 = math.exp %473 : vector<8x128xf32>
    %475 = arith.mulf %474, %445 : vector<8x128xf32>
    %476 = arith.mulf %471, %459 : vector<8x128xf32>
    %477 = arith.addf %475, %476 : vector<8x128xf32>
    %478 = arith.mulf %474, %447 : vector<8x128xf32>
    %479 = arith.addf %478, %471 : vector<8x128xf32>
    %480 = arith.mulf %467, %477 : vector<8x128xf32>
    %481 = arith.divf %480, %479 : vector<8x128xf32>
    %c5_i32_163 = arith.constant 5 : i32
    %c8_i32_164 = arith.constant 8 : i32
    %482 = arith.muli %c5_i32_163, %c8_i32_164 : i32
    %483 = tpu.assume_multiple %482, 8 : i32
    %484 = arith.index_cast %483 : i32 to index
    %c0_165 = arith.constant 0 : index
    %485 = vector.load %arg19[%484, %c0_165] : memref<64x512xf32, #tpu.memory_space<vmem>>, vector<8x512xf32>
    %c1_166 = arith.constant 1 : index
    %c0_167 = arith.constant 0 : index
    %c0_168 = arith.constant 0 : index
    %486 = vector.load %arg11[%c1_166, %c0_167, %c0_168] : memref<2x128x512xf32, #tpu.memory_space<vmem>>, vector<1x128x512xf32>
    %487 = vector.shape_cast %486 : vector<1x128x512xf32> to vector<128x512xf32>
    %cst_169 = arith.constant dense<0.000000e+00> : vector<8x512xf32>
    %488 = tpu.matmul %481, %487, %cst_169 {dimension_numbers = #tpu.dot_dimension_numbers<[1], [0], [0], [1], [0, 0, 1, 1], [], []>} : vector<8x128xf32>, vector<128x512xf32>, vector<8x512xf32> -> vector<8x512xf32>
    %489 = arith.addf %485, %488 : vector<8x512xf32>
    %490 = vector.extract_strided_slice %489 {offsets = [0, 0], sizes = [8, 128], strides = [1, 1]} : vector<8x512xf32> to vector<8x128xf32>
    %491 = math.tanh %490 : vector<8x128xf32>
    %492 = vector.extract_strided_slice %489 {offsets = [0, 128], sizes = [8, 128], strides = [1, 1]} : vector<8x512xf32> to vector<8x128xf32>
    %493 = vector.extract_strided_slice %489 {offsets = [0, 256], sizes = [8, 128], strides = [1, 1]} : vector<8x512xf32> to vector<8x128xf32>
    %494 = vector.extract_strided_slice %489 {offsets = [0, 384], sizes = [8, 128], strides = [1, 1]} : vector<8x512xf32> to vector<8x128xf32>
    %495 = arith.negf %494 : vector<8x128xf32>
    %496 = math.exp %495 : vector<8x128xf32>
    %cst_170 = arith.constant 1.000000e+00 : f32
    %497 = vector.broadcast %cst_170 : f32 to vector<8x128xf32>
    %498 = arith.addf %497, %496 : vector<8x128xf32>
    %499 = arith.divf %497, %498 : vector<8x128xf32>
    %500 = arith.addf %493, %469 : vector<8x128xf32>
    %501 = arith.maximumf %500, %492 : vector<8x128xf32>
    %502 = arith.subf %492, %501 : vector<8x128xf32>
    %503 = math.exp %502 : vector<8x128xf32>
    %504 = arith.addf %493, %469 : vector<8x128xf32>
    %505 = arith.subf %504, %501 : vector<8x128xf32>
    %506 = math.exp %505 : vector<8x128xf32>
    %507 = arith.mulf %506, %477 : vector<8x128xf32>
    %508 = arith.mulf %503, %491 : vector<8x128xf32>
    %509 = arith.addf %507, %508 : vector<8x128xf32>
    %510 = arith.mulf %506, %479 : vector<8x128xf32>
    %511 = arith.addf %510, %503 : vector<8x128xf32>
    %512 = arith.mulf %499, %509 : vector<8x128xf32>
    %513 = arith.divf %512, %511 : vector<8x128xf32>
    %c6_i32_171 = arith.constant 6 : i32
    %c8_i32_172 = arith.constant 8 : i32
    %514 = arith.muli %c6_i32_171, %c8_i32_172 : i32
    %515 = tpu.assume_multiple %514, 8 : i32
    %516 = arith.index_cast %515 : i32 to index
    %c0_173 = arith.constant 0 : index
    %517 = vector.load %arg19[%516, %c0_173] : memref<64x512xf32, #tpu.memory_space<vmem>>, vector<8x512xf32>
    %c1_174 = arith.constant 1 : index
    %c0_175 = arith.constant 0 : index
    %c0_176 = arith.constant 0 : index
    %518 = vector.load %arg11[%c1_174, %c0_175, %c0_176] : memref<2x128x512xf32, #tpu.memory_space<vmem>>, vector<1x128x512xf32>
    %519 = vector.shape_cast %518 : vector<1x128x512xf32> to vector<128x512xf32>
    %cst_177 = arith.constant dense<0.000000e+00> : vector<8x512xf32>
    %520 = tpu.matmul %513, %519, %cst_177 {dimension_numbers = #tpu.dot_dimension_numbers<[1], [0], [0], [1], [0, 0, 1, 1], [], []>} : vector<8x128xf32>, vector<128x512xf32>, vector<8x512xf32> -> vector<8x512xf32>
    %521 = arith.addf %517, %520 : vector<8x512xf32>
    %522 = vector.extract_strided_slice %521 {offsets = [0, 0], sizes = [8, 128], strides = [1, 1]} : vector<8x512xf32> to vector<8x128xf32>
    %523 = math.tanh %522 : vector<8x128xf32>
    %524 = vector.extract_strided_slice %521 {offsets = [0, 128], sizes = [8, 128], strides = [1, 1]} : vector<8x512xf32> to vector<8x128xf32>
    %525 = vector.extract_strided_slice %521 {offsets = [0, 256], sizes = [8, 128], strides = [1, 1]} : vector<8x512xf32> to vector<8x128xf32>
    %526 = vector.extract_strided_slice %521 {offsets = [0, 384], sizes = [8, 128], strides = [1, 1]} : vector<8x512xf32> to vector<8x128xf32>
    %527 = arith.negf %526 : vector<8x128xf32>
    %528 = math.exp %527 : vector<8x128xf32>
    %cst_178 = arith.constant 1.000000e+00 : f32
    %529 = vector.broadcast %cst_178 : f32 to vector<8x128xf32>
    %530 = arith.addf %529, %528 : vector<8x128xf32>
    %531 = arith.divf %529, %530 : vector<8x128xf32>
    %532 = arith.addf %525, %501 : vector<8x128xf32>
    %533 = arith.maximumf %532, %524 : vector<8x128xf32>
    %534 = arith.subf %524, %533 : vector<8x128xf32>
    %535 = math.exp %534 : vector<8x128xf32>
    %536 = arith.addf %525, %501 : vector<8x128xf32>
    %537 = arith.subf %536, %533 : vector<8x128xf32>
    %538 = math.exp %537 : vector<8x128xf32>
    %539 = arith.mulf %538, %509 : vector<8x128xf32>
    %540 = arith.mulf %535, %523 : vector<8x128xf32>
    %541 = arith.addf %539, %540 : vector<8x128xf32>
    %542 = arith.mulf %538, %511 : vector<8x128xf32>
    %543 = arith.addf %542, %535 : vector<8x128xf32>
    %544 = arith.mulf %531, %541 : vector<8x128xf32>
    %545 = arith.divf %544, %543 : vector<8x128xf32>
    %c7_i32_179 = arith.constant 7 : i32
    %c8_i32_180 = arith.constant 8 : i32
    %546 = arith.muli %c7_i32_179, %c8_i32_180 : i32
    %547 = tpu.assume_multiple %546, 8 : i32
    %548 = arith.index_cast %547 : i32 to index
    %c0_181 = arith.constant 0 : index
    %549 = vector.load %arg19[%548, %c0_181] : memref<64x512xf32, #tpu.memory_space<vmem>>, vector<8x512xf32>
    %c1_182 = arith.constant 1 : index
    %c0_183 = arith.constant 0 : index
    %c0_184 = arith.constant 0 : index
    %550 = vector.load %arg11[%c1_182, %c0_183, %c0_184] : memref<2x128x512xf32, #tpu.memory_space<vmem>>, vector<1x128x512xf32>
    %551 = vector.shape_cast %550 : vector<1x128x512xf32> to vector<128x512xf32>
    %cst_185 = arith.constant dense<0.000000e+00> : vector<8x512xf32>
    %552 = tpu.matmul %545, %551, %cst_185 {dimension_numbers = #tpu.dot_dimension_numbers<[1], [0], [0], [1], [0, 0, 1, 1], [], []>} : vector<8x128xf32>, vector<128x512xf32>, vector<8x512xf32> -> vector<8x512xf32>
    %553 = arith.addf %549, %552 : vector<8x512xf32>
    %554 = vector.extract_strided_slice %553 {offsets = [0, 0], sizes = [8, 128], strides = [1, 1]} : vector<8x512xf32> to vector<8x128xf32>
    %555 = math.tanh %554 : vector<8x128xf32>
    %556 = vector.extract_strided_slice %553 {offsets = [0, 128], sizes = [8, 128], strides = [1, 1]} : vector<8x512xf32> to vector<8x128xf32>
    %557 = vector.extract_strided_slice %553 {offsets = [0, 256], sizes = [8, 128], strides = [1, 1]} : vector<8x512xf32> to vector<8x128xf32>
    %558 = vector.extract_strided_slice %553 {offsets = [0, 384], sizes = [8, 128], strides = [1, 1]} : vector<8x512xf32> to vector<8x128xf32>
    %559 = arith.negf %558 : vector<8x128xf32>
    %560 = math.exp %559 : vector<8x128xf32>
    %cst_186 = arith.constant 1.000000e+00 : f32
    %561 = vector.broadcast %cst_186 : f32 to vector<8x128xf32>
    %562 = arith.addf %561, %560 : vector<8x128xf32>
    %563 = arith.divf %561, %562 : vector<8x128xf32>
    %564 = arith.addf %557, %533 : vector<8x128xf32>
    %565 = arith.maximumf %564, %556 : vector<8x128xf32>
    %566 = arith.subf %556, %565 : vector<8x128xf32>
    %567 = math.exp %566 : vector<8x128xf32>
    %568 = arith.addf %557, %533 : vector<8x128xf32>
    %569 = arith.subf %568, %565 : vector<8x128xf32>
    %570 = math.exp %569 : vector<8x128xf32>
    %571 = arith.mulf %570, %541 : vector<8x128xf32>
    %572 = arith.mulf %567, %555 : vector<8x128xf32>
    %573 = arith.addf %571, %572 : vector<8x128xf32>
    %574 = arith.mulf %570, %543 : vector<8x128xf32>
    %575 = arith.addf %574, %567 : vector<8x128xf32>
    %576 = arith.mulf %563, %573 : vector<8x128xf32>
    %577 = arith.divf %576, %575 : vector<8x128xf32>
    %c8_i32_187 = arith.constant 8 : i32
    %c1_188 = arith.constant 1 : index
    %c0_189 = arith.constant 0 : index
    %c0_190 = arith.constant 0 : index
    %578 = vector.load %arg14[%c1_188, %c0_189, %c0_190] : memref<2x8x128xf32, #tpu.memory_space<vmem>>, vector<1x8x128xf32>
    %579 = vector.shape_cast %578 : vector<1x8x128xf32> to vector<8x128xf32>
    %580 = vector.shape_cast %577 : vector<8x128xf32> to vector<1x8x128xf32>
    tpu.vector_store %arg14[%c1_188, %c0_189, %c0_190], %580 {strides = array<i32>} : memref<2x8x128xf32, #tpu.memory_space<vmem>>, vector<1x8x128xf32>,
    %c1_191 = arith.constant 1 : index
    %c0_192 = arith.constant 0 : index
    %c0_193 = arith.constant 0 : index
    %581 = vector.load %arg15[%c1_191, %c0_192, %c0_193] : memref<2x8x128xf32, #tpu.memory_space<vmem>>, vector<1x8x128xf32>
    %582 = vector.shape_cast %581 : vector<1x8x128xf32> to vector<8x128xf32>
    %583 = vector.shape_cast %573 : vector<8x128xf32> to vector<1x8x128xf32>
    tpu.vector_store %arg15[%c1_191, %c0_192, %c0_193], %583 {strides = array<i32>} : memref<2x8x128xf32, #tpu.memory_space<vmem>>, vector<1x8x128xf32>,
    %c1_194 = arith.constant 1 : index
    %c0_195 = arith.constant 0 : index
    %c0_196 = arith.constant 0 : index
    %584 = vector.load %arg16[%c1_194, %c0_195, %c0_196] : memref<2x8x128xf32, #tpu.memory_space<vmem>>, vector<1x8x128xf32>
    %585 = vector.shape_cast %584 : vector<1x8x128xf32> to vector<8x128xf32>
    %586 = vector.shape_cast %575 : vector<8x128xf32> to vector<1x8x128xf32>
    tpu.vector_store %arg16[%c1_194, %c0_195, %c0_196], %586 {strides = array<i32>} : memref<2x8x128xf32, #tpu.memory_space<vmem>>, vector<1x8x128xf32>,
    %c1_197 = arith.constant 1 : index
    %c0_198 = arith.constant 0 : index
    %c0_199 = arith.constant 0 : index
    %587 = vector.load %arg17[%c1_197, %c0_198, %c0_199] : memref<2x8x128xf32, #tpu.memory_space<vmem>>, vector<1x8x128xf32>
    %588 = vector.shape_cast %587 : vector<1x8x128xf32> to vector<8x128xf32>
    %589 = vector.shape_cast %565 : vector<8x128xf32> to vector<1x8x128xf32>
    tpu.vector_store %arg17[%c1_197, %c0_198, %c0_199], %589 {strides = array<i32>} : memref<2x8x128xf32, #tpu.memory_space<vmem>>, vector<1x8x128xf32>,
    %c0_i32_200 = arith.constant 0 : i32
    %590 = arith.cmpi eq, %arg1, %c0_i32_200 : i32
    %591 = arith.extui %590 : i1 to i32
    %c0_i32_201 = arith.constant 0 : i32
    %592 = arith.cmpi ne, %591, %c0_i32_201 : i32
    scf.if %592 {
      %c1_202 = arith.constant 1 : index
      %c0_203 = arith.constant 0 : index
      %c0_204 = arith.constant 0 : index
      %593 = vector.load %arg14[%c1_202, %c0_203, %c0_204] : memref<2x8x128xf32, #tpu.memory_space<vmem>>, vector<1x8x128xf32>
      %594 = vector.shape_cast %593 : vector<1x8x128xf32> to vector<8x128xf32>
      %c0_205 = arith.constant 0 : index
      %c0_206 = arith.constant 0 : index
      %595 = vector.load %arg12[%c0_205, %c0_206] : memref<128x128xf32, #tpu.memory_space<vmem>>, vector<128x128xf32>
      %cst_207 = arith.constant dense<0.000000e+00> : vector<8x128xf32>
      %596 = tpu.matmul %594, %595, %cst_207 {dimension_numbers = #tpu.dot_dimension_numbers<[1], [0], [0], [1], [0, 0, 1, 1], [], []>} : vector<8x128xf32>, vector<128x128xf32>, vector<8x128xf32> -> vector<8x128xf32>
      %c0_208 = arith.constant 0 : index
      %c0_209 = arith.constant 0 : index
      %597 = vector.load %arg13[%c0_208, %c0_209] : memref<1x128xf32, #tpu.memory_space<vmem>>, vector<1x128xf32>
      %598 = vector.broadcast %597 : vector<1x128xf32> to vector<8x128xf32>
      %599 = arith.addf %596, %598 : vector<8x128xf32>
      %c0_210 = arith.constant 0 : index
      %c0_211 = arith.constant 0 : index
      %600 = vector.load %arg8[%c0_210, %c0_211] : memref<8x128xf32, #tpu.memory_space<vmem>>, vector<8x128xf32>
      tpu.vector_store %arg8[%c0_210, %c0_211], %599 {strides = array<i32>} : memref<8x128xf32, #tpu.memory_space<vmem>>, vector<8x128xf32>,
    } else {
    }
    return
  }
  func.func @transform_0(%arg0: i32, %arg1: i32) -> (i32, i32, i32, i32) {
    %c0_i32 = arith.constant 0 : i32
    %c0_i32_0 = arith.constant 0 : i32
    %c0_i32_1 = arith.constant 0 : i32
    return %arg1, %arg0, %c0_i32, %c0_i32_0 : i32, i32, i32, i32
  }
  func.func @transform_6(%arg0: i32, %arg1: i32) -> (i32, i32) {
    %c0_i32 = arith.constant 0 : i32
    %c0_i32_0 = arith.constant 0 : i32
    return %arg0, %c0_i32 : i32, i32
  }
}

</mosaic_0001>

<llo_original>
// kernel: tpu_custom_call.1
$region0: #{tpu_custom_call.1}
  #allocation0 [shape = 'u32[]', space=smem, size = 0x4, offset = 0x4, fixed_abs, tag = 'smem constant byte address 0x4 - core index']
  #allocation1 [shape = 'u32[144,128]{1,0:T(1,128)}', space=vmem, size = 0x12000, scoped, tag = 'internal scratch']
  #allocation2 [shape = 'f32[2,128,512]{2,1,0:T(8,128)}', space=vmem, size = 0x80000, scoped, tag = 'scratch operand']
  #allocation3 [shape = 'f32[2,1,512]{2,1,0:T(1,128)}', space=vmem, size = 0x1000, scoped, tag = 'scratch operand']
  #allocation4 [shape = 'f32[2,128,512]{2,1,0:T(8,128)}', space=vmem, size = 0x80000, scoped, tag = 'scratch operand']
  #allocation5 [shape = 'f32[128,128]{1,0:T(8,128)}', space=vmem, size = 0x10000, scoped, tag = 'scratch operand']
  #allocation6 [shape = 'f32[1,128]{1,0:T(1,128)}', space=vmem, size = 0x200, scoped, tag = 'scratch operand']
  #allocation7 [shape = 'f32[2,8,128]{2,1,0:T(8,128)}', space=vmem, size = 0x2000, scoped, tag = 'scratch operand']
  #allocation8 [shape = 'f32[2,8,128]{2,1,0:T(8,128)}', space=vmem, size = 0x2000, scoped, tag = 'scratch operand']
  #allocation9 [shape = 'f32[2,8,128]{2,1,0:T(8,128)}', space=vmem, size = 0x2000, scoped, tag = 'scratch operand']
  #allocation10 [shape = 'f32[2,8,128]{2,1,0:T(8,128)}', space=vmem, size = 0x2000, scoped, tag = 'scratch operand']
  #allocation11 [shape = 'f32[64,128]{1,0:T(8,128)}', space=vmem, size = 0x8000, scoped, tag = 'scratch operand']
  #allocation12 [shape = 'f32[64,512]{1,0:T(8,128)}', space=vmem, size = 0x20000, scoped, tag = 'scratch operand']
  #allocation13 [shape = 's32[5]{0}', space=sflag, size = 0x14, scoped, tag = 'scratch operand']
  #allocation18 [shape = 's32[]', space=sflag, size = 0x4, offset = 0, fixed_abs, tag = 'sflag constant byte address 0x0 - dummy sync flag']
  #allocation19 [shape = 's32[]', space=sflag, size = 0x4, offset = 0, fixed_abs, tag = 'sflag constant byte address 0x0 - dummy sync flag']
  #allocation20 [shape = 'u32[]', space=smem, size = 0x4, offset = 0x44, fixed_abs, tag = 'smem constant byte address 0x44 - assertion arg 0']
  #allocation21 [shape = 'u32[]', space=smem, size = 0x4, offset = 0x48, fixed_abs, tag = 'smem constant byte address 0x48 - assertion arg 1']
  #allocation22 [shape = 's32[]', space=sflag, size = 0x4, offset = 0, fixed_abs, tag = 'sflag constant byte address 0x0 - dummy sync flag']
  #allocation23 [shape = 's32[]', space=sflag, size = 0x4, offset = 0, fixed_abs, tag = 'sflag constant byte address 0x0 - dummy sync flag']
  #allocation24 [shape = 's32[]', space=sflag, size = 0x4, offset = 0, fixed_abs, tag = 'sflag constant byte address 0x0 - dummy sync flag']
  #allocation25 [shape = 's32[]', space=sflag, size = 0x4, offset = 0, fixed_abs, tag = 'sflag constant byte address 0x0 - dummy sync flag']
  #allocation26 [shape = 's32[]', space=sflag, size = 0x4, offset = 0, fixed_abs, tag = 'sflag constant byte address 0x0 - dummy sync flag']
  #allocation27 [shape = 's32[]', space=sflag, size = 0x4, offset = 0, fixed_abs, tag = 'sflag constant byte address 0x0 - dummy sync flag']
  #allocation28 [shape = 's32[]', space=sflag, size = 0x4, offset = 0, fixed_abs, tag = 'sflag constant byte address 0x0 - dummy sync flag']
  %s0 = inlined_call_operand.hbm [shape: f32[1,1,64,128], index: 0, kind: input, shape index: {}]
  %s1 = inlined_call_operand.hbm [shape: f32[2,128,512], index: 1, kind: input, shape index: {}]
  %s2 = inlined_call_operand.hbm [shape: f32[2,1,512], index: 2, kind: input, shape index: {}]
  %s3 = inlined_call_operand.hbm [shape: f32[2,128,512], index: 3, kind: input, shape index: {}]
  %s4 = inlined_call_operand.hbm [shape: f32[128,128], index: 4, kind: input, shape index: {}]
  %s5 = inlined_call_operand.vmem [shape: f32[1,128], index: 5, kind: input, shape index: {}]
  %s6 = inlined_call_operand.hbm [shape: f32[8,128], index: 6, kind: output, shape index: {}]
  %s7 = sld [smem:[#allocation0]]
  $region72: #{tpu_custom_call.1} parent=0
    _
  %s9 = ssub.s32 1, %s7
  %s10 = scalar_select 0, %s9, %s7
  $region1: #{tpu_custom_call.1} parent=0
    #allocation14 [shape = 'u8[32768]{0}', space=vmem, size = 0x8000, scoped, tag = 'input window, operand 0, single buffered']
    #allocation15 [shape = 's32[1]{0}', space=sflag, size = 0x4, scoped, tag = 'scoped memory for tpu_custom_call.1']
    #allocation16 [shape = 's32[1]{0}', space=sflag, size = 0x4, scoped, tag = 'scoped memory for tpu_custom_call.1']
    #allocation17 [shape = 'u8[4096]{0}', space=vmem, size = 0x1000, scoped, tag = 'output window, operand 0, single buffered']
    %11 = vsyncpa [#allocation15], 0
    %12 = vsyncpa [#allocation16], 0
    // Predicated region
    $region2: #{tpu_custom_call.1} parent=1 // pred_check
      _
    $region3: #{tpu_custom_call.1} parent=1 // pred_check_branch
      %14 = sbr.rel (0) target = $region5
    $region4: #{tpu_custom_call.1} parent=1 // pred_region
      %s16 = ssub.s32 1024, 1024
      %17 = vsyncadd [#allocation15], %s16
      %s18 = sshll.u32 [#allocation14], 4
      %s19 = int_to_ptr.vmem [resolvable:$true] %s18
      %24 = dma.hbm_to_vmem [thread:$0]  %s0, 1024, %s19, [#allocation15], 128, 128, 8
    $region5: #{tpu_custom_call.1} parent=1 // pred_fallthru
      _
    // Predicated region
    $region6: #{tpu_custom_call.1} parent=1 // pred_check
      _
    $region7: #{tpu_custom_call.1} parent=1 // pred_check_branch
      %26 = sbr.rel (0) target = $region9
    $region8: #{tpu_custom_call.1} parent=1 // pred_region
      %27 = dma.done [#allocation15], 1024
    $region9: #{tpu_custom_call.1} parent=1 // pred_fallthru
      _
    %p28 = scmp.eq.s32.totalorder 0, 0
    // Predicated region
    $region10: #{tpu_custom_call.1} parent=1 // pred_check
      %p29 = pneg %p28
    $region11: #{tpu_custom_call.1} parent=1 // pred_check_branch
      %31 = sbr.rel (%p29) target = $region13
    $region12: #{tpu_custom_call.1} parent=1 // pred_region
      // Predicated region
      $region14: #{tpu_custom_call.1} parent=12 // pred_check
        _
      $region15: #{tpu_custom_call.1} parent=12 // pred_check_branch
        %33 = sbr.rel target = $region17
      $region16: #{tpu_custom_call.1} parent=12 // pred_region
        %34 = sst [smem:[#allocation20]] [#allocation19]
        %35 = sst [smem:[#allocation21]] [#allocation18]
      $region17: #{tpu_custom_call.1} parent=12 // pred_fallthru
        _
      %37 = shalt.err (0)
      %s39 = sshll.u32 [#allocation2], 4
      %s40 = int_to_ptr.vmem [resolvable:$true] %s39
      %42 = dma.hbm_to_vmem [thread:$0]  %s1, 16384, %s40, [#allocation13]
      %s43 = scalar_lea.sflag [#allocation13], 1
      // Predicated region
      $region18: #{tpu_custom_call.1} parent=12 // pred_check
        _
      $region19: #{tpu_custom_call.1} parent=12 // pred_check_branch
        %45 = sbr.rel target = $region21
      $region20: #{tpu_custom_call.1} parent=12 // pred_region
        %46 = sst [smem:[#allocation20]] [#allocation23]
        %47 = sst [smem:[#allocation21]] [#allocation22]
      $region21: #{tpu_custom_call.1} parent=12 // pred_fallthru
        _
      %49 = shalt.err (0)
      %s51 = sshll.u32 [#allocation3], 4
      %s52 = int_to_ptr.vmem [resolvable:$true] %s51
      %54 = dma.hbm_to_vmem [thread:$0]  %s2, 128, %s52, %s43
      %s55 = scalar_lea.sflag [#allocation13], 2
      // Predicated region
      $region22: #{tpu_custom_call.1} parent=12 // pred_check
        _
      $region23: #{tpu_custom_call.1} parent=12 // pred_check_branch
        %57 = sbr.rel target = $region25
      $region24: #{tpu_custom_call.1} parent=12 // pred_region
        %58 = sst [smem:[#allocation20]] [#allocation25]
        %59 = sst [smem:[#allocation21]] [#allocation24]
      $region25: #{tpu_custom_call.1} parent=12 // pred_fallthru
        _
      %61 = shalt.err (0)
      %s63 = sshll.u32 [#allocation4], 4
      %s64 = int_to_ptr.vmem [resolvable:$true] %s63
      %66 = dma.hbm_to_vmem [thread:$0]  %s3, 16384, %s64, %s55
      %s67 = scalar_lea.sflag [#allocation13], 3
      // Predicated region
      $region26: #{tpu_custom_call.1} parent=12 // pred_check
        _
      $region27: #{tpu_custom_call.1} parent=12 // pred_check_branch
        %69 = sbr.rel target = $region29
      $region28: #{tpu_custom_call.1} parent=12 // pred_region
        %70 = sst [smem:[#allocation20]] [#allocation27]
        %71 = sst [smem:[#allocation21]] [#allocation26]
      $region29: #{tpu_custom_call.1} parent=12 // pred_fallthru
        _
      %73 = shalt.err (0)
      %s75 = sshll.u32 [#allocation5], 4
      %s76 = int_to_ptr.vmem [resolvable:$true] %s75
      %78 = dma.hbm_to_vmem [thread:$0]  %s4, 2048, %s76, %s67
      %s79 = scalar_lea.sflag [#allocation13], 4
      %p81 = scmp.lt.u32.totalorder 1, 8
      %p82 = pneg %p81
      // Predicated region
      $region30: #{tpu_custom_call.1} parent=12 // pred_check
        _
      $region31: #{tpu_custom_call.1} parent=12 // pred_check_branch
        %84 = sbr.rel (%p81) target = $region33
      $region32: #{tpu_custom_call.1} parent=12 // pred_region
        %s100 = sand.u32 1, 7
        %p101 = scmp.eq.s32.totalorder %s100, 0
        %p102 = pneg %p101
        // Predicated region
        $region45: #{tpu_custom_call.1} parent=32 // pred_check
          _
        $region46: #{tpu_custom_call.1} parent=32 // pred_check_branch
          %104 = sbr.rel (%p101) target = $region48
        $region47: #{tpu_custom_call.1} parent=32 // pred_region
          %s105 = sand.u32 1, 7
          %s106 = ssub.s32 1, %s105
          %s107 = scalar_lea.vmem %s5, %s106
          %s108 = ssub.s32 1, %s105
          %s109 = scalar_lea.vmem [#allocation6], %s108
          %s110 = sshll.u32 1, %s105
          %s111 = ssub.s32 %s110, 1
          loop: start=0, step=1, limit=1
          $region49: #{tpu_custom_call.1} parent=47 // loop_pre_header
            _
          $region50: #{tpu_custom_call.1} parent=47 // loop_header
            %s113 = sphi 0, %s117
            %p114 = scmp.ge.s32.totalorder %s113, 1
            %s118 = sphi %s107, %s107
            %s119 = sphi %s109, %s109
          $region51: #{tpu_custom_call.1} parent=47 // loop_header_branch
            %116 = sbr.rel (%p114) target = $region55
          $region52: #{tpu_custom_call.1} parent=47 // loop_body
            %v120 = vld [vmem:[%s118] sm:%s111]
            %121 = vst [vmem:[%s119] sm:%s111] %v120
          $region53: #{tpu_custom_call.1} parent=47 // loop_footer
            %s117 = sadd.s32 1, %s113
          $region54: #{tpu_custom_call.1} parent=47 // loop_footer_branch
            %112 = sbr.rel target = $region50
          $region55: #{tpu_custom_call.1} parent=47 // loop_exit
            _
        $region48: #{tpu_custom_call.1} parent=32 // pred_fallthru
          _
      $region33: #{tpu_custom_call.1} parent=12 // pred_fallthru
        _
      // Predicated region
      $region34: #{tpu_custom_call.1} parent=12 // pred_check
        %p85 = pneg %p81
      $region35: #{tpu_custom_call.1} parent=12 // pred_check_branch
        %87 = sbr.rel (%p85) target = $region37
      $region36: #{tpu_custom_call.1} parent=12 // pred_region
        %s88 = sshll.u32 1, 1
        %s89 = ssub.s32 %s88, 1
        loop: start=0, step=1, limit=1
        $region38: #{tpu_custom_call.1} parent=36 // loop_pre_header
          _
        $region39: #{tpu_custom_call.1} parent=36 // loop_header
          %s91 = sphi 0, %s95
          %p92 = scmp.ge.s32.totalorder %s91, 1
          %s96 = sphi %s5, %s5
          %s97 = sphi [#allocation6], [#allocation6]
        $region40: #{tpu_custom_call.1} parent=36 // loop_header_branch
          %94 = sbr.rel (%p92) target = $region44
        $region41: #{tpu_custom_call.1} parent=36 // loop_body
          %v98 = vld [vmem:[%s96] sm:%s89]
          %99 = vst [vmem:[%s97] sm:%s89] %v98
        $region42: #{tpu_custom_call.1} parent=36 // loop_footer
          %s95 = sadd.s32 1, %s91
        $region43: #{tpu_custom_call.1} parent=36 // loop_footer_branch
          %90 = sbr.rel target = $region39
        $region44: #{tpu_custom_call.1} parent=36 // loop_exit
          _
      $region37: #{tpu_custom_call.1} parent=12 // pred_fallthru
        _
      // Predicated region
      $region56: #{tpu_custom_call.1} parent=12 // pred_check
        _
      $region57: #{tpu_custom_call.1} parent=12 // pred_check_branch
        %124 = sbr.rel (0) target = $region59
      $region58: #{tpu_custom_call.1} parent=12 // pred_region
        %125 = vsyncadd %s79, 16
      $region59: #{tpu_custom_call.1} parent=12 // pred_fallthru
        _
      %s126 = smul.u32 8, 2
      %s127 = smul.u32 %s126, 16
      %s128 = smul.u32 %s127, 4
      %s129 = sshll.u32 %s128, 4
      %130 = dma.done [#allocation13], %s129
      %s131 = smul.u32 2, 1
      %s132 = smul.u32 %s131, 4
      %s133 = sshll.u32 %s132, 4
      %134 = dma.done %s43, %s133
      %s135 = sshll.u32 %s128, 4
      %136 = dma.done %s55, %s135
      %s137 = smul.u32 128, 1
      %s138 = sshll.u32 %s137, 4
      %139 = dma.done %s67, %s138
      %s140 = smul.u32 1, 1
      %s141 = sshll.u32 %s140, 4
      %142 = dma.done %s79, %s141
      %143 = vst [vmem:[#allocation7] sm:$0xff] 0.0
      %144 = vst [vmem:[#allocation7 + $0x8] sm:$0xff] 0.0
      %145 = vst [vmem:[#allocation8] sm:$0xff] 0.0
      %146 = vst [vmem:[#allocation8 + $0x8] sm:$0xff] 0.0
      %147 = vst [vmem:[#allocation9] sm:$0xff] 1.0
      %148 = vst [vmem:[#allocation9 + $0x8] sm:$0xff] 1.0
      %149 = vst [vmem:[#allocation10] sm:$0xff] 0.0
      %150 = vst [vmem:[#allocation10 + $0x8] sm:$0xff] 0.0
      %151 = vst [vmem:[#allocation17] sm:$0xff] 0.0
    $region13: #{tpu_custom_call.1} parent=1 // pred_fallthru
      _
    %v152 = vld [vmem:[#allocation14] sm:$0xff]
    %v153 = vld [vmem:[#allocation14 + $0x8] sm:$0xff]
    %v154 = vld [vmem:[#allocation14 + $0x10] sm:$0xff]
    %v155 = vld [vmem:[#allocation14 + $0x18] sm:$0xff]
    %v156 = vld [vmem:[#allocation14 + $0x20] sm:$0xff]
    %v157 = vld [vmem:[#allocation14 + $0x28] sm:$0xff]
    %v158 = vld [vmem:[#allocation14 + $0x30] sm:$0xff]
    %v159 = vld [vmem:[#allocation14 + $0x38] sm:$0xff]
    %v160 = vld [vmem:[#allocation2] sm:$0xff]
    %v161 = vld [vmem:[#allocation2 + $0x8] sm:$0xff]
    %v162 = vld [vmem:[#allocation2 + $0x10] sm:$0xff]
    %v163 = vld [vmem:[#allocation2 + $0x18] sm:$0xff]
    %v164 = vld [vmem:[#allocation2 + $0x20] sm:$0xff]
    %v165 = vld [vmem:[#allocation2 + $0x28] sm:$0xff]
    %v166 = vld [vmem:[#allocation2 + $0x30] sm:$0xff]
    %v167 = vld [vmem:[#allocation2 + $0x38] sm:$0xff]
    %v168 = vld [vmem:[#allocation2 + $0x40] sm:$0xff]
    %v169 = vld [vmem:[#allocation2 + $0x48] sm:$0xff]
    %v170 = vld [vmem:[#allocation2 + $0x50] sm:$0xff]
    %v171 = vld [vmem:[#allocation2 + $0x58] sm:$0xff]
    %v172 = vld [vmem:[#allocation2 + $0x60] sm:$0xff]
    %v173 = vld [vmem:[#allocation2 + $0x68] sm:$0xff]
    %v174 = vld [vmem:[#allocation2 + $0x70] sm:$0xff]
    %v175 = vld [vmem:[#allocation2 + $0x78] sm:$0xff]
    %v176 = vld [vmem:[#allocation2 + $0x80] sm:$0xff]
    %v177 = vld [vmem:[#allocation2 + $0x88] sm:$0xff]
    %v178 = vld [vmem:[#allocation2 + $0x90] sm:$0xff]
    %v179 = vld [vmem:[#allocation2 + $0x98] sm:$0xff]
    %v180 = vld [vmem:[#allocation2 + $0xa0] sm:$0xff]
    %v181 = vld [vmem:[#allocation2 + $0xa8] sm:$0xff]
    %v182 = vld [vmem:[#allocation2 + $0xb0] sm:$0xff]
    %v183 = vld [vmem:[#allocation2 + $0xb8] sm:$0xff]
    %v184 = vld [vmem:[#allocation2 + $0xc0] sm:$0xff]
    %v185 = vld [vmem:[#allocation2 + $0xc8] sm:$0xff]
    %v186 = vld [vmem:[#allocation2 + $0xd0] sm:$0xff]
    %v187 = vld [vmem:[#allocation2 + $0xd8] sm:$0xff]
    %v188 = vld [vmem:[#allocation2 + $0xe0] sm:$0xff]
    %v189 = vld [vmem:[#allocation2 + $0xe8] sm:$0xff]
    %v190 = vld [vmem:[#allocation2 + $0xf0] sm:$0xff]
    %v191 = vld [vmem:[#allocation2 + $0xf8] sm:$0xff]
    %v192 = vld [vmem:[#allocation2 + $0x100] sm:$0xff]
    %v193 = vld [vmem:[#allocation2 + $0x108] sm:$0xff]
    %v194 = vld [vmem:[#allocation2 + $0x110] sm:$0xff]
    %v195 = vld [vmem:[#allocation2 + $0x118] sm:$0xff]
    %v196 = vld [vmem:[#allocation2 + $0x120] sm:$0xff]
    %v197 = vld [vmem:[#allocation2 + $0x128] sm:$0xff]
    %v198 = vld [vmem:[#allocation2 + $0x130] sm:$0xff]
    %v199 = vld [vmem:[#allocation2 + $0x138] sm:$0xff]
    %v200 = vld [vmem:[#allocation2 + $0x140] sm:$0xff]
    %v201 = vld [vmem:[#allocation2 + $0x148] sm:$0xff]
    %v202 = vld [vmem:[#allocation2 + $0x150] sm:$0xff]
    %v203 = vld [vmem:[#allocation2 + $0x158] sm:$0xff]
    %v204 = vld [vmem:[#allocation2 + $0x160] sm:$0xff]
    %v205 = vld [vmem:[#allocation2 + $0x168] sm:$0xff]
    %v206 = vld [vmem:[#allocation2 + $0x170] sm:$0xff]
    %v207 = vld [vmem:[#allocation2 + $0x178] sm:$0xff]
    %v208 = vld [vmem:[#allocation2 + $0x180] sm:$0xff]
    %v209 = vld [vmem:[#allocation2 + $0x188] sm:$0xff]
    %v210 = vld [vmem:[#allocation2 + $0x190] sm:$0xff]
    %v211 = vld [vmem:[#allocation2 + $0x198] sm:$0xff]
    %v212 = vld [vmem:[#allocation2 + $0x1a0] sm:$0xff]
    %v213 = vld [vmem:[#allocation2 + $0x1a8] sm:$0xff]
    %v214 = vld [vmem:[#allocation2 + $0x1b0] sm:$0xff]
    %v215 = vld [vmem:[#allocation2 + $0x1b8] sm:$0xff]
    %v216 = vld [vmem:[#allocation2 + $0x1c0] sm:$0xff]
    %v217 = vld [vmem:[#allocation2 + $0x1c8] sm:$0xff]
    %v218 = vld [vmem:[#allocation2 + $0x1d0] sm:$0xff]
    %v219 = vld [vmem:[#allocation2 + $0x1d8] sm:$0xff]
    %v220 = vld [vmem:[#allocation2 + $0x1e0] sm:$0xff]
    %v221 = vld [vmem:[#allocation2 + $0x1e8] sm:$0xff]
    %v222 = vld [vmem:[#allocation2 + $0x1f0] sm:$0xff]
    %v223 = vld [vmem:[#allocation2 + $0x1f8] sm:$0xff]
    %v224 = vld [vmem:[#allocation3] sm:$0xf]
    %v226 = vlaneseq
    %v227 = vshrl.u32 %v226, 7
    %v228 = vsub.s32 0, %v227
    %v229 = vrot.slane %v224, %v228
    %v230 = vlaneseq
    %v231 = vshrl.u32 %v230, 7
    %v232 = vsub.s32 1, %v231
    %v233 = vrot.slane %v224, %v232
    %v234 = vlaneseq
    %v235 = vshrl.u32 %v234, 7
    %v236 = vsub.s32 2, %v235
    %v237 = vrot.slane %v224, %v236
    %v238 = vlaneseq
    %v239 = vshrl.u32 %v238, 7
    %v240 = vsub.s32 3, %v239
    %v241 = vrot.slane %v224, %v240
    %246 = vmatprep.subr.mxu0 %v221
    %247 = vmatpush1.msra.mxu0 %v220
    %248 = vmatprep.subr.mxu0 %v217
    %249 = vmatpush1.msra.mxu0 %v216
    %250 = vmatprep.subr.mxu0 %v213
    %251 = vmatpush1.msra.mxu0 %v212
    %252 = vmatprep.subr.mxu0 %v209
    %253 = vmatpush1.msra.mxu0 %v208
    %254 = vmatprep.subr.mxu0 %v205
    %255 = vmatpush1.msra.mxu0 %v204
    %256 = vmatprep.subr.mxu0 %v201
    %257 = vmatpush1.msra.mxu0 %v200
    %258 = vmatprep.subr.mxu0 %v197
    %259 = vmatpush1.msra.mxu0 %v196
    %260 = vmatprep.subr.mxu0 %v193
    %261 = vmatpush1.msra.mxu0 %v192
    %262 = vmatprep.subr.mxu0 %v189
    %263 = vmatpush1.msra.mxu0 %v188
    %264 = vmatprep.subr.mxu0 %v185
    %265 = vmatpush1.msra.mxu0 %v184
    %266 = vmatprep.subr.mxu0 %v181
    %267 = vmatpush1.msra.mxu0 %v180
    %268 = vmatprep.subr.mxu0 %v177
    %269 = vmatpush1.msra.mxu0 %v176
    %270 = vmatprep.subr.mxu0 %v173
    %271 = vmatpush1.msra.mxu0 %v172
    %272 = vmatprep.subr.mxu0 %v169
    %273 = vmatpush1.msra.mxu0 %v168
    %274 = vmatprep.subr.mxu0 %v165
    %275 = vmatpush1.msra.mxu0 %v164
    %276 = vmatprep.subr.mxu0 %v161
    %277 = vmatpush1.msra.mxu0 %v160
    %278 = vmatprep.subr.mxu0 0.0
    %279 = vmatpush2.msra.mxu0 0.0
    %280 = vmatprep.subr.mxu0 0.0
    %281 = vmatpush2.msra.mxu0 0.0
    %282 = vmatprep.subr.mxu0 0.0
    %283 = vmatpush2.msra.mxu0 0.0
    %284 = vmatprep.subr.mxu0 0.0
    %285 = vmatpush2.msra.mxu0 0.0
    %286 = vmatprep.subr.mxu0 0.0
    %287 = vmatpush2.msra.mxu0 0.0
    %288 = vmatprep.subr.mxu0 0.0
    %289 = vmatpush2.msra.mxu0 0.0
    %290 = vmatprep.subr.mxu0 0.0
    %291 = vmatpush2.msra.mxu0 0.0
    %292 = vmatprep.subr.mxu0 0.0
    %293 = vmatpush2.msra.mxu0 0.0
    %294 = vmatprep.subr.mxu0 0.0
    %295 = vmatpush2.msra.mxu0 0.0
    %296 = vmatprep.subr.mxu0 0.0
    %297 = vmatpush2.msra.mxu0 0.0
    %298 = vmatprep.subr.mxu0 0.0
    %299 = vmatpush2.msra.mxu0 0.0
    %300 = vmatprep.subr.mxu0 0.0
    %301 = vmatpush2.msra.mxu0 0.0
    %302 = vmatprep.subr.mxu0 0.0
    %303 = vmatpush2.msra.mxu0 0.0
    %304 = vmatprep.subr.mxu0 0.0
    %305 = vmatpush2.msra.mxu0 0.0
    %306 = vmatprep.subr.mxu0 0.0
    %307 = vmatpush2.msra.mxu0 0.0
    %308 = vmatprep.subr.mxu0 0.0
    %309 = vmatpush2.msra.mxu0 0.0
    %310 = vmatprep.mubr.f32.mxu0 0.0
    %311 = vmatmul.mubr.f32.gmra.mxu0 %v152
    %v312 = vpop.f32.mrf.mxu0
    %v313 = vadd.f32 %v229, %v312
    %v314 = vpop.f32.mrf.mxu0
    %v315 = vadd.f32 %v233, %v314
    %316 = vmatprep.mubr.f32.mxu0 0.0
    %317 = vmatmul.mubr.f32.gmra.mxu0 %v153
    %v318 = vpop.f32.mrf.mxu0
    %v319 = vadd.f32 %v229, %v318
    %v320 = vpop.f32.mrf.mxu0
    %v321 = vadd.f32 %v233, %v320
    %322 = vmatprep.mubr.f32.mxu0 0.0
    %323 = vmatmul.mubr.f32.gmra.mxu0 %v154
    %v324 = vpop.f32.mrf.mxu0
    %v325 = vadd.f32 %v229, %v324
    %v326 = vpop.f32.mrf.mxu0
    %v327 = vadd.f32 %v233, %v326
    %328 = vmatprep.mubr.f32.mxu0 0.0
    %329 = vmatmul.mubr.f32.gmra.mxu0 %v155
    %v330 = vpop.f32.mrf.mxu0
    %v331 = vadd.f32 %v229, %v330
    %v332 = vpop.f32.mrf.mxu0
    %v333 = vadd.f32 %v233, %v332
    %334 = vmatprep.mubr.f32.mxu0 0.0
    %335 = vmatmul.mubr.f32.gmra.mxu0 %v156
    %v336 = vpop.f32.mrf.mxu0
    %v337 = vadd.f32 %v229, %v336
    %v338 = vpop.f32.mrf.mxu0
    %v339 = vadd.f32 %v233, %v338
    %340 = vmatprep.mubr.f32.mxu0 0.0
    %341 = vmatmul.mubr.f32.gmra.mxu0 %v157
    %v342 = vpop.f32.mrf.mxu0
    %v343 = vadd.f32 %v229, %v342
    %v344 = vpop.f32.mrf.mxu0
    %v345 = vadd.f32 %v233, %v344
    %346 = vmatprep.mubr.f32.mxu0 0.0
    %347 = vmatmul.mubr.f32.gmra.mxu0 %v158
    %v348 = vpop.f32.mrf.mxu0
    %v349 = vadd.f32 %v229, %v348
    %v350 = vpop.f32.mrf.mxu0
    %v351 = vadd.f32 %v233, %v350
    %352 = vmatprep.mubr.f32.mxu0 0.0
    %353 = vmatmul.mubr.f32.gmra.mxu0 %v159
    %v354 = vpop.f32.mrf.mxu0
    %v355 = vadd.f32 %v229, %v354
    %v356 = vpop.f32.mrf.mxu0
    %v357 = vadd.f32 %v233, %v356
    %358 = vdwg.mxu0
    %359 = vmatprep.subr.mxu0 %v223
    %360 = vmatpush1.msra.mxu0 %v222
    %361 = vmatprep.subr.mxu0 %v219
    %362 = vmatpush1.msra.mxu0 %v218
    %363 = vmatprep.subr.mxu0 %v215
    %364 = vmatpush1.msra.mxu0 %v214
    %365 = vmatprep.subr.mxu0 %v211
    %366 = vmatpush1.msra.mxu0 %v210
    %367 = vmatprep.subr.mxu0 %v207
    %368 = vmatpush1.msra.mxu0 %v206
    %369 = vmatprep.subr.mxu0 %v203
    %370 = vmatpush1.msra.mxu0 %v202
    %371 = vmatprep.subr.mxu0 %v199
    %372 = vmatpush1.msra.mxu0 %v198
    %373 = vmatprep.subr.mxu0 %v195
    %374 = vmatpush1.msra.mxu0 %v194
    %375 = vmatprep.subr.mxu0 %v191
    %376 = vmatpush1.msra.mxu0 %v190
    %377 = vmatprep.subr.mxu0 %v187
    %378 = vmatpush1.msra.mxu0 %v186
    %379 = vmatprep.subr.mxu0 %v183
    %380 = vmatpush1.msra.mxu0 %v182
    %381 = vmatprep.subr.mxu0 %v179
    %382 = vmatpush1.msra.mxu0 %v178
    %383 = vmatprep.subr.mxu0 %v175
    %384 = vmatpush1.msra.mxu0 %v174
    %385 = vmatprep.subr.mxu0 %v171
    %386 = vmatpush1.msra.mxu0 %v170
    %387 = vmatprep.subr.mxu0 %v167
    %388 = vmatpush1.msra.mxu0 %v166
    %389 = vmatprep.subr.mxu0 %v163
    %390 = vmatpush1.msra.mxu0 %v162
    %391 = vmatprep.subr.mxu0 0.0
    %392 = vmatpush2.msra.mxu0 0.0
    %393 = vmatprep.subr.mxu0 0.0
    %394 = vmatpush2.msra.mxu0 0.0
    %395 = vmatprep.subr.mxu0 0.0
    %396 = vmatpush2.msra.mxu0 0.0
    %397 = vmatprep.subr.mxu0 0.0
    %398 = vmatpush2.msra.mxu0 0.0
    %399 = vmatprep.subr.mxu0 0.0
    %400 = vmatpush2.msra.mxu0 0.0
    %401 = vmatprep.subr.mxu0 0.0
    %402 = vmatpush2.msra.mxu0 0.0
    %403 = vmatprep.subr.mxu0 0.0
    %404 = vmatpush2.msra.mxu0 0.0
    %405 = vmatprep.subr.mxu0 0.0
    %406 = vmatpush2.msra.mxu0 0.0
    %407 = vmatprep.subr.mxu0 0.0
    %408 = vmatpush2.msra.mxu0 0.0
    %409 = vmatprep.subr.mxu0 0.0
    %410 = vmatpush2.msra.mxu0 0.0
    %411 = vmatprep.subr.mxu0 0.0
    %412 = vmatpush2.msra.mxu0 0.0
    %413 = vmatprep.subr.mxu0 0.0
    %414 = vmatpush2.msra.mxu0 0.0
    %415 = vmatprep.subr.mxu0 0.0
    %416 = vmatpush2.msra.mxu0 0.0
    %417 = vmatprep.subr.mxu0 0.0
    %418 = vmatpush2.msra.mxu0 0.0
    %419 = vmatprep.subr.mxu0 0.0
    %420 = vmatpush2.msra.mxu0 0.0
    %421 = vmatprep.subr.mxu0 0.0
    %422 = vmatpush2.msra.mxu0 0.0
    %423 = vmatprep.mubr.f32.mxu0 0.0
    %424 = vmatmul.mubr.f32.gmra.mxu0 %v152
    %v425 = vpop.f32.mrf.mxu0
    %v426 = vadd.f32 %v237, %v425
    %v427 = vpop.f32.mrf.mxu0
    %v428 = vadd.f32 %v241, %v427
    %429 = vmatprep.mubr.f32.mxu0 0.0
    %430 = vmatmul.mubr.f32.gmra.mxu0 %v153
    %v431 = vpop.f32.mrf.mxu0
    %v432 = vadd.f32 %v237, %v431
    %v433 = vpop.f32.mrf.mxu0
    %v434 = vadd.f32 %v241, %v433
    %435 = vmatprep.mubr.f32.mxu0 0.0
    %436 = vmatmul.mubr.f32.gmra.mxu0 %v154
    %v437 = vpop.f32.mrf.mxu0
    %v438 = vadd.f32 %v237, %v437
    %v439 = vpop.f32.mrf.mxu0
    %v440 = vadd.f32 %v241, %v439
    %441 = vmatprep.mubr.f32.mxu0 0.0
    %442 = vmatmul.mubr.f32.gmra.mxu0 %v155
    %v443 = vpop.f32.mrf.mxu0
    %v444 = vadd.f32 %v237, %v443
    %v445 = vpop.f32.mrf.mxu0
    %v446 = vadd.f32 %v241, %v445
    %447 = vmatprep.mubr.f32.mxu0 0.0
    %448 = vmatmul.mubr.f32.gmra.mxu0 %v156
    %v449 = vpop.f32.mrf.mxu0
    %v450 = vadd.f32 %v237, %v449
    %v451 = vpop.f32.mrf.mxu0
    %v452 = vadd.f32 %v241, %v451
    %453 = vmatprep.mubr.f32.mxu0 0.0
    %454 = vmatmul.mubr.f32.gmra.mxu0 %v157
    %v455 = vpop.f32.mrf.mxu0
    %v456 = vadd.f32 %v237, %v455
    %v457 = vpop.f32.mrf.mxu0
    %v458 = vadd.f32 %v241, %v457
    %459 = vmatprep.mubr.f32.mxu0 0.0
    %460 = vmatmul.mubr.f32.gmra.mxu0 %v158
    %v461 = vpop.f32.mrf.mxu0
    %v462 = vadd.f32 %v237, %v461
    %v463 = vpop.f32.mrf.mxu0
    %v464 = vadd.f32 %v241, %v463
    %465 = vmatprep.mubr.f32.mxu0 0.0
    %466 = vmatmul.mubr.f32.gmra.mxu0 %v159
    %v467 = vpop.f32.mrf.mxu0
    %v468 = vadd.f32 %v237, %v467
    %v469 = vpop.f32.mrf.mxu0
    %v470 = vadd.f32 %v241, %v469
    %471 = vdwg.mxu0
    %472 = vst [vmem:[#allocation12] sm:$0xff] %v313
    %473 = vst [vmem:[#allocation12 + $0x8] sm:$0xff] %v315
    %474 = vst [vmem:[#allocation12 + $0x10] sm:$0xff] %v426
    %475 = vst [vmem:[#allocation12 + $0x18] sm:$0xff] %v428
    %476 = vst [vmem:[#allocation12 + $0x20] sm:$0xff] %v319
    %477 = vst [vmem:[#allocation12 + $0x28] sm:$0xff] %v321
    %478 = vst [vmem:[#allocation12 + $0x30] sm:$0xff] %v432
    %479 = vst [vmem:[#allocation12 + $0x38] sm:$0xff] %v434
    %480 = vst [vmem:[#allocation12 + $0x40] sm:$0xff] %v325
    %481 = vst [vmem:[#allocation12 + $0x48] sm:$0xff] %v327
    %482 = vst [vmem:[#allocation12 + $0x50] sm:$0xff] %v438
    %483 = vst [vmem:[#allocation12 + $0x58] sm:$0xff] %v440
    %484 = vst [vmem:[#allocation12 + $0x60] sm:$0xff] %v331
    %485 = vst [vmem:[#allocation12 + $0x68] sm:$0xff] %v333
    %486 = vst [vmem:[#allocation12 + $0x70] sm:$0xff] %v444
    %487 = vst [vmem:[#allocation12 + $0x78] sm:$0xff] %v446
    %488 = vst [vmem:[#allocation12 + $0x80] sm:$0xff] %v337
    %489 = vst [vmem:[#allocation12 + $0x88] sm:$0xff] %v339
    %490 = vst [vmem:[#allocation12 + $0x90] sm:$0xff] %v450
    %491 = vst [vmem:[#allocation12 + $0x98] sm:$0xff] %v452
    %492 = vst [vmem:[#allocation12 + $0xa0] sm:$0xff] %v343
    %493 = vst [vmem:[#allocation12 + $0xa8] sm:$0xff] %v345
    %494 = vst [vmem:[#allocation12 + $0xb0] sm:$0xff] %v456
    %495 = vst [vmem:[#allocation12 + $0xb8] sm:$0xff] %v458
    %496 = vst [vmem:[#allocation12 + $0xc0] sm:$0xff] %v349
    %497 = vst [vmem:[#allocation12 + $0xc8] sm:$0xff] %v351
    %498 = vst [vmem:[#allocation12 + $0xd0] sm:$0xff] %v462
    %499 = vst [vmem:[#allocation12 + $0xd8] sm:$0xff] %v464
    %500 = vst [vmem:[#allocation12 + $0xe0] sm:$0xff] %v355
    %501 = vst [vmem:[#allocation12 + $0xe8] sm:$0xff] %v357
    %502 = vst [vmem:[#allocation12 + $0xf0] sm:$0xff] %v468
    %503 = vst [vmem:[#allocation12 + $0xf8] sm:$0xff] %v470
    %v504 = vld [vmem:[#allocation7] sm:$0xff]
    %v505 = vld [vmem:[#allocation8] sm:$0xff]
    %v506 = vld [vmem:[#allocation9] sm:$0xff]
    %v507 = vld [vmem:[#allocation10] sm:$0xff]
    %s508 = smul.u32 0, 4
    %s509 = smul.addr %s508, 8
    %s510 = scalar_lea.vmem [#allocation12], %s509
    %v511 = vld [vmem:[%s510] sm:$0xff]
    %v512 = vld [vmem:[%s510 + $0x8] sm:$0xff]
    %v513 = vld [vmem:[%s510 + $0x10] sm:$0xff]
    %v514 = vld [vmem:[%s510 + $0x18] sm:$0xff]
    %v515 = vld [vmem:[#allocation4] sm:$0xff]
    %v516 = vld [vmem:[#allocation4 + $0x8] sm:$0xff]
    %v517 = vld [vmem:[#allocation4 + $0x10] sm:$0xff]
    %v518 = vld [vmem:[#allocation4 + $0x18] sm:$0xff]
    %v519 = vld [vmem:[#allocation4 + $0x20] sm:$0xff]
    %v520 = vld [vmem:[#allocation4 + $0x28] sm:$0xff]
    %v521 = vld [vmem:[#allocation4 + $0x30] sm:$0xff]
    %v522 = vld [vmem:[#allocation4 + $0x38] sm:$0xff]
    %v523 = vld [vmem:[#allocation4 + $0x40] sm:$0xff]
    %v524 = vld [vmem:[#allocation4 + $0x48] sm:$0xff]
    %v525 = vld [vmem:[#allocation4 + $0x50] sm:$0xff]
    %v526 = vld [vmem:[#allocation4 + $0x58] sm:$0xff]
    %v527 = vld [vmem:[#allocation4 + $0x60] sm:$0xff]
    %v528 = vld [vmem:[#allocation4 + $0x68] sm:$0xff]
    %v529 = vld [vmem:[#allocation4 + $0x70] sm:$0xff]
    %v530 = vld [vmem:[#allocation4 + $0x78] sm:$0xff]
    %v531 = vld [vmem:[#allocation4 + $0x80] sm:$0xff]
    %v532 = vld [vmem:[#allocation4 + $0x88] sm:$0xff]
    %v533 = vld [vmem:[#allocation4 + $0x90] sm:$0xff]
    %v534 = vld [vmem:[#allocation4 + $0x98] sm:$0xff]
    %v535 = vld [vmem:[#allocation4 + $0xa0] sm:$0xff]
    %v536 = vld [vmem:[#allocation4 + $0xa8] sm:$0xff]
    %v537 = vld [vmem:[#allocation4 + $0xb0] sm:$0xff]
    %v538 = vld [vmem:[#allocation4 + $0xb8] sm:$0xff]
    %v539 = vld [vmem:[#allocation4 + $0xc0] sm:$0xff]
    %v540 = vld [vmem:[#allocation4 + $0xc8] sm:$0xff]
    %v541 = vld [vmem:[#allocation4 + $0xd0] sm:$0xff]
    %v542 = vld [vmem:[#allocation4 + $0xd8] sm:$0xff]
    %v543 = vld [vmem:[#allocation4 + $0xe0] sm:$0xff]
    %v544 = vld [vmem:[#allocation4 + $0xe8] sm:$0xff]
    %v545 = vld [vmem:[#allocation4 + $0xf0] sm:$0xff]
    %v546 = vld [vmem:[#allocation4 + $0xf8] sm:$0xff]
    %v547 = vld [vmem:[#allocation4 + $0x100] sm:$0xff]
    %v548 = vld [vmem:[#allocation4 + $0x108] sm:$0xff]
    %v549 = vld [vmem:[#allocation4 + $0x110] sm:$0xff]
    %v550 = vld [vmem:[#allocation4 + $0x118] sm:$0xff]
    %v551 = vld [vmem:[#allocation4 + $0x120] sm:$0xff]
    %v552 = vld [vmem:[#allocation4 + $0x128] sm:$0xff]
    %v553 = vld [vmem:[#allocation4 + $0x130] sm:$0xff]
    %v554 = vld [vmem:[#allocation4 + $0x138] sm:$0xff]
    %v555 = vld [vmem:[#allocation4 + $0x140] sm:$0xff]
    %v556 = vld [vmem:[#allocation4 + $0x148] sm:$0xff]
    %v557 = vld [vmem:[#allocation4 + $0x150] sm:$0xff]
    %v558 = vld [vmem:[#allocation4 + $0x158] sm:$0xff]
    %v559 = vld [vmem:[#allocation4 + $0x160] sm:$0xff]
    %v560 = vld [vmem:[#allocation4 + $0x168] sm:$0xff]
    %v561 = vld [vmem:[#allocation4 + $0x170] sm:$0xff]
    %v562 = vld [vmem:[#allocation4 + $0x178] sm:$0xff]
    %v563 = vld [vmem:[#allocation4 + $0x180] sm:$0xff]
    %v564 = vld [vmem:[#allocation4 + $0x188] sm:$0xff]
    %v565 = vld [vmem:[#allocation4 + $0x190] sm:$0xff]
    %v566 = vld [vmem:[#allocation4 + $0x198] sm:$0xff]
    %v567 = vld [vmem:[#allocation4 + $0x1a0] sm:$0xff]
    %v568 = vld [vmem:[#allocation4 + $0x1a8] sm:$0xff]
    %v569 = vld [vmem:[#allocation4 + $0x1b0] sm:$0xff]
    %v570 = vld [vmem:[#allocation4 + $0x1b8] sm:$0xff]
    %v571 = vld [vmem:[#allocation4 + $0x1c0] sm:$0xff]
    %v572 = vld [vmem:[#allocation4 + $0x1c8] sm:$0xff]
    %v573 = vld [vmem:[#allocation4 + $0x1d0] sm:$0xff]
    %v574 = vld [vmem:[#allocation4 + $0x1d8] sm:$0xff]
    %v575 = vld [vmem:[#allocation4 + $0x1e0] sm:$0xff]
    %v576 = vld [vmem:[#allocation4 + $0x1e8] sm:$0xff]
    %v577 = vld [vmem:[#allocation4 + $0x1f0] sm:$0xff]
    %v578 = vld [vmem:[#allocation4 + $0x1f8] sm:$0xff]
    %579 = vmatprep.subr.mxu0 %v576
    %580 = vmatpush1.msra.mxu0 %v575
    %581 = vmatprep.subr.mxu0 %v572
    %582 = vmatpush1.msra.mxu0 %v571
    %583 = vmatprep.subr.mxu0 %v568
    %584 = vmatpush1.msra.mxu0 %v567
    %585 = vmatprep.subr.mxu0 %v564
    %586 = vmatpush1.msra.mxu0 %v563
    %587 = vmatprep.subr.mxu0 %v560
    %588 = vmatpush1.msra.mxu0 %v559
    %589 = vmatprep.subr.mxu0 %v556
    %590 = vmatpush1.msra.mxu0 %v555
    %591 = vmatprep.subr.mxu0 %v552
    %592 = vmatpush1.msra.mxu0 %v551
    %593 = vmatprep.subr.mxu0 %v548
    %594 = vmatpush1.msra.mxu0 %v547
    %595 = vmatprep.subr.mxu0 %v544
    %596 = vmatpush1.msra.mxu0 %v543
    %597 = vmatprep.subr.mxu0 %v540
    %598 = vmatpush1.msra.mxu0 %v539
    %599 = vmatprep.subr.mxu0 %v536
    %600 = vmatpush1.msra.mxu0 %v535
    %601 = vmatprep.subr.mxu0 %v532
    %602 = vmatpush1.msra.mxu0 %v531
    %603 = vmatprep.subr.mxu0 %v528
    %604 = vmatpush1.msra.mxu0 %v527
    %605 = vmatprep.subr.mxu0 %v524
    %606 = vmatpush1.msra.mxu0 %v523
    %607 = vmatprep.subr.mxu0 %v520
    %608 = vmatpush1.msra.mxu0 %v519
    %609 = vmatprep.subr.mxu0 %v516
    %610 = vmatpush1.msra.mxu0 %v515
    %611 = vmatprep.subr.mxu0 0.0
    %612 = vmatpush2.msra.mxu0 0.0
    %613 = vmatprep.subr.mxu0 0.0
    %614 = vmatpush2.msra.mxu0 0.0
    %615 = vmatprep.subr.mxu0 0.0
    %616 = vmatpush2.msra.mxu0 0.0
    %617 = vmatprep.subr.mxu0 0.0
    %618 = vmatpush2.msra.mxu0 0.0
    %619 = vmatprep.subr.mxu0 0.0
    %620 = vmatpush2.msra.mxu0 0.0
    %621 = vmatprep.subr.mxu0 0.0
    %622 = vmatpush2.msra.mxu0 0.0
    %623 = vmatprep.subr.mxu0 0.0
    %624 = vmatpush2.msra.mxu0 0.0
    %625 = vmatprep.subr.mxu0 0.0
    %626 = vmatpush2.msra.mxu0 0.0
    %627 = vmatprep.subr.mxu0 0.0
    %628 = vmatpush2.msra.mxu0 0.0
    %629 = vmatprep.subr.mxu0 0.0
    %630 = vmatpush2.msra.mxu0 0.0
    %631 = vmatprep.subr.mxu0 0.0
    %632 = vmatpush2.msra.mxu0 0.0
    %633 = vmatprep.subr.mxu0 0.0
    %634 = vmatpush2.msra.mxu0 0.0
    %635 = vmatprep.subr.mxu0 0.0
    %636 = vmatpush2.msra.mxu0 0.0
    %637 = vmatprep.subr.mxu0 0.0
    %638 = vmatpush2.msra.mxu0 0.0
    %639 = vmatprep.subr.mxu0 0.0
    %640 = vmatpush2.msra.mxu0 0.0
    %641 = vmatprep.subr.mxu0 0.0
    %642 = vmatpush2.msra.mxu0 0.0
    %643 = vmatprep.mubr.f32.mxu0 0.0
    %644 = vmatmul.mubr.f32.gmra.mxu0 %v504
    %v645 = vpop.f32.mrf.mxu0
    %v646 = vadd.f32 0.0, %v645
    %v647 = vpop.f32.mrf.mxu0
    %v648 = vadd.f32 0.0, %v647
    %649 = vdwg.mxu0
    %650 = vmatprep.subr.mxu0 %v578
    %651 = vmatpush1.msra.mxu0 %v577
    %652 = vmatprep.subr.mxu0 %v574
    %653 = vmatpush1.msra.mxu0 %v573
    %654 = vmatprep.subr.mxu0 %v570
    %655 = vmatpush1.msra.mxu0 %v569
    %656 = vmatprep.subr.mxu0 %v566
    %657 = vmatpush1.msra.mxu0 %v565
    %658 = vmatprep.subr.mxu0 %v562
    %659 = vmatpush1.msra.mxu0 %v561
    %660 = vmatprep.subr.mxu0 %v558
    %661 = vmatpush1.msra.mxu0 %v557
    %662 = vmatprep.subr.mxu0 %v554
    %663 = vmatpush1.msra.mxu0 %v553
    %664 = vmatprep.subr.mxu0 %v550
    %665 = vmatpush1.msra.mxu0 %v549
    %666 = vmatprep.subr.mxu0 %v546
    %667 = vmatpush1.msra.mxu0 %v545
    %668 = vmatprep.subr.mxu0 %v542
    %669 = vmatpush1.msra.mxu0 %v541
    %670 = vmatprep.subr.mxu0 %v538
    %671 = vmatpush1.msra.mxu0 %v537
    %672 = vmatprep.subr.mxu0 %v534
    %673 = vmatpush1.msra.mxu0 %v533
    %674 = vmatprep.subr.mxu0 %v530
    %675 = vmatpush1.msra.mxu0 %v529
    %676 = vmatprep.subr.mxu0 %v526
    %677 = vmatpush1.msra.mxu0 %v525
    %678 = vmatprep.subr.mxu0 %v522
    %679 = vmatpush1.msra.mxu0 %v521
    %680 = vmatprep.subr.mxu0 %v518
    %681 = vmatpush1.msra.mxu0 %v517
    %682 = vmatprep.subr.mxu0 0.0
    %683 = vmatpush2.msra.mxu0 0.0
    %684 = vmatprep.subr.mxu0 0.0
    %685 = vmatpush2.msra.mxu0 0.0
    %686 = vmatprep.subr.mxu0 0.0
    %687 = vmatpush2.msra.mxu0 0.0
    %688 = vmatprep.subr.mxu0 0.0
    %689 = vmatpush2.msra.mxu0 0.0
    %690 = vmatprep.subr.mxu0 0.0
    %691 = vmatpush2.msra.mxu0 0.0
    %692 = vmatprep.subr.mxu0 0.0
    %693 = vmatpush2.msra.mxu0 0.0
    %694 = vmatprep.subr.mxu0 0.0
    %695 = vmatpush2.msra.mxu0 0.0
    %696 = vmatprep.subr.mxu0 0.0
    %697 = vmatpush2.msra.mxu0 0.0
    %698 = vmatprep.subr.mxu0 0.0
    %699 = vmatpush2.msra.mxu0 0.0
    %700 = vmatprep.subr.mxu0 0.0
    %701 = vmatpush2.msra.mxu0 0.0
    %702 = vmatprep.subr.mxu0 0.0
    %703 = vmatpush2.msra.mxu0 0.0
    %704 = vmatprep.subr.mxu0 0.0
    %705 = vmatpush2.msra.mxu0 0.0
    %706 = vmatprep.subr.mxu0 0.0
    %707 = vmatpush2.msra.mxu0 0.0
    %708 = vmatprep.subr.mxu0 0.0
    %709 = vmatpush2.msra.mxu0 0.0
    %710 = vmatprep.subr.mxu0 0.0
    %711 = vmatpush2.msra.mxu0 0.0
    %712 = vmatprep.subr.mxu0 0.0
    %713 = vmatpush2.msra.mxu0 0.0
    %714 = vmatprep.mubr.f32.mxu0 0.0
    %715 = vmatmul.mubr.f32.gmra.mxu0 %v504
    %v716 = vpop.f32.mrf.mxu0
    %v717 = vadd.f32 0.0, %v716
    %v718 = vpop.f32.mrf.mxu0
    %v719 = vadd.f32 0.0, %v718
    %720 = vdwg.mxu0
    %v721 = vadd.f32 %v511, %v646
    %v722 = vadd.f32 %v512, %v648
    %v723 = vadd.f32 %v513, %v717
    %v724 = vadd.f32 %v514, %v719
    %v725 = vtanh.pop %v721
    %v726 = vxor.u32 %v724, 2147483648
    %v727 = vmul.f32 %v726, 1.442695
    %v728 = vpow.pop %v727
    %v729 = vadd.f32 %v728, 1.0
    %v730 = vrcp.pop %v729
    %v731 = vmul.f32 1.0, %v730
    %v732 = vadd.f32 %v723, %v507
    %v733 = vmax.f32 %v732, %v722
    %v734 = vsub.f32 %v722, %v733
    %v735 = vmul.f32 %v734, 1.442695
    %v736 = vpow.pop %v735
    %v737 = vsub.f32 %v732, %v733
    %v738 = vmul.f32 %v737, 1.442695
    %v739 = vpow.pop %v738
    %v740 = vmul.f32 %v739, %v505
    %v741 = vmul.f32 %v736, %v725
    %v742 = vadd.f32 %v740, %v741
    %v743 = vmul.f32 %v739, %v506
    %v744 = vadd.f32 %v743, %v736
    %v745 = vmul.f32 %v731, %v742
    %v746 = vrcp.pop %v744
    %v747 = vmul.f32 %v745, %v746
    %748 = vst [vmem:[#allocation11] sm:$0xff] %v747
    %s749 = smul.u32 1, 4
    %s750 = smul.addr %s749, 8
    %s751 = scalar_lea.vmem [#allocation12], %s750
    %v752 = vld [vmem:[%s751] sm:$0xff]
    %v753 = vld [vmem:[%s751 + $0x8] sm:$0xff]
    %v754 = vld [vmem:[%s751 + $0x10] sm:$0xff]
    %v755 = vld [vmem:[%s751 + $0x18] sm:$0xff]
    %v756 = vld [vmem:[#allocation4] sm:$0xff]
    %v757 = vld [vmem:[#allocation4 + $0x8] sm:$0xff]
    %v758 = vld [vmem:[#allocation4 + $0x10] sm:$0xff]
    %v759 = vld [vmem:[#allocation4 + $0x18] sm:$0xff]
    %v760 = vld [vmem:[#allocation4 + $0x20] sm:$0xff]
    %v761 = vld [vmem:[#allocation4 + $0x28] sm:$0xff]
    %v762 = vld [vmem:[#allocation4 + $0x30] sm:$0xff]
    %v763 = vld [vmem:[#allocation4 + $0x38] sm:$0xff]
    %v764 = vld [vmem:[#allocation4 + $0x40] sm:$0xff]
    %v765 = vld [vmem:[#allocation4 + $0x48] sm:$0xff]
    %v766 = vld [vmem:[#allocation4 + $0x50] sm:$0xff]
    %v767 = vld [vmem:[#allocation4 + $0x58] sm:$0xff]
    %v768 = vld [vmem:[#allocation4 + $0x60] sm:$0xff]
    %v769 = vld [vmem:[#allocation4 + $0x68] sm:$0xff]
    %v770 = vld [vmem:[#allocation4 + $0x70] sm:$0xff]
    %v771 = vld [vmem:[#allocation4 + $0x78] sm:$0xff]
    %v772 = vld [vmem:[#allocation4 + $0x80] sm:$0xff]
    %v773 = vld [vmem:[#allocation4 + $0x88] sm:$0xff]
    %v774 = vld [vmem:[#allocation4 + $0x90] sm:$0xff]
    %v775 = vld [vmem:[#allocation4 + $0x98] sm:$0xff]
    %v776 = vld [vmem:[#allocation4 + $0xa0] sm:$0xff]
    %v777 = vld [vmem:[#allocation4 + $0xa8] sm:$0xff]
    %v778 = vld [vmem:[#allocation4 + $0xb0] sm:$0xff]
    %v779 = vld [vmem:[#allocation4 + $0xb8] sm:$0xff]
    %v780 = vld [vmem:[#allocation4 + $0xc0] sm:$0xff]
    %v781 = vld [vmem:[#allocation4 + $0xc8] sm:$0xff]
    %v782 = vld [vmem:[#allocation4 + $0xd0] sm:$0xff]
    %v783 = vld [vmem:[#allocation4 + $0xd8] sm:$0xff]
    %v784 = vld [vmem:[#allocation4 + $0xe0] sm:$0xff]
    %v785 = vld [vmem:[#allocation4 + $0xe8] sm:$0xff]
    %v786 = vld [vmem:[#allocation4 + $0xf0] sm:$0xff]
    %v787 = vld [vmem:[#allocation4 + $0xf8] sm:$0xff]
    %v788 = vld [vmem:[#allocation4 + $0x100] sm:$0xff]
    %v789 = vld [vmem:[#allocation4 + $0x108] sm:$0xff]
    %v790 = vld [vmem:[#allocation4 + $0x110] sm:$0xff]
    %v791 = vld [vmem:[#allocation4 + $0x118] sm:$0xff]
    %v792 = vld [vmem:[#allocation4 + $0x120] sm:$0xff]
    %v793 = vld [vmem:[#allocation4 + $0x128] sm:$0xff]
    %v794 = vld [vmem:[#allocation4 + $0x130] sm:$0xff]
    %v795 = vld [vmem:[#allocation4 + $0x138] sm:$0xff]
    %v796 = vld [vmem:[#allocation4 + $0x140] sm:$0xff]
    %v797 = vld [vmem:[#allocation4 + $0x148] sm:$0xff]
    %v798 = vld [vmem:[#allocation4 + $0x150] sm:$0xff]
    %v799 = vld [vmem:[#allocation4 + $0x158] sm:$0xff]
    %v800 = vld [vmem:[#allocation4 + $0x160] sm:$0xff]
    %v801 = vld [vmem:[#allocation4 + $0x168] sm:$0xff]
    %v802 = vld [vmem:[#allocation4 + $0x170] sm:$0xff]
    %v803 = vld [vmem:[#allocation4 + $0x178] sm:$0xff]
    %v804 = vld [vmem:[#allocation4 + $0x180] sm:$0xff]
    %v805 = vld [vmem:[#allocation4 + $0x188] sm:$0xff]
    %v806 = vld [vmem:[#allocation4 + $0x190] sm:$0xff]
    %v807 = vld [vmem:[#allocation4 + $0x198] sm:$0xff]
    %v808 = vld [vmem:[#allocation4 + $0x1a0] sm:$0xff]
    %v809 = vld [vmem:[#allocation4 + $0x1a8] sm:$0xff]
    %v810 = vld [vmem:[#allocation4 + $0x1b0] sm:$0xff]
    %v811 = vld [vmem:[#allocation4 + $0x1b8] sm:$0xff]
    %v812 = vld [vmem:[#allocation4 + $0x1c0] sm:$0xff]
    %v813 = vld [vmem:[#allocation4 + $0x1c8] sm:$0xff]
    %v814 = vld [vmem:[#allocation4 + $0x1d0] sm:$0xff]
    %v815 = vld [vmem:[#allocation4 + $0x1d8] sm:$0xff]
    %v816 = vld [vmem:[#allocation4 + $0x1e0] sm:$0xff]
    %v817 = vld [vmem:[#allocation4 + $0x1e8] sm:$0xff]
    %v818 = vld [vmem:[#allocation4 + $0x1f0] sm:$0xff]
    %v819 = vld [vmem:[#allocation4 + $0x1f8] sm:$0xff]
    %820 = vmatprep.subr.mxu0 %v817
    %821 = vmatpush1.msra.mxu0 %v816
    %822 = vmatprep.subr.mxu0 %v813
    %823 = vmatpush1.msra.mxu0 %v812
    %824 = vmatprep.subr.mxu0 %v809
    %825 = vmatpush1.msra.mxu0 %v808
    %826 = vmatprep.subr.mxu0 %v805
    %827 = vmatpush1.msra.mxu0 %v804
    %828 = vmatprep.subr.mxu0 %v801
    %829 = vmatpush1.msra.mxu0 %v800
    %830 = vmatprep.subr.mxu0 %v797
    %831 = vmatpush1.msra.mxu0 %v796
    %832 = vmatprep.subr.mxu0 %v793
    %833 = vmatpush1.msra.mxu0 %v792
    %834 = vmatprep.subr.mxu0 %v789
    %835 = vmatpush1.msra.mxu0 %v788
    %836 = vmatprep.subr.mxu0 %v785
    %837 = vmatpush1.msra.mxu0 %v784
    %838 = vmatprep.subr.mxu0 %v781
    %839 = vmatpush1.msra.mxu0 %v780
    %840 = vmatprep.subr.mxu0 %v777
    %841 = vmatpush1.msra.mxu0 %v776
    %842 = vmatprep.subr.mxu0 %v773
    %843 = vmatpush1.msra.mxu0 %v772
    %844 = vmatprep.subr.mxu0 %v769
    %845 = vmatpush1.msra.mxu0 %v768
    %846 = vmatprep.subr.mxu0 %v765
    %847 = vmatpush1.msra.mxu0 %v764
    %848 = vmatprep.subr.mxu0 %v761
    %849 = vmatpush1.msra.mxu0 %v760
    %850 = vmatprep.subr.mxu0 %v757
    %851 = vmatpush1.msra.mxu0 %v756
    %852 = vmatprep.subr.mxu0 0.0
    %853 = vmatpush2.msra.mxu0 0.0
    %854 = vmatprep.subr.mxu0 0.0
    %855 = vmatpush2.msra.mxu0 0.0
    %856 = vmatprep.subr.mxu0 0.0
    %857 = vmatpush2.msra.mxu0 0.0
    %858 = vmatprep.subr.mxu0 0.0
    %859 = vmatpush2.msra.mxu0 0.0
    %860 = vmatprep.subr.mxu0 0.0
    %861 = vmatpush2.msra.mxu0 0.0
    %862 = vmatprep.subr.mxu0 0.0
    %863 = vmatpush2.msra.mxu0 0.0
    %864 = vmatprep.subr.mxu0 0.0
    %865 = vmatpush2.msra.mxu0 0.0
    %866 = vmatprep.subr.mxu0 0.0
    %867 = vmatpush2.msra.mxu0 0.0
    %868 = vmatprep.subr.mxu0 0.0
    %869 = vmatpush2.msra.mxu0 0.0
    %870 = vmatprep.subr.mxu0 0.0
    %871 = vmatpush2.msra.mxu0 0.0
    %872 = vmatprep.subr.mxu0 0.0
    %873 = vmatpush2.msra.mxu0 0.0
    %874 = vmatprep.subr.mxu0 0.0
    %875 = vmatpush2.msra.mxu0 0.0
    %876 = vmatprep.subr.mxu0 0.0
    %877 = vmatpush2.msra.mxu0 0.0
    %878 = vmatprep.subr.mxu0 0.0
    %879 = vmatpush2.msra.mxu0 0.0
    %880 = vmatprep.subr.mxu0 0.0
    %881 = vmatpush2.msra.mxu0 0.0
    %882 = vmatprep.subr.mxu0 0.0
    %883 = vmatpush2.msra.mxu0 0.0
    %884 = vmatprep.mubr.f32.mxu0 0.0
    %885 = vmatmul.mubr.f32.gmra.mxu0 %v747
    %v886 = vpop.f32.mrf.mxu0
    %v887 = vadd.f32 0.0, %v886
    %v888 = vpop.f32.mrf.mxu0
    %v889 = vadd.f32 0.0, %v888
    %890 = vdwg.mxu0
    %891 = vmatprep.subr.mxu0 %v819
    %892 = vmatpush1.msra.mxu0 %v818
    %893 = vmatprep.subr.mxu0 %v815
    %894 = vmatpush1.msra.mxu0 %v814
    %895 = vmatprep.subr.mxu0 %v811
    %896 = vmatpush1.msra.mxu0 %v810
    %897 = vmatprep.subr.mxu0 %v807
    %898 = vmatpush1.msra.mxu0 %v806
    %899 = vmatprep.subr.mxu0 %v803
    %900 = vmatpush1.msra.mxu0 %v802
    %901 = vmatprep.subr.mxu0 %v799
    %902 = vmatpush1.msra.mxu0 %v798
    %903 = vmatprep.subr.mxu0 %v795
    %904 = vmatpush1.msra.mxu0 %v794
    %905 = vmatprep.subr.mxu0 %v791
    %906 = vmatpush1.msra.mxu0 %v790
    %907 = vmatprep.subr.mxu0 %v787
    %908 = vmatpush1.msra.mxu0 %v786
    %909 = vmatprep.subr.mxu0 %v783
    %910 = vmatpush1.msra.mxu0 %v782
    %911 = vmatprep.subr.mxu0 %v779
    %912 = vmatpush1.msra.mxu0 %v778
    %913 = vmatprep.subr.mxu0 %v775
    %914 = vmatpush1.msra.mxu0 %v774
    %915 = vmatprep.subr.mxu0 %v771
    %916 = vmatpush1.msra.mxu0 %v770
    %917 = vmatprep.subr.mxu0 %v767
    %918 = vmatpush1.msra.mxu0 %v766
    %919 = vmatprep.subr.mxu0 %v763
    %920 = vmatpush1.msra.mxu0 %v762
    %921 = vmatprep.subr.mxu0 %v759
    %922 = vmatpush1.msra.mxu0 %v758
    %923 = vmatprep.subr.mxu0 0.0
    %924 = vmatpush2.msra.mxu0 0.0
    %925 = vmatprep.subr.mxu0 0.0
    %926 = vmatpush2.msra.mxu0 0.0
    %927 = vmatprep.subr.mxu0 0.0
    %928 = vmatpush2.msra.mxu0 0.0
    %929 = vmatprep.subr.mxu0 0.0
    %930 = vmatpush2.msra.mxu0 0.0
    %931 = vmatprep.subr.mxu0 0.0
    %932 = vmatpush2.msra.mxu0 0.0
    %933 = vmatprep.subr.mxu0 0.0
    %934 = vmatpush2.msra.mxu0 0.0
    %935 = vmatprep.subr.mxu0 0.0
    %936 = vmatpush2.msra.mxu0 0.0
    %937 = vmatprep.subr.mxu0 0.0
    %938 = vmatpush2.msra.mxu0 0.0
    %939 = vmatprep.subr.mxu0 0.0
    %940 = vmatpush2.msra.mxu0 0.0
    %941 = vmatprep.subr.mxu0 0.0
    %942 = vmatpush2.msra.mxu0 0.0
    %943 = vmatprep.subr.mxu0 0.0
    %944 = vmatpush2.msra.mxu0 0.0
    %945 = vmatprep.subr.mxu0 0.0
    %946 = vmatpush2.msra.mxu0 0.0
    %947 = vmatprep.subr.mxu0 0.0
    %948 = vmatpush2.msra.mxu0 0.0
    %949 = vmatprep.subr.mxu0 0.0
    %950 = vmatpush2.msra.mxu0 0.0
    %951 = vmatprep.subr.mxu0 0.0
    %952 = vmatpush2.msra.mxu0 0.0
    %953 = vmatprep.subr.mxu0 0.0
    %954 = vmatpush2.msra.mxu0 0.0
    %955 = vmatprep.mubr.f32.mxu0 0.0
    %956 = vmatmul.mubr.f32.gmra.mxu0 %v747
    %v957 = vpop.f32.mrf.mxu0
    %v958 = vadd.f32 0.0, %v957
    %v959 = vpop.f32.mrf.mxu0
    %v960 = vadd.f32 0.0, %v959
    %961 = vdwg.mxu0
    %v962 = vadd.f32 %v752, %v887
    %v963 = vadd.f32 %v753, %v889
    %v964 = vadd.f32 %v754, %v958
    %v965 = vadd.f32 %v755, %v960
    %v966 = vtanh.pop %v962
    %v967 = vxor.u32 %v965, 2147483648
    %v968 = vmul.f32 %v967, 1.442695
    %v969 = vpow.pop %v968
    %v970 = vadd.f32 %v969, 1.0
    %v971 = vrcp.pop %v970
    %v972 = vmul.f32 1.0, %v971
    %v973 = vadd.f32 %v964, %v733
    %v974 = vmax.f32 %v973, %v963
    %v975 = vsub.f32 %v963, %v974
    %v976 = vmul.f32 %v975, 1.442695
    %v977 = vpow.pop %v976
    %v978 = vsub.f32 %v973, %v974
    %v979 = vmul.f32 %v978, 1.442695
    %v980 = vpow.pop %v979
    %v981 = vmul.f32 %v980, %v742
    %v982 = vmul.f32 %v977, %v966
    %v983 = vadd.f32 %v981, %v982
    %v984 = vmul.f32 %v980, %v744
    %v985 = vadd.f32 %v984, %v977
    %v986 = vmul.f32 %v972, %v983
    %v987 = vrcp.pop %v985
    %v988 = vmul.f32 %v986, %v987
    %s989 = scalar_lea.vmem [#allocation11], 8
    %990 = vst [vmem:[%s989] sm:$0xff] %v988
    %s991 = smul.u32 2, 4
    %s992 = smul.addr %s991, 8
    %s993 = scalar_lea.vmem [#allocation12], %s992
    %v994 = vld [vmem:[%s993] sm:$0xff]
    %v995 = vld [vmem:[%s993 + $0x8] sm:$0xff]
    %v996 = vld [vmem:[%s993 + $0x10] sm:$0xff]
    %v997 = vld [vmem:[%s993 + $0x18] sm:$0xff]
    %v998 = vld [vmem:[#allocation4] sm:$0xff]
    %v999 = vld [vmem:[#allocation4 + $0x8] sm:$0xff]
    %v1000 = vld [vmem:[#allocation4 + $0x10] sm:$0xff]
    %v1001 = vld [vmem:[#allocation4 + $0x18] sm:$0xff]
    %v1002 = vld [vmem:[#allocation4 + $0x20] sm:$0xff]
    %v1003 = vld [vmem:[#allocation4 + $0x28] sm:$0xff]
    %v1004 = vld [vmem:[#allocation4 + $0x30] sm:$0xff]
    %v1005 = vld [vmem:[#allocation4 + $0x38] sm:$0xff]
    %v1006 = vld [vmem:[#allocation4 + $0x40] sm:$0xff]
    %v1007 = vld [vmem:[#allocation4 + $0x48] sm:$0xff]
    %v1008 = vld [vmem:[#allocation4 + $0x50] sm:$0xff]
    %v1009 = vld [vmem:[#allocation4 + $0x58] sm:$0xff]
    %v1010 = vld [vmem:[#allocation4 + $0x60] sm:$0xff]
    %v1011 = vld [vmem:[#allocation4 + $0x68] sm:$0xff]
    %v1012 = vld [vmem:[#allocation4 + $0x70] sm:$0xff]
    %v1013 = vld [vmem:[#allocation4 + $0x78] sm:$0xff]
    %v1014 = vld [vmem:[#allocation4 + $0x80] sm:$0xff]
    %v1015 = vld [vmem:[#allocation4 + $0x88] sm:$0xff]
    %v1016 = vld [vmem:[#allocation4 + $0x90] sm:$0xff]
    %v1017 = vld [vmem:[#allocation4 + $0x98] sm:$0xff]
    %v1018 = vld [vmem:[#allocation4 + $0xa0] sm:$0xff]
    %v1019 = vld [vmem:[#allocation4 + $0xa8] sm:$0xff]
    %v1020 = vld [vmem:[#allocation4 + $0xb0] sm:$0xff]
    %v1021 = vld [vmem:[#allocation4 + $0xb8] sm:$0xff]
    %v1022 = vld [vmem:[#allocation4 + $0xc0] sm:$0xff]
    %v1023 = vld [vmem:[#allocation4 + $0xc8] sm:$0xff]
    %v1024 = vld [vmem:[#allocation4 + $0xd0] sm:$0xff]
    %v1025 = vld [vmem:[#allocation4 + $0xd8] sm:$0xff]
    %v1026 = vld [vmem:[#allocation4 + $0xe0] sm:$0xff]
    %v1027 = vld [vmem:[#allocation4 + $0xe8] sm:$0xff]
    %v1028 = vld [vmem:[#allocation4 + $0xf0] sm:$0xff]
    %v1029 = vld [vmem:[#allocation4 + $0xf8] sm:$0xff]
    %v1030 = vld [vmem:[#allocation4 + $0x100] sm:$0xff]
    %v1031 = vld [vmem:[#allocation4 + $0x108] sm:$0xff]
    %v1032 = vld [vmem:[#allocation4 + $0x110] sm:$0xff]
    %v1033 = vld [vmem:[#allocation4 + $0x118] sm:$0xff]
    %v1034 = vld [vmem:[#allocation4 + $0x120] sm:$0xff]
    %v1035 = vld [vmem:[#allocation4 + $0x128] sm:$0xff]
    %v1036 = vld [vmem:[#allocation4 + $0x130] sm:$0xff]
    %v1037 = vld [vmem:[#allocation4 + $0x138] sm:$0xff]
    %v1038 = vld [vmem:[#allocation4 + $0x140] sm:$0xff]
    %v1039 = vld [vmem:[#allocation4 + $0x148] sm:$0xff]
    %v1040 = vld [vmem:[#allocation4 + $0x150] sm:$0xff]
    %v1041 = vld [vmem:[#allocation4 + $0x158] sm:$0xff]
    %v1042 = vld [vmem:[#allocation4 + $0x160] sm:$0xff]
    %v1043 = vld [vmem:[#allocation4 + $0x168] sm:$0xff]
    %v1044 = vld [vmem:[#allocation4 + $0x170] sm:$0xff]
    %v1045 = vld [vmem:[#allocation4 + $0x178] sm:$0xff]
    %v1046 = vld [vmem:[#allocation4 + $0x180] sm:$0xff]
    %v1047 = vld [vmem:[#allocation4 + $0x188] sm:$0xff]
    %v1048 = vld [vmem:[#allocation4 + $0x190] sm:$0xff]
    %v1049 = vld [vmem:[#allocation4 + $0x198] sm:$0xff]
    %v1050 = vld [vmem:[#allocation4 + $0x1a0] sm:$0xff]
    %v1051 = vld [vmem:[#allocation4 + $0x1a8] sm:$0xff]
    %v1052 = vld [vmem:[#allocation4 + $0x1b0] sm:$0xff]
    %v1053 = vld [vmem:[#allocation4 + $0x1b8] sm:$0xff]
    %v1054 = vld [vmem:[#allocation4 + $0x1c0] sm:$0xff]
    %v1055 = vld [vmem:[#allocation4 + $0x1c8] sm:$0xff]
    %v1056 = vld [vmem:[#allocation4 + $0x1d0] sm:$0xff]
    %v1057 = vld [vmem:[#allocation4 + $0x1d8] sm:$0xff]
    %v1058 = vld [vmem:[#allocation4 + $0x1e0] sm:$0xff]
    %v1059 = vld [vmem:[#allocation4 + $0x1e8] sm:$0xff]
    %v1060 = vld [vmem:[#allocation4 + $0x1f0] sm:$0xff]
    %v1061 = vld [vmem:[#allocation4 + $0x1f8] sm:$0xff]
    %1062 = vmatprep.subr.mxu0 %v1059
    %1063 = vmatpush1.msra.mxu0 %v1058
    %1064 = vmatprep.subr.mxu0 %v1055
    %1065 = vmatpush1.msra.mxu0 %v1054
    %1066 = vmatprep.subr.mxu0 %v1051
    %1067 = vmatpush1.msra.mxu0 %v1050
    %1068 = vmatprep.subr.mxu0 %v1047
    %1069 = vmatpush1.msra.mxu0 %v1046
    %1070 = vmatprep.subr.mxu0 %v1043
    %1071 = vmatpush1.msra.mxu0 %v1042
    %1072 = vmatprep.subr.mxu0 %v1039
    %1073 = vmatpush1.msra.mxu0 %v1038
    %1074 = vmatprep.subr.mxu0 %v1035
    %1075 = vmatpush1.msra.mxu0 %v1034
    %1076 = vmatprep.subr.mxu0 %v1031
    %1077 = vmatpush1.msra.mxu0 %v1030
    %1078 = vmatprep.subr.mxu0 %v1027
    %1079 = vmatpush1.msra.mxu0 %v1026
    %1080 = vmatprep.subr.mxu0 %v1023
    %1081 = vmatpush1.msra.mxu0 %v1022
    %1082 = vmatprep.subr.mxu0 %v1019
    %1083 = vmatpush1.msra.mxu0 %v1018
    %1084 = vmatprep.subr.mxu0 %v1015
    %1085 = vmatpush1.msra.mxu0 %v1014
    %1086 = vmatprep.subr.mxu0 %v1011
    %1087 = vmatpush1.msra.mxu0 %v1010
    %1088 = vmatprep.subr.mxu0 %v1007
    %1089 = vmatpush1.msra.mxu0 %v1006
    %1090 = vmatprep.subr.mxu0 %v1003
    %1091 = vmatpush1.msra.mxu0 %v1002
    %1092 = vmatprep.subr.mxu0 %v999
    %1093 = vmatpush1.msra.mxu0 %v998
    %1094 = vmatprep.subr.mxu0 0.0
    %1095 = vmatpush2.msra.mxu0 0.0
    %1096 = vmatprep.subr.mxu0 0.0
    %1097 = vmatpush2.msra.mxu0 0.0
    %1098 = vmatprep.subr.mxu0 0.0
    %1099 = vmatpush2.msra.mxu0 0.0
    %1100 = vmatprep.subr.mxu0 0.0
    %1101 = vmatpush2.msra.mxu0 0.0
    %1102 = vmatprep.subr.mxu0 0.0
    %1103 = vmatpush2.msra.mxu0 0.0
    %1104 = vmatprep.subr.mxu0 0.0
    %1105 = vmatpush2.msra.mxu0 0.0
    %1106 = vmatprep.subr.mxu0 0.0
    %1107 = vmatpush2.msra.mxu0 0.0
    %1108 = vmatprep.subr.mxu0 0.0
    %1109 = vmatpush2.msra.mxu0 0.0
    %1110 = vmatprep.subr.mxu0 0.0
    %1111 = vmatpush2.msra.mxu0 0.0
    %1112 = vmatprep.subr.mxu0 0.0
    %1113 = vmatpush2.msra.mxu0 0.0
    %1114 = vmatprep.subr.mxu0 0.0
    %1115 = vmatpush2.msra.mxu0 0.0
    %1116 = vmatprep.subr.mxu0 0.0
    %1117 = vmatpush2.msra.mxu0 0.0
    %1118 = vmatprep.subr.mxu0 0.0
    %1119 = vmatpush2.msra.mxu0 0.0
    %1120 = vmatprep.subr.mxu0 0.0
    %1121 = vmatpush2.msra.mxu0 0.0
    %1122 = vmatprep.subr.mxu0 0.0
    %1123 = vmatpush2.msra.mxu0 0.0
    %1124 = vmatprep.subr.mxu0 0.0
    %1125 = vmatpush2.msra.mxu0 0.0
    %1126 = vmatprep.mubr.f32.mxu0 0.0
    %1127 = vmatmul.mubr.f32.gmra.mxu0 %v988
    %v1128 = vpop.f32.mrf.mxu0
    %v1129 = vadd.f32 0.0, %v1128
    %v1130 = vpop.f32.mrf.mxu0
    %v1131 = vadd.f32 0.0, %v1130
    %1132 = vdwg.mxu0
    %1133 = vmatprep.subr.mxu0 %v1061
    %1134 = vmatpush1.msra.mxu0 %v1060
    %1135 = vmatprep.subr.mxu0 %v1057
    %1136 = vmatpush1.msra.mxu0 %v1056
    %1137 = vmatprep.subr.mxu0 %v1053
    %1138 = vmatpush1.msra.mxu0 %v1052
    %1139 = vmatprep.subr.mxu0 %v1049
    %1140 = vmatpush1.msra.mxu0 %v1048
    %1141 = vmatprep.subr.mxu0 %v1045
    %1142 = vmatpush1.msra.mxu0 %v1044
    %1143 = vmatprep.subr.mxu0 %v1041
    %1144 = vmatpush1.msra.mxu0 %v1040
    %1145 = vmatprep.subr.mxu0 %v1037
    %1146 = vmatpush1.msra.mxu0 %v1036
    %1147 = vmatprep.subr.mxu0 %v1033
    %1148 = vmatpush1.msra.mxu0 %v1032
    %1149 = vmatprep.subr.mxu0 %v1029
    %1150 = vmatpush1.msra.mxu0 %v1028
    %1151 = vmatprep.subr.mxu0 %v1025
    %1152 = vmatpush1.msra.mxu0 %v1024
    %1153 = vmatprep.subr.mxu0 %v1021
    %1154 = vmatpush1.msra.mxu0 %v1020
    %1155 = vmatprep.subr.mxu0 %v1017
    %1156 = vmatpush1.msra.mxu0 %v1016
    %1157 = vmatprep.subr.mxu0 %v1013
    %1158 = vmatpush1.msra.mxu0 %v1012
    %1159 = vmatprep.subr.mxu0 %v1009
    %1160 = vmatpush1.msra.mxu0 %v1008
    %1161 = vmatprep.subr.mxu0 %v1005
    %1162 = vmatpush1.msra.mxu0 %v1004
    %1163 = vmatprep.subr.mxu0 %v1001
    %1164 = vmatpush1.msra.mxu0 %v1000
    %1165 = vmatprep.subr.mxu0 0.0
    %1166 = vmatpush2.msra.mxu0 0.0
    %1167 = vmatprep.subr.mxu0 0.0
    %1168 = vmatpush2.msra.mxu0 0.0
    %1169 = vmatprep.subr.mxu0 0.0
    %1170 = vmatpush2.msra.mxu0 0.0
    %1171 = vmatprep.subr.mxu0 0.0
    %1172 = vmatpush2.msra.mxu0 0.0
    %1173 = vmatprep.subr.mxu0 0.0
    %1174 = vmatpush2.msra.mxu0 0.0
    %1175 = vmatprep.subr.mxu0 0.0
    %1176 = vmatpush2.msra.mxu0 0.0
    %1177 = vmatprep.subr.mxu0 0.0
    %1178 = vmatpush2.msra.mxu0 0.0
    %1179 = vmatprep.subr.mxu0 0.0
    %1180 = vmatpush2.msra.mxu0 0.0
    %1181 = vmatprep.subr.mxu0 0.0
    %1182 = vmatpush2.msra.mxu0 0.0
    %1183 = vmatprep.subr.mxu0 0.0
    %1184 = vmatpush2.msra.mxu0 0.0
    %1185 = vmatprep.subr.mxu0 0.0
    %1186 = vmatpush2.msra.mxu0 0.0
    %1187 = vmatprep.subr.mxu0 0.0
    %1188 = vmatpush2.msra.mxu0 0.0
    %1189 = vmatprep.subr.mxu0 0.0
    %1190 = vmatpush2.msra.mxu0 0.0
    %1191 = vmatprep.subr.mxu0 0.0
    %1192 = vmatpush2.msra.mxu0 0.0
    %1193 = vmatprep.subr.mxu0 0.0
    %1194 = vmatpush2.msra.mxu0 0.0
    %1195 = vmatprep.subr.mxu0 0.0
    %1196 = vmatpush2.msra.mxu0 0.0
    %1197 = vmatprep.mubr.f32.mxu0 0.0
    %1198 = vmatmul.mubr.f32.gmra.mxu0 %v988
    %v1199 = vpop.f32.mrf.mxu0
    %v1200 = vadd.f32 0.0, %v1199
    %v1201 = vpop.f32.mrf.mxu0
    %v1202 = vadd.f32 0.0, %v1201
    %1203 = vdwg.mxu0
    %v1204 = vadd.f32 %v994, %v1129
    %v1205 = vadd.f32 %v995, %v1131
    %v1206 = vadd.f32 %v996, %v1200
    %v1207 = vadd.f32 %v997, %v1202
    %v1208 = vtanh.pop %v1204
    %v1209 = vxor.u32 %v1207, 2147483648
    %v1210 = vmul.f32 %v1209, 1.442695
    %v1211 = vpow.pop %v1210
    %v1212 = vadd.f32 %v1211, 1.0
    %v1213 = vrcp.pop %v1212
    %v1214 = vmul.f32 1.0, %v1213
    %v1215 = vadd.f32 %v1206, %v974
    %v1216 = vmax.f32 %v1215, %v1205
    %v1217 = vsub.f32 %v1205, %v1216
    %v1218 = vmul.f32 %v1217, 1.442695
    %v1219 = vpow.pop %v1218
    %v1220 = vsub.f32 %v1215, %v1216
    %v1221 = vmul.f32 %v1220, 1.442695
    %v1222 = vpow.pop %v1221
    %v1223 = vmul.f32 %v1222, %v983
    %v1224 = vmul.f32 %v1219, %v1208
    %v1225 = vadd.f32 %v1223, %v1224
    %v1226 = vmul.f32 %v1222, %v985
    %v1227 = vadd.f32 %v1226, %v1219
    %v1228 = vmul.f32 %v1214, %v1225
    %v1229 = vrcp.pop %v1227
    %v1230 = vmul.f32 %v1228, %v1229
    %s1231 = scalar_lea.vmem [#allocation11], 16
    %1232 = vst [vmem:[%s1231] sm:$0xff] %v1230
    %s1233 = smul.u32 3, 4
    %s1234 = smul.addr %s1233, 8
    %s1235 = scalar_lea.vmem [#allocation12], %s1234
    %v1236 = vld [vmem:[%s1235] sm:$0xff]
    %v1237 = vld [vmem:[%s1235 + $0x8] sm:$0xff]
    %v1238 = vld [vmem:[%s1235 + $0x10] sm:$0xff]
    %v1239 = vld [vmem:[%s1235 + $0x18] sm:$0xff]
    %v1240 = vld [vmem:[#allocation4] sm:$0xff]
    %v1241 = vld [vmem:[#allocation4 + $0x8] sm:$0xff]
    %v1242 = vld [vmem:[#allocation4 + $0x10] sm:$0xff]
    %v1243 = vld [vmem:[#allocation4 + $0x18] sm:$0xff]
    %v1244 = vld [vmem:[#allocation4 + $0x20] sm:$0xff]
    %v1245 = vld [vmem:[#allocation4 + $0x28] sm:$0xff]
    %v1246 = vld [vmem:[#allocation4 + $0x30] sm:$0xff]
    %v1247 = vld [vmem:[#allocation4 + $0x38] sm:$0xff]
    %v1248 = vld [vmem:[#allocation4 + $0x40] sm:$0xff]
    %v1249 = vld [vmem:[#allocation4 + $0x48] sm:$0xff]
    %v1250 = vld [vmem:[#allocation4 + $0x50] sm:$0xff]
    %v1251 = vld [vmem:[#allocation4 + $0x58] sm:$0xff]
    %v1252 = vld [vmem:[#allocation4 + $0x60] sm:$0xff]
    %v1253 = vld [vmem:[#allocation4 + $0x68] sm:$0xff]
    %v1254 = vld [vmem:[#allocation4 + $0x70] sm:$0xff]
    %v1255 = vld [vmem:[#allocation4 + $0x78] sm:$0xff]
    %v1256 = vld [vmem:[#allocation4 + $0x80] sm:$0xff]
    %v1257 = vld [vmem:[#allocation4 + $0x88] sm:$0xff]
    %v1258 = vld [vmem:[#allocation4 + $0x90] sm:$0xff]
    %v1259 = vld [vmem:[#allocation4 + $0x98] sm:$0xff]
    %v1260 = vld [vmem:[#allocation4 + $0xa0] sm:$0xff]
    %v1261 = vld [vmem:[#allocation4 + $0xa8] sm:$0xff]
    %v1262 = vld [vmem:[#allocation4 + $0xb0] sm:$0xff]
    %v1263 = vld [vmem:[#allocation4 + $0xb8] sm:$0xff]
    %v1264 = vld [vmem:[#allocation4 + $0xc0] sm:$0xff]
    %v1265 = vld [vmem:[#allocation4 + $0xc8] sm:$0xff]
    %v1266 = vld [vmem:[#allocation4 + $0xd0] sm:$0xff]
    %v1267 = vld [vmem:[#allocation4 + $0xd8] sm:$0xff]
    %v1268 = vld [vmem:[#allocation4 + $0xe0] sm:$0xff]
    %v1269 = vld [vmem:[#allocation4 + $0xe8] sm:$0xff]
    %v1270 = vld [vmem:[#allocation4 + $0xf0] sm:$0xff]
    %v1271 = vld [vmem:[#allocation4 + $0xf8] sm:$0xff]
    %v1272 = vld [vmem:[#allocation4 + $0x100] sm:$0xff]
    %v1273 = vld [vmem:[#allocation4 + $0x108] sm:$0xff]
    %v1274 = vld [vmem:[#allocation4 + $0x110] sm:$0xff]
    %v1275 = vld [vmem:[#allocation4 + $0x118] sm:$0xff]
    %v1276 = vld [vmem:[#allocation4 + $0x120] sm:$0xff]
    %v1277 = vld [vmem:[#allocation4 + $0x128] sm:$0xff]
    %v1278 = vld [vmem:[#allocation4 + $0x130] sm:$0xff]
    %v1279 = vld [vmem:[#allocation4 + $0x138] sm:$0xff]
    %v1280 = vld [vmem:[#allocation4 + $0x140] sm:$0xff]
    %v1281 = vld [vmem:[#allocation4 + $0x148] sm:$0xff]
    %v1282 = vld [vmem:[#allocation4 + $0x150] sm:$0xff]
    %v1283 = vld [vmem:[#allocation4 + $0x158] sm:$0xff]
    %v1284 = vld [vmem:[#allocation4 + $0x160] sm:$0xff]
    %v1285 = vld [vmem:[#allocation4 + $0x168] sm:$0xff]
    %v1286 = vld [vmem:[#allocation4 + $0x170] sm:$0xff]
    %v1287 = vld [vmem:[#allocation4 + $0x178] sm:$0xff]
    %v1288 = vld [vmem:[#allocation4 + $0x180] sm:$0xff]
    %v1289 = vld [vmem:[#allocation4 + $0x188] sm:$0xff]
    %v1290 = vld [vmem:[#allocation4 + $0x190] sm:$0xff]
    %v1291 = vld [vmem:[#allocation4 + $0x198] sm:$0xff]
    %v1292 = vld [vmem:[#allocation4 + $0x1a0] sm:$0xff]
    %v1293 = vld [vmem:[#allocation4 + $0x1a8] sm:$0xff]
    %v1294 = vld [vmem:[#allocation4 + $0x1b0] sm:$0xff]
    %v1295 = vld [vmem:[#allocation4 + $0x1b8] sm:$0xff]
    %v1296 = vld [vmem:[#allocation4 + $0x1c0] sm:$0xff]
    %v1297 = vld [vmem:[#allocation4 + $0x1c8] sm:$0xff]
    %v1298 = vld [vmem:[#allocation4 + $0x1d0] sm:$0xff]
    %v1299 = vld [vmem:[#allocation4 + $0x1d8] sm:$0xff]
    %v1300 = vld [vmem:[#allocation4 + $0x1e0] sm:$0xff]
    %v1301 = vld [vmem:[#allocation4 + $0x1e8] sm:$0xff]
    %v1302 = vld [vmem:[#allocation4 + $0x1f0] sm:$0xff]
    %v1303 = vld [vmem:[#allocation4 + $0x1f8] sm:$0xff]
    %1304 = vmatprep.subr.mxu0 %v1301
    %1305 = vmatpush1.msra.mxu0 %v1300
    %1306 = vmatprep.subr.mxu0 %v1297
    %1307 = vmatpush1.msra.mxu0 %v1296
    %1308 = vmatprep.subr.mxu0 %v1293
    %1309 = vmatpush1.msra.mxu0 %v1292
    %1310 = vmatprep.subr.mxu0 %v1289
    %1311 = vmatpush1.msra.mxu0 %v1288
    %1312 = vmatprep.subr.mxu0 %v1285
    %1313 = vmatpush1.msra.mxu0 %v1284
    %1314 = vmatprep.subr.mxu0 %v1281
    %1315 = vmatpush1.msra.mxu0 %v1280
    %1316 = vmatprep.subr.mxu0 %v1277
    %1317 = vmatpush1.msra.mxu0 %v1276
    %1318 = vmatprep.subr.mxu0 %v1273
    %1319 = vmatpush1.msra.mxu0 %v1272
    %1320 = vmatprep.subr.mxu0 %v1269
    %1321 = vmatpush1.msra.mxu0 %v1268
    %1322 = vmatprep.subr.mxu0 %v1265
    %1323 = vmatpush1.msra.mxu0 %v1264
    %1324 = vmatprep.subr.mxu0 %v1261
    %1325 = vmatpush1.msra.mxu0 %v1260
    %1326 = vmatprep.subr.mxu0 %v1257
    %1327 = vmatpush1.msra.mxu0 %v1256
    %1328 = vmatprep.subr.mxu0 %v1253
    %1329 = vmatpush1.msra.mxu0 %v1252
    %1330 = vmatprep.subr.mxu0 %v1249
    %1331 = vmatpush1.msra.mxu0 %v1248
    %1332 = vmatprep.subr.mxu0 %v1245
    %1333 = vmatpush1.msra.mxu0 %v1244
    %1334 = vmatprep.subr.mxu0 %v1241
    %1335 = vmatpush1.msra.mxu0 %v1240
    %1336 = vmatprep.subr.mxu0 0.0
    %1337 = vmatpush2.msra.mxu0 0.0
    %1338 = vmatprep.subr.mxu0 0.0
    %1339 = vmatpush2.msra.mxu0 0.0
    %1340 = vmatprep.subr.mxu0 0.0
    %1341 = vmatpush2.msra.mxu0 0.0
    %1342 = vmatprep.subr.mxu0 0.0
    %1343 = vmatpush2.msra.mxu0 0.0
    %1344 = vmatprep.subr.mxu0 0.0
    %1345 = vmatpush2.msra.mxu0 0.0
    %1346 = vmatprep.subr.mxu0 0.0
    %1347 = vmatpush2.msra.mxu0 0.0
    %1348 = vmatprep.subr.mxu0 0.0
    %1349 = vmatpush2.msra.mxu0 0.0
    %1350 = vmatprep.subr.mxu0 0.0
    %1351 = vmatpush2.msra.mxu0 0.0
    %1352 = vmatprep.subr.mxu0 0.0
    %1353 = vmatpush2.msra.mxu0 0.0
    %1354 = vmatprep.subr.mxu0 0.0
    %1355 = vmatpush2.msra.mxu0 0.0
    %1356 = vmatprep.subr.mxu0 0.0
    %1357 = vmatpush2.msra.mxu0 0.0
    %1358 = vmatprep.subr.mxu0 0.0
    %1359 = vmatpush2.msra.mxu0 0.0
    %1360 = vmatprep.subr.mxu0 0.0
    %1361 = vmatpush2.msra.mxu0 0.0
    %1362 = vmatprep.subr.mxu0 0.0
    %1363 = vmatpush2.msra.mxu0 0.0
    %1364 = vmatprep.subr.mxu0 0.0
    %1365 = vmatpush2.msra.mxu0 0.0
    %1366 = vmatprep.subr.mxu0 0.0
    %1367 = vmatpush2.msra.mxu0 0.0
    %1368 = vmatprep.mubr.f32.mxu0 0.0
    %1369 = vmatmul.mubr.f32.gmra.mxu0 %v1230
    %v1370 = vpop.f32.mrf.mxu0
    %v1371 = vadd.f32 0.0, %v1370
    %v1372 = vpop.f32.mrf.mxu0
    %v1373 = vadd.f32 0.0, %v1372
    %1374 = vdwg.mxu0
    %1375 = vmatprep.subr.mxu0 %v1303
    %1376 = vmatpush1.msra.mxu0 %v1302
    %1377 = vmatprep.subr.mxu0 %v1299
    %1378 = vmatpush1.msra.mxu0 %v1298
    %1379 = vmatprep.subr.mxu0 %v1295
    %1380 = vmatpush1.msra.mxu0 %v1294
    %1381 = vmatprep.subr.mxu0 %v1291
    %1382 = vmatpush1.msra.mxu0 %v1290
    %1383 = vmatprep.subr.mxu0 %v1287
    %1384 = vmatpush1.msra.mxu0 %v1286
    %1385 = vmatprep.subr.mxu0 %v1283
    %1386 = vmatpush1.msra.mxu0 %v1282
    %1387 = vmatprep.subr.mxu0 %v1279
    %1388 = vmatpush1.msra.mxu0 %v1278
    %1389 = vmatprep.subr.mxu0 %v1275
    %1390 = vmatpush1.msra.mxu0 %v1274
    %1391 = vmatprep.subr.mxu0 %v1271
    %1392 = vmatpush1.msra.mxu0 %v1270
    %1393 = vmatprep.subr.mxu0 %v1267
    %1394 = vmatpush1.msra.mxu0 %v1266
    %1395 = vmatprep.subr.mxu0 %v1263
    %1396 = vmatpush1.msra.mxu0 %v1262
    %1397 = vmatprep.subr.mxu0 %v1259
    %1398 = vmatpush1.msra.mxu0 %v1258
    %1399 = vmatprep.subr.mxu0 %v1255
    %1400 = vmatpush1.msra.mxu0 %v1254
    %1401 = vmatprep.subr.mxu0 %v1251
    %1402 = vmatpush1.msra.mxu0 %v1250
    %1403 = vmatprep.subr.mxu0 %v1247
    %1404 = vmatpush1.msra.mxu0 %v1246
    %1405 = vmatprep.subr.mxu0 %v1243
    %1406 = vmatpush1.msra.mxu0 %v1242
    %1407 = vmatprep.subr.mxu0 0.0
    %1408 = vmatpush2.msra.mxu0 0.0
    %1409 = vmatprep.subr.mxu0 0.0
    %1410 = vmatpush2.msra.mxu0 0.0
    %1411 = vmatprep.subr.mxu0 0.0
    %1412 = vmatpush2.msra.mxu0 0.0
    %1413 = vmatprep.subr.mxu0 0.0
    %1414 = vmatpush2.msra.mxu0 0.0
    %1415 = vmatprep.subr.mxu0 0.0
    %1416 = vmatpush2.msra.mxu0 0.0
    %1417 = vmatprep.subr.mxu0 0.0
    %1418 = vmatpush2.msra.mxu0 0.0
    %1419 = vmatprep.subr.mxu0 0.0
    %1420 = vmatpush2.msra.mxu0 0.0
    %1421 = vmatprep.subr.mxu0 0.0
    %1422 = vmatpush2.msra.mxu0 0.0
    %1423 = vmatprep.subr.mxu0 0.0
    %1424 = vmatpush2.msra.mxu0 0.0
    %1425 = vmatprep.subr.mxu0 0.0
    %1426 = vmatpush2.msra.mxu0 0.0
    %1427 = vmatprep.subr.mxu0 0.0
    %1428 = vmatpush2.msra.mxu0 0.0
    %1429 = vmatprep.subr.mxu0 0.0
    %1430 = vmatpush2.msra.mxu0 0.0
    %1431 = vmatprep.subr.mxu0 0.0
    %1432 = vmatpush2.msra.mxu0 0.0
    %1433 = vmatprep.subr.mxu0 0.0
    %1434 = vmatpush2.msra.mxu0 0.0
    %1435 = vmatprep.subr.mxu0 0.0
    %1436 = vmatpush2.msra.mxu0 0.0
    %1437 = vmatprep.subr.mxu0 0.0
    %1438 = vmatpush2.msra.mxu0 0.0
    %1439 = vmatprep.mubr.f32.mxu0 0.0
    %1440 = vmatmul.mubr.f32.gmra.mxu0 %v1230
    %v1441 = vpop.f32.mrf.mxu0
    %v1442 = vadd.f32 0.0, %v1441
    %v1443 = vpop.f32.mrf.mxu0
    %v1444 = vadd.f32 0.0, %v1443
    %1445 = vdwg.mxu0
    %v1446 = vadd.f32 %v1236, %v1371
    %v1447 = vadd.f32 %v1237, %v1373
    %v1448 = vadd.f32 %v1238, %v1442
    %v1449 = vadd.f32 %v1239, %v1444
    %v1450 = vtanh.pop %v1446
    %v1451 = vxor.u32 %v1449, 2147483648
    %v1452 = vmul.f32 %v1451, 1.442695
    %v1453 = vpow.pop %v1452
    %v1454 = vadd.f32 %v1453, 1.0
    %v1455 = vrcp.pop %v1454
    %v1456 = vmul.f32 1.0, %v1455
    %v1457 = vadd.f32 %v1448, %v1216
    %v1458 = vmax.f32 %v1457, %v1447
    %v1459 = vsub.f32 %v1447, %v1458
    %v1460 = vmul.f32 %v1459, 1.442695
    %v1461 = vpow.pop %v1460
    %v1462 = vsub.f32 %v1457, %v1458
    %v1463 = vmul.f32 %v1462, 1.442695
    %v1464 = vpow.pop %v1463
    %v1465 = vmul.f32 %v1464, %v1225
    %v1466 = vmul.f32 %v1461, %v1450
    %v1467 = vadd.f32 %v1465, %v1466
    %v1468 = vmul.f32 %v1464, %v1227
    %v1469 = vadd.f32 %v1468, %v1461
    %v1470 = vmul.f32 %v1456, %v1467
    %v1471 = vrcp.pop %v1469
    %v1472 = vmul.f32 %v1470, %v1471
    %s1473 = scalar_lea.vmem [#allocation11], 24
    %1474 = vst [vmem:[%s1473] sm:$0xff] %v1472
    %s1475 = smul.u32 4, 4
    %s1476 = smul.addr %s1475, 8
    %s1477 = scalar_lea.vmem [#allocation12], %s1476
    %v1478 = vld [vmem:[%s1477] sm:$0xff]
    %v1479 = vld [vmem:[%s1477 + $0x8] sm:$0xff]
    %v1480 = vld [vmem:[%s1477 + $0x10] sm:$0xff]
    %v1481 = vld [vmem:[%s1477 + $0x18] sm:$0xff]
    %v1482 = vld [vmem:[#allocation4] sm:$0xff]
    %v1483 = vld [vmem:[#allocation4 + $0x8] sm:$0xff]
    %v1484 = vld [vmem:[#allocation4 + $0x10] sm:$0xff]
    %v1485 = vld [vmem:[#allocation4 + $0x18] sm:$0xff]
    %v1486 = vld [vmem:[#allocation4 + $0x20] sm:$0xff]
    %v1487 = vld [vmem:[#allocation4 + $0x28] sm:$0xff]
    %v1488 = vld [vmem:[#allocation4 + $0x30] sm:$0xff]
    %v1489 = vld [vmem:[#allocation4 + $0x38] sm:$0xff]
    %v1490 = vld [vmem:[#allocation4 + $0x40] sm:$0xff]
    %v1491 = vld [vmem:[#allocation4 + $0x48] sm:$0xff]
    %v1492 = vld [vmem:[#allocation4 + $0x50] sm:$0xff]
    %v1493 = vld [vmem:[#allocation4 + $0x58] sm:$0xff]
    %v1494 = vld [vmem:[#allocation4 + $0x60] sm:$0xff]
    %v1495 = vld [vmem:[#allocation4 + $0x68] sm:$0xff]
    %v1496 = vld [vmem:[#allocation4 + $0x70] sm:$0xff]
    %v1497 = vld [vmem:[#allocation4 + $0x78] sm:$0xff]
    %v1498 = vld [vmem:[#allocation4 + $0x80] sm:$0xff]
    %v1499 = vld [vmem:[#allocation4 + $0x88] sm:$0xff]
    %v1500 = vld [vmem:[#allocation4 + $0x90] sm:$0xff]
    %v1501 = vld [vmem:[#allocation4 + $0x98] sm:$0xff]
    %v1502 = vld [vmem:[#allocation4 + $0xa0] sm:$0xff]
    %v1503 = vld [vmem:[#allocation4 + $0xa8] sm:$0xff]
    %v1504 = vld [vmem:[#allocation4 + $0xb0] sm:$0xff]
    %v1505 = vld [vmem:[#allocation4 + $0xb8] sm:$0xff]
    %v1506 = vld [vmem:[#allocation4 + $0xc0] sm:$0xff]
    %v1507 = vld [vmem:[#allocation4 + $0xc8] sm:$0xff]
    %v1508 = vld [vmem:[#allocation4 + $0xd0] sm:$0xff]
    %v1509 = vld [vmem:[#allocation4 + $0xd8] sm:$0xff]
    %v1510 = vld [vmem:[#allocation4 + $0xe0] sm:$0xff]
    %v1511 = vld [vmem:[#allocation4 + $0xe8] sm:$0xff]
    %v1512 = vld [vmem:[#allocation4 + $0xf0] sm:$0xff]
    %v1513 = vld [vmem:[#allocation4 + $0xf8] sm:$0xff]
    %v1514 = vld [vmem:[#allocation4 + $0x100] sm:$0xff]
    %v1515 = vld [vmem:[#allocation4 + $0x108] sm:$0xff]
    %v1516 = vld [vmem:[#allocation4 + $0x110] sm:$0xff]
    %v1517 = vld [vmem:[#allocation4 + $0x118] sm:$0xff]
    %v1518 = vld [vmem:[#allocation4 + $0x120] sm:$0xff]
    %v1519 = vld [vmem:[#allocation4 + $0x128] sm:$0xff]
    %v1520 = vld [vmem:[#allocation4 + $0x130] sm:$0xff]
    %v1521 = vld [vmem:[#allocation4 + $0x138] sm:$0xff]
    %v1522 = vld [vmem:[#allocation4 + $0x140] sm:$0xff]
    %v1523 = vld [vmem:[#allocation4 + $0x148] sm:$0xff]
    %v1524 = vld [vmem:[#allocation4 + $0x150] sm:$0xff]
    %v1525 = vld [vmem:[#allocation4 + $0x158] sm:$0xff]
    %v1526 = vld [vmem:[#allocation4 + $0x160] sm:$0xff]
    %v1527 = vld [vmem:[#allocation4 + $0x168] sm:$0xff]
    %v1528 = vld [vmem:[#allocation4 + $0x170] sm:$0xff]
    %v1529 = vld [vmem:[#allocation4 + $0x178] sm:$0xff]
    %v1530 = vld [vmem:[#allocation4 + $0x180] sm:$0xff]
    %v1531 = vld [vmem:[#allocation4 + $0x188] sm:$0xff]
    %v1532 = vld [vmem:[#allocation4 + $0x190] sm:$0xff]
    %v1533 = vld [vmem:[#allocation4 + $0x198] sm:$0xff]
    %v1534 = vld [vmem:[#allocation4 + $0x1a0] sm:$0xff]
    %v1535 = vld [vmem:[#allocation4 + $0x1a8] sm:$0xff]
    %v1536 = vld [vmem:[#allocation4 + $0x1b0] sm:$0xff]
    %v1537 = vld [vmem:[#allocation4 + $0x1b8] sm:$0xff]
    %v1538 = vld [vmem:[#allocation4 + $0x1c0] sm:$0xff]
    %v1539 = vld [vmem:[#allocation4 + $0x1c8] sm:$0xff]
    %v1540 = vld [vmem:[#allocation4 + $0x1d0] sm:$0xff]
    %v1541 = vld [vmem:[#allocation4 + $0x1d8] sm:$0xff]
    %v1542 = vld [vmem:[#allocation4 + $0x1e0] sm:$0xff]
    %v1543 = vld [vmem:[#allocation4 + $0x1e8] sm:$0xff]
    %v1544 = vld [vmem:[#allocation4 + $0x1f0] sm:$0xff]
    %v1545 = vld [vmem:[#allocation4 + $0x1f8] sm:$0xff]
    %1546 = vmatprep.subr.mxu0 %v1543
    %1547 = vmatpush1.msra.mxu0 %v1542
    %1548 = vmatprep.subr.mxu0 %v1539
    %1549 = vmatpush1.msra.mxu0 %v1538
    %1550 = vmatprep.subr.mxu0 %v1535
    %1551 = vmatpush1.msra.mxu0 %v1534
    %1552 = vmatprep.subr.mxu0 %v1531
    %1553 = vmatpush1.msra.mxu0 %v1530
    %1554 = vmatprep.subr.mxu0 %v1527
    %1555 = vmatpush1.msra.mxu0 %v1526
    %1556 = vmatprep.subr.mxu0 %v1523
    %1557 = vmatpush1.msra.mxu0 %v1522
    %1558 = vmatprep.subr.mxu0 %v1519
    %1559 = vmatpush1.msra.mxu0 %v1518
    %1560 = vmatprep.subr.mxu0 %v1515
    %1561 = vmatpush1.msra.mxu0 %v1514
    %1562 = vmatprep.subr.mxu0 %v1511
    %1563 = vmatpush1.msra.mxu0 %v1510
    %1564 = vmatprep.subr.mxu0 %v1507
    %1565 = vmatpush1.msra.mxu0 %v1506
    %1566 = vmatprep.subr.mxu0 %v1503
    %1567 = vmatpush1.msra.mxu0 %v1502
    %1568 = vmatprep.subr.mxu0 %v1499
    %1569 = vmatpush1.msra.mxu0 %v1498
    %1570 = vmatprep.subr.mxu0 %v1495
    %1571 = vmatpush1.msra.mxu0 %v1494
    %1572 = vmatprep.subr.mxu0 %v1491
    %1573 = vmatpush1.msra.mxu0 %v1490
    %1574 = vmatprep.subr.mxu0 %v1487
    %1575 = vmatpush1.msra.mxu0 %v1486
    %1576 = vmatprep.subr.mxu0 %v1483
    %1577 = vmatpush1.msra.mxu0 %v1482
    %1578 = vmatprep.subr.mxu0 0.0
    %1579 = vmatpush2.msra.mxu0 0.0
    %1580 = vmatprep.subr.mxu0 0.0
    %1581 = vmatpush2.msra.mxu0 0.0
    %1582 = vmatprep.subr.mxu0 0.0
    %1583 = vmatpush2.msra.mxu0 0.0
    %1584 = vmatprep.subr.mxu0 0.0
    %1585 = vmatpush2.msra.mxu0 0.0
    %1586 = vmatprep.subr.mxu0 0.0
    %1587 = vmatpush2.msra.mxu0 0.0
    %1588 = vmatprep.subr.mxu0 0.0
    %1589 = vmatpush2.msra.mxu0 0.0
    %1590 = vmatprep.subr.mxu0 0.0
    %1591 = vmatpush2.msra.mxu0 0.0
    %1592 = vmatprep.subr.mxu0 0.0
    %1593 = vmatpush2.msra.mxu0 0.0
    %1594 = vmatprep.subr.mxu0 0.0
    %1595 = vmatpush2.msra.mxu0 0.0
    %1596 = vmatprep.subr.mxu0 0.0
    %1597 = vmatpush2.msra.mxu0 0.0
    %1598 = vmatprep.subr.mxu0 0.0
    %1599 = vmatpush2.msra.mxu0 0.0
    %1600 = vmatprep.subr.mxu0 0.0
    %1601 = vmatpush2.msra.mxu0 0.0
    %1602 = vmatprep.subr.mxu0 0.0
    %1603 = vmatpush2.msra.mxu0 0.0
    %1604 = vmatprep.subr.mxu0 0.0
    %1605 = vmatpush2.msra.mxu0 0.0
    %1606 = vmatprep.subr.mxu0 0.0
    %1607 = vmatpush2.msra.mxu0 0.0
    %1608 = vmatprep.subr.mxu0 0.0
    %1609 = vmatpush2.msra.mxu0 0.0
    %1610 = vmatprep.mubr.f32.mxu0 0.0
    %1611 = vmatmul.mubr.f32.gmra.mxu0 %v1472
    %v1612 = vpop.f32.mrf.mxu0
    %v1613 = vadd.f32 0.0, %v1612
    %v1614 = vpop.f32.mrf.mxu0
    %v1615 = vadd.f32 0.0, %v1614
    %1616 = vdwg.mxu0
    %1617 = vmatprep.subr.mxu0 %v1545
    %1618 = vmatpush1.msra.mxu0 %v1544
    %1619 = vmatprep.subr.mxu0 %v1541
    %1620 = vmatpush1.msra.mxu0 %v1540
    %1621 = vmatprep.subr.mxu0 %v1537
    %1622 = vmatpush1.msra.mxu0 %v1536
    %1623 = vmatprep.subr.mxu0 %v1533
    %1624 = vmatpush1.msra.mxu0 %v1532
    %1625 = vmatprep.subr.mxu0 %v1529
    %1626 = vmatpush1.msra.mxu0 %v1528
    %1627 = vmatprep.subr.mxu0 %v1525
    %1628 = vmatpush1.msra.mxu0 %v1524
    %1629 = vmatprep.subr.mxu0 %v1521
    %1630 = vmatpush1.msra.mxu0 %v1520
    %1631 = vmatprep.subr.mxu0 %v1517
    %1632 = vmatpush1.msra.mxu0 %v1516
    %1633 = vmatprep.subr.mxu0 %v1513
    %1634 = vmatpush1.msra.mxu0 %v1512
    %1635 = vmatprep.subr.mxu0 %v1509
    %1636 = vmatpush1.msra.mxu0 %v1508
    %1637 = vmatprep.subr.mxu0 %v1505
    %1638 = vmatpush1.msra.mxu0 %v1504
    %1639 = vmatprep.subr.mxu0 %v1501
    %1640 = vmatpush1.msra.mxu0 %v1500
    %1641 = vmatprep.subr.mxu0 %v1497
    %1642 = vmatpush1.msra.mxu0 %v1496
    %1643 = vmatprep.subr.mxu0 %v1493
    %1644 = vmatpush1.msra.mxu0 %v1492
    %1645 = vmatprep.subr.mxu0 %v1489
    %1646 = vmatpush1.msra.mxu0 %v1488
    %1647 = vmatprep.subr.mxu0 %v1485
    %1648 = vmatpush1.msra.mxu0 %v1484
    %1649 = vmatprep.subr.mxu0 0.0
    %1650 = vmatpush2.msra.mxu0 0.0
    %1651 = vmatprep.subr.mxu0 0.0
    %1652 = vmatpush2.msra.mxu0 0.0
    %1653 = vmatprep.subr.mxu0 0.0
    %1654 = vmatpush2.msra.mxu0 0.0
    %1655 = vmatprep.subr.mxu0 0.0
    %1656 = vmatpush2.msra.mxu0 0.0
    %1657 = vmatprep.subr.mxu0 0.0
    %1658 = vmatpush2.msra.mxu0 0.0
    %1659 = vmatprep.subr.mxu0 0.0
    %1660 = vmatpush2.msra.mxu0 0.0
    %1661 = vmatprep.subr.mxu0 0.0
    %1662 = vmatpush2.msra.mxu0 0.0
    %1663 = vmatprep.subr.mxu0 0.0
    %1664 = vmatpush2.msra.mxu0 0.0
    %1665 = vmatprep.subr.mxu0 0.0
    %1666 = vmatpush2.msra.mxu0 0.0
    %1667 = vmatprep.subr.mxu0 0.0
    %1668 = vmatpush2.msra.mxu0 0.0
    %1669 = vmatprep.subr.mxu0 0.0
    %1670 = vmatpush2.msra.mxu0 0.0
    %1671 = vmatprep.subr.mxu0 0.0
    %1672 = vmatpush2.msra.mxu0 0.0
    %1673 = vmatprep.subr.mxu0 0.0
    %1674 = vmatpush2.msra.mxu0 0.0
    %1675 = vmatprep.subr.mxu0 0.0
    %1676 = vmatpush2.msra.mxu0 0.0
    %1677 = vmatprep.subr.mxu0 0.0
    %1678 = vmatpush2.msra.mxu0 0.0
    %1679 = vmatprep.subr.mxu0 0.0
    %1680 = vmatpush2.msra.mxu0 0.0
    %1681 = vmatprep.mubr.f32.mxu0 0.0
    %1682 = vmatmul.mubr.f32.gmra.mxu0 %v1472
    %v1683 = vpop.f32.mrf.mxu0
    %v1684 = vadd.f32 0.0, %v1683
    %v1685 = vpop.f32.mrf.mxu0
    %v1686 = vadd.f32 0.0, %v1685
    %1687 = vdwg.mxu0
    %v1688 = vadd.f32 %v1478, %v1613
    %v1689 = vadd.f32 %v1479, %v1615
    %v1690 = vadd.f32 %v1480, %v1684
    %v1691 = vadd.f32 %v1481, %v1686
    %v1692 = vtanh.pop %v1688
    %v1693 = vxor.u32 %v1691, 2147483648
    %v1694 = vmul.f32 %v1693, 1.442695
    %v1695 = vpow.pop %v1694
    %v1696 = vadd.f32 %v1695, 1.0
    %v1697 = vrcp.pop %v1696
    %v1698 = vmul.f32 1.0, %v1697
    %v1699 = vadd.f32 %v1690, %v1458
    %v1700 = vmax.f32 %v1699, %v1689
    %v1701 = vsub.f32 %v1689, %v1700
    %v1702 = vmul.f32 %v1701, 1.442695
    %v1703 = vpow.pop %v1702
    %v1704 = vsub.f32 %v1699, %v1700
    %v1705 = vmul.f32 %v1704, 1.442695
    %v1706 = vpow.pop %v1705
    %v1707 = vmul.f32 %v1706, %v1467
    %v1708 = vmul.f32 %v1703, %v1692
    %v1709 = vadd.f32 %v1707, %v1708
    %v1710 = vmul.f32 %v1706, %v1469
    %v1711 = vadd.f32 %v1710, %v1703
    %v1712 = vmul.f32 %v1698, %v1709
    %v1713 = vrcp.pop %v1711
    %v1714 = vmul.f32 %v1712, %v1713
    %s1715 = scalar_lea.vmem [#allocation11], 32
    %1716 = vst [vmem:[%s1715] sm:$0xff] %v1714
    %s1717 = smul.u32 5, 4
    %s1718 = smul.addr %s1717, 8
    %s1719 = scalar_lea.vmem [#allocation12], %s1718
    %v1720 = vld [vmem:[%s1719] sm:$0xff]
    %v1721 = vld [vmem:[%s1719 + $0x8] sm:$0xff]
    %v1722 = vld [vmem:[%s1719 + $0x10] sm:$0xff]
    %v1723 = vld [vmem:[%s1719 + $0x18] sm:$0xff]
    %v1724 = vld [vmem:[#allocation4] sm:$0xff]
    %v1725 = vld [vmem:[#allocation4 + $0x8] sm:$0xff]
    %v1726 = vld [vmem:[#allocation4 + $0x10] sm:$0xff]
    %v1727 = vld [vmem:[#allocation4 + $0x18] sm:$0xff]
    %v1728 = vld [vmem:[#allocation4 + $0x20] sm:$0xff]
    %v1729 = vld [vmem:[#allocation4 + $0x28] sm:$0xff]
    %v1730 = vld [vmem:[#allocation4 + $0x30] sm:$0xff]
    %v1731 = vld [vmem:[#allocation4 + $0x38] sm:$0xff]
    %v1732 = vld [vmem:[#allocation4 + $0x40] sm:$0xff]
    %v1733 = vld [vmem:[#allocation4 + $0x48] sm:$0xff]
    %v1734 = vld [vmem:[#allocation4 + $0x50] sm:$0xff]
    %v1735 = vld [vmem:[#allocation4 + $0x58] sm:$0xff]
    %v1736 = vld [vmem:[#allocation4 + $0x60] sm:$0xff]
    %v1737 = vld [vmem:[#allocation4 + $0x68] sm:$0xff]
    %v1738 = vld [vmem:[#allocation4 + $0x70] sm:$0xff]
    %v1739 = vld [vmem:[#allocation4 + $0x78] sm:$0xff]
    %v1740 = vld [vmem:[#allocation4 + $0x80] sm:$0xff]
    %v1741 = vld [vmem:[#allocation4 + $0x88] sm:$0xff]
    %v1742 = vld [vmem:[#allocation4 + $0x90] sm:$0xff]
    %v1743 = vld [vmem:[#allocation4 + $0x98] sm:$0xff]
    %v1744 = vld [vmem:[#allocation4 + $0xa0] sm:$0xff]
    %v1745 = vld [vmem:[#allocation4 + $0xa8] sm:$0xff]
    %v1746 = vld [vmem:[#allocation4 + $0xb0] sm:$0xff]
    %v1747 = vld [vmem:[#allocation4 + $0xb8] sm:$0xff]
    %v1748 = vld [vmem:[#allocation4 + $0xc0] sm:$0xff]
    %v1749 = vld [vmem:[#allocation4 + $0xc8] sm:$0xff]
    %v1750 = vld [vmem:[#allocation4 + $0xd0] sm:$0xff]
    %v1751 = vld [vmem:[#allocation4 + $0xd8] sm:$0xff]
    %v1752 = vld [vmem:[#allocation4 + $0xe0] sm:$0xff]
    %v1753 = vld [vmem:[#allocation4 + $0xe8] sm:$0xff]
    %v1754 = vld [vmem:[#allocation4 + $0xf0] sm:$0xff]
    %v1755 = vld [vmem:[#allocation4 + $0xf8] sm:$0xff]
    %v1756 = vld [vmem:[#allocation4 + $0x100] sm:$0xff]
    %v1757 = vld [vmem:[#allocation4 + $0x108] sm:$0xff]
    %v1758 = vld [vmem:[#allocation4 + $0x110] sm:$0xff]
    %v1759 = vld [vmem:[#allocation4 + $0x118] sm:$0xff]
    %v1760 = vld [vmem:[#allocation4 + $0x120] sm:$0xff]
    %v1761 = vld [vmem:[#allocation4 + $0x128] sm:$0xff]
    %v1762 = vld [vmem:[#allocation4 + $0x130] sm:$0xff]
    %v1763 = vld [vmem:[#allocation4 + $0x138] sm:$0xff]
    %v1764 = vld [vmem:[#allocation4 + $0x140] sm:$0xff]
    %v1765 = vld [vmem:[#allocation4 + $0x148] sm:$0xff]
    %v1766 = vld [vmem:[#allocation4 + $0x150] sm:$0xff]
    %v1767 = vld [vmem:[#allocation4 + $0x158] sm:$0xff]
    %v1768 = vld [vmem:[#allocation4 + $0x160] sm:$0xff]
    %v1769 = vld [vmem:[#allocation4 + $0x168] sm:$0xff]
    %v1770 = vld [vmem:[#allocation4 + $0x170] sm:$0xff]
    %v1771 = vld [vmem:[#allocation4 + $0x178] sm:$0xff]
    %v1772 = vld [vmem:[#allocation4 + $0x180] sm:$0xff]
    %v1773 = vld [vmem:[#allocation4 + $0x188] sm:$0xff]
    %v1774 = vld [vmem:[#allocation4 + $0x190] sm:$0xff]
    %v1775 = vld [vmem:[#allocation4 + $0x198] sm:$0xff]
    %v1776 = vld [vmem:[#allocation4 + $0x1a0] sm:$0xff]
    %v1777 = vld [vmem:[#allocation4 + $0x1a8] sm:$0xff]
    %v1778 = vld [vmem:[#allocation4 + $0x1b0] sm:$0xff]
    %v1779 = vld [vmem:[#allocation4 + $0x1b8] sm:$0xff]
    %v1780 = vld [vmem:[#allocation4 + $0x1c0] sm:$0xff]
    %v1781 = vld [vmem:[#allocation4 + $0x1c8] sm:$0xff]
    %v1782 = vld [vmem:[#allocation4 + $0x1d0] sm:$0xff]
    %v1783 = vld [vmem:[#allocation4 + $0x1d8] sm:$0xff]
    %v1784 = vld [vmem:[#allocation4 + $0x1e0] sm:$0xff]
    %v1785 = vld [vmem:[#allocation4 + $0x1e8] sm:$0xff]
    %v1786 = vld [vmem:[#allocation4 + $0x1f0] sm:$0xff]
    %v1787 = vld [vmem:[#allocation4 + $0x1f8] sm:$0xff]
    %1788 = vmatprep.subr.mxu0 %v1785
    %1789 = vmatpush1.msra.mxu0 %v1784
    %1790 = vmatprep.subr.mxu0 %v1781
    %1791 = vmatpush1.msra.mxu0 %v1780
    %1792 = vmatprep.subr.mxu0 %v1777
    %1793 = vmatpush1.msra.mxu0 %v1776
    %1794 = vmatprep.subr.mxu0 %v1773
    %1795 = vmatpush1.msra.mxu0 %v1772
    %1796 = vmatprep.subr.mxu0 %v1769
    %1797 = vmatpush1.msra.mxu0 %v1768
    %1798 = vmatprep.subr.mxu0 %v1765
    %1799 = vmatpush1.msra.mxu0 %v1764
    %1800 = vmatprep.subr.mxu0 %v1761
    %1801 = vmatpush1.msra.mxu0 %v1760
    %1802 = vmatprep.subr.mxu0 %v1757
    %1803 = vmatpush1.msra.mxu0 %v1756
    %1804 = vmatprep.subr.mxu0 %v1753
    %1805 = vmatpush1.msra.mxu0 %v1752
    %1806 = vmatprep.subr.mxu0 %v1749
    %1807 = vmatpush1.msra.mxu0 %v1748
    %1808 = vmatprep.subr.mxu0 %v1745
    %1809 = vmatpush1.msra.mxu0 %v1744
    %1810 = vmatprep.subr.mxu0 %v1741
    %1811 = vmatpush1.msra.mxu0 %v1740
    %1812 = vmatprep.subr.mxu0 %v1737
    %1813 = vmatpush1.msra.mxu0 %v1736
    %1814 = vmatprep.subr.mxu0 %v1733
    %1815 = vmatpush1.msra.mxu0 %v1732
    %1816 = vmatprep.subr.mxu0 %v1729
    %1817 = vmatpush1.msra.mxu0 %v1728
    %1818 = vmatprep.subr.mxu0 %v1725
    %1819 = vmatpush1.msra.mxu0 %v1724
    %1820 = vmatprep.subr.mxu0 0.0
    %1821 = vmatpush2.msra.mxu0 0.0
    %1822 = vmatprep.subr.mxu0 0.0
    %1823 = vmatpush2.msra.mxu0 0.0
    %1824 = vmatprep.subr.mxu0 0.0
    %1825 = vmatpush2.msra.mxu0 0.0
    %1826 = vmatprep.subr.mxu0 0.0
    %1827 = vmatpush2.msra.mxu0 0.0
    %1828 = vmatprep.subr.mxu0 0.0
    %1829 = vmatpush2.msra.mxu0 0.0
    %1830 = vmatprep.subr.mxu0 0.0
    %1831 = vmatpush2.msra.mxu0 0.0
    %1832 = vmatprep.subr.mxu0 0.0
    %1833 = vmatpush2.msra.mxu0 0.0
    %1834 = vmatprep.subr.mxu0 0.0
    %1835 = vmatpush2.msra.mxu0 0.0
    %1836 = vmatprep.subr.mxu0 0.0
    %1837 = vmatpush2.msra.mxu0 0.0
    %1838 = vmatprep.subr.mxu0 0.0
    %1839 = vmatpush2.msra.mxu0 0.0
    %1840 = vmatprep.subr.mxu0 0.0
    %1841 = vmatpush2.msra.mxu0 0.0
    %1842 = vmatprep.subr.mxu0 0.0
    %1843 = vmatpush2.msra.mxu0 0.0
    %1844 = vmatprep.subr.mxu0 0.0
    %1845 = vmatpush2.msra.mxu0 0.0
    %1846 = vmatprep.subr.mxu0 0.0
    %1847 = vmatpush2.msra.mxu0 0.0
    %1848 = vmatprep.subr.mxu0 0.0
    %1849 = vmatpush2.msra.mxu0 0.0
    %1850 = vmatprep.subr.mxu0 0.0
    %1851 = vmatpush2.msra.mxu0 0.0
    %1852 = vmatprep.mubr.f32.mxu0 0.0
    %1853 = vmatmul.mubr.f32.gmra.mxu0 %v1714
    %v1854 = vpop.f32.mrf.mxu0
    %v1855 = vadd.f32 0.0, %v1854
    %v1856 = vpop.f32.mrf.mxu0
    %v1857 = vadd.f32 0.0, %v1856
    %1858 = vdwg.mxu0
    %1859 = vmatprep.subr.mxu0 %v1787
    %1860 = vmatpush1.msra.mxu0 %v1786
    %1861 = vmatprep.subr.mxu0 %v1783
    %1862 = vmatpush1.msra.mxu0 %v1782
    %1863 = vmatprep.subr.mxu0 %v1779
    %1864 = vmatpush1.msra.mxu0 %v1778
    %1865 = vmatprep.subr.mxu0 %v1775
    %1866 = vmatpush1.msra.mxu0 %v1774
    %1867 = vmatprep.subr.mxu0 %v1771
    %1868 = vmatpush1.msra.mxu0 %v1770
    %1869 = vmatprep.subr.mxu0 %v1767
    %1870 = vmatpush1.msra.mxu0 %v1766
    %1871 = vmatprep.subr.mxu0 %v1763
    %1872 = vmatpush1.msra.mxu0 %v1762
    %1873 = vmatprep.subr.mxu0 %v1759
    %1874 = vmatpush1.msra.mxu0 %v1758
    %1875 = vmatprep.subr.mxu0 %v1755
    %1876 = vmatpush1.msra.mxu0 %v1754
    %1877 = vmatprep.subr.mxu0 %v1751
    %1878 = vmatpush1.msra.mxu0 %v1750
    %1879 = vmatprep.subr.mxu0 %v1747
    %1880 = vmatpush1.msra.mxu0 %v1746
    %1881 = vmatprep.subr.mxu0 %v1743
    %1882 = vmatpush1.msra.mxu0 %v1742
    %1883 = vmatprep.subr.mxu0 %v1739
    %1884 = vmatpush1.msra.mxu0 %v1738
    %1885 = vmatprep.subr.mxu0 %v1735
    %1886 = vmatpush1.msra.mxu0 %v1734
    %1887 = vmatprep.subr.mxu0 %v1731
    %1888 = vmatpush1.msra.mxu0 %v1730
    %1889 = vmatprep.subr.mxu0 %v1727
    %1890 = vmatpush1.msra.mxu0 %v1726
    %1891 = vmatprep.subr.mxu0 0.0
    %1892 = vmatpush2.msra.mxu0 0.0
    %1893 = vmatprep.subr.mxu0 0.0
    %1894 = vmatpush2.msra.mxu0 0.0
    %1895 = vmatprep.subr.mxu0 0.0
    %1896 = vmatpush2.msra.mxu0 0.0
    %1897 = vmatprep.subr.mxu0 0.0
    %1898 = vmatpush2.msra.mxu0 0.0
    %1899 = vmatprep.subr.mxu0 0.0
    %1900 = vmatpush2.msra.mxu0 0.0
    %1901 = vmatprep.subr.mxu0 0.0
    %1902 = vmatpush2.msra.mxu0 0.0
    %1903 = vmatprep.subr.mxu0 0.0
    %1904 = vmatpush2.msra.mxu0 0.0
    %1905 = vmatprep.subr.mxu0 0.0
    %1906 = vmatpush2.msra.mxu0 0.0
    %1907 = vmatprep.subr.mxu0 0.0
    %1908 = vmatpush2.msra.mxu0 0.0
    %1909 = vmatprep.subr.mxu0 0.0
    %1910 = vmatpush2.msra.mxu0 0.0
    %1911 = vmatprep.subr.mxu0 0.0
    %1912 = vmatpush2.msra.mxu0 0.0
    %1913 = vmatprep.subr.mxu0 0.0
    %1914 = vmatpush2.msra.mxu0 0.0
    %1915 = vmatprep.subr.mxu0 0.0
    %1916 = vmatpush2.msra.mxu0 0.0
    %1917 = vmatprep.subr.mxu0 0.0
    %1918 = vmatpush2.msra.mxu0 0.0
    %1919 = vmatprep.subr.mxu0 0.0
    %1920 = vmatpush2.msra.mxu0 0.0
    %1921 = vmatprep.subr.mxu0 0.0
    %1922 = vmatpush2.msra.mxu0 0.0
    %1923 = vmatprep.mubr.f32.mxu0 0.0
    %1924 = vmatmul.mubr.f32.gmra.mxu0 %v1714
    %v1925 = vpop.f32.mrf.mxu0
    %v1926 = vadd.f32 0.0, %v1925
    %v1927 = vpop.f32.mrf.mxu0
    %v1928 = vadd.f32 0.0, %v1927
    %1929 = vdwg.mxu0
    %v1930 = vadd.f32 %v1720, %v1855
    %v1931 = vadd.f32 %v1721, %v1857
    %v1932 = vadd.f32 %v1722, %v1926
    %v1933 = vadd.f32 %v1723, %v1928
    %v1934 = vtanh.pop %v1930
    %v1935 = vxor.u32 %v1933, 2147483648
    %v1936 = vmul.f32 %v1935, 1.442695
    %v1937 = vpow.pop %v1936
    %v1938 = vadd.f32 %v1937, 1.0
    %v1939 = vrcp.pop %v1938
    %v1940 = vmul.f32 1.0, %v1939
    %v1941 = vadd.f32 %v1932, %v1700
    %v1942 = vmax.f32 %v1941, %v1931
    %v1943 = vsub.f32 %v1931, %v1942
    %v1944 = vmul.f32 %v1943, 1.442695
    %v1945 = vpow.pop %v1944
    %v1946 = vsub.f32 %v1941, %v1942
    %v1947 = vmul.f32 %v1946, 1.442695
    %v1948 = vpow.pop %v1947
    %v1949 = vmul.f32 %v1948, %v1709
    %v1950 = vmul.f32 %v1945, %v1934
    %v1951 = vadd.f32 %v1949, %v1950
    %v1952 = vmul.f32 %v1948, %v1711
    %v1953 = vadd.f32 %v1952, %v1945
    %v1954 = vmul.f32 %v1940, %v1951
    %v1955 = vrcp.pop %v1953
    %v1956 = vmul.f32 %v1954, %v1955
    %s1957 = scalar_lea.vmem [#allocation11], 40
    %1958 = vst [vmem:[%s1957] sm:$0xff] %v1956
    %s1959 = smul.u32 6, 4
    %s1960 = smul.addr %s1959, 8
    %s1961 = scalar_lea.vmem [#allocation12], %s1960
    %v1962 = vld [vmem:[%s1961] sm:$0xff]
    %v1963 = vld [vmem:[%s1961 + $0x8] sm:$0xff]
    %v1964 = vld [vmem:[%s1961 + $0x10] sm:$0xff]
    %v1965 = vld [vmem:[%s1961 + $0x18] sm:$0xff]
    %v1966 = vld [vmem:[#allocation4] sm:$0xff]
    %v1967 = vld [vmem:[#allocation4 + $0x8] sm:$0xff]
    %v1968 = vld [vmem:[#allocation4 + $0x10] sm:$0xff]
    %v1969 = vld [vmem:[#allocation4 + $0x18] sm:$0xff]
    %v1970 = vld [vmem:[#allocation4 + $0x20] sm:$0xff]
    %v1971 = vld [vmem:[#allocation4 + $0x28] sm:$0xff]
    %v1972 = vld [vmem:[#allocation4 + $0x30] sm:$0xff]
    %v1973 = vld [vmem:[#allocation4 + $0x38] sm:$0xff]
    %v1974 = vld [vmem:[#allocation4 + $0x40] sm:$0xff]
    %v1975 = vld [vmem:[#allocation4 + $0x48] sm:$0xff]
    %v1976 = vld [vmem:[#allocation4 + $0x50] sm:$0xff]
    %v1977 = vld [vmem:[#allocation4 + $0x58] sm:$0xff]
    %v1978 = vld [vmem:[#allocation4 + $0x60] sm:$0xff]
    %v1979 = vld [vmem:[#allocation4 + $0x68] sm:$0xff]
    %v1980 = vld [vmem:[#allocation4 + $0x70] sm:$0xff]
    %v1981 = vld [vmem:[#allocation4 + $0x78] sm:$0xff]
    %v1982 = vld [vmem:[#allocation4 + $0x80] sm:$0xff]
    %v1983 = vld [vmem:[#allocation4 + $0x88] sm:$0xff]
    %v1984 = vld [vmem:[#allocation4 + $0x90] sm:$0xff]
    %v1985 = vld [vmem:[#allocation4 + $0x98] sm:$0xff]
    %v1986 = vld [vmem:[#allocation4 + $0xa0] sm:$0xff]
    %v1987 = vld [vmem:[#allocation4 + $0xa8] sm:$0xff]
    %v1988 = vld [vmem:[#allocation4 + $0xb0] sm:$0xff]
    %v1989 = vld [vmem:[#allocation4 + $0xb8] sm:$0xff]
    %v1990 = vld [vmem:[#allocation4 + $0xc0] sm:$0xff]
    %v1991 = vld [vmem:[#allocation4 + $0xc8] sm:$0xff]
    %v1992 = vld [vmem:[#allocation4 + $0xd0] sm:$0xff]
    %v1993 = vld [vmem:[#allocation4 + $0xd8] sm:$0xff]
    %v1994 = vld [vmem:[#allocation4 + $0xe0] sm:$0xff]
    %v1995 = vld [vmem:[#allocation4 + $0xe8] sm:$0xff]
    %v1996 = vld [vmem:[#allocation4 + $0xf0] sm:$0xff]
    %v1997 = vld [vmem:[#allocation4 + $0xf8] sm:$0xff]
    %v1998 = vld [vmem:[#allocation4 + $0x100] sm:$0xff]
    %v1999 = vld [vmem:[#allocation4 + $0x108] sm:$0xff]
    %v2000 = vld [vmem:[#allocation4 + $0x110] sm:$0xff]
    %v2001 = vld [vmem:[#allocation4 + $0x118] sm:$0xff]
    %v2002 = vld [vmem:[#allocation4 + $0x120] sm:$0xff]
    %v2003 = vld [vmem:[#allocation4 + $0x128] sm:$0xff]
    %v2004 = vld [vmem:[#allocation4 + $0x130] sm:$0xff]
    %v2005 = vld [vmem:[#allocation4 + $0x138] sm:$0xff]
    %v2006 = vld [vmem:[#allocation4 + $0x140] sm:$0xff]
    %v2007 = vld [vmem:[#allocation4 + $0x148] sm:$0xff]
    %v2008 = vld [vmem:[#allocation4 + $0x150] sm:$0xff]
    %v2009 = vld [vmem:[#allocation4 + $0x158] sm:$0xff]
    %v2010 = vld [vmem:[#allocation4 + $0x160] sm:$0xff]
    %v2011 = vld [vmem:[#allocation4 + $0x168] sm:$0xff]
    %v2012 = vld [vmem:[#allocation4 + $0x170] sm:$0xff]
    %v2013 = vld [vmem:[#allocation4 + $0x178] sm:$0xff]
    %v2014 = vld [vmem:[#allocation4 + $0x180] sm:$0xff]
    %v2015 = vld [vmem:[#allocation4 + $0x188] sm:$0xff]
    %v2016 = vld [vmem:[#allocation4 + $0x190] sm:$0xff]
    %v2017 = vld [vmem:[#allocation4 + $0x198] sm:$0xff]
    %v2018 = vld [vmem:[#allocation4 + $0x1a0] sm:$0xff]
    %v2019 = vld [vmem:[#allocation4 + $0x1a8] sm:$0xff]
    %v2020 = vld [vmem:[#allocation4 + $0x1b0] sm:$0xff]
    %v2021 = vld [vmem:[#allocation4 + $0x1b8] sm:$0xff]
    %v2022 = vld [vmem:[#allocation4 + $0x1c0] sm:$0xff]
    %v2023 = vld [vmem:[#allocation4 + $0x1c8] sm:$0xff]
    %v2024 = vld [vmem:[#allocation4 + $0x1d0] sm:$0xff]
    %v2025 = vld [vmem:[#allocation4 + $0x1d8] sm:$0xff]
    %v2026 = vld [vmem:[#allocation4 + $0x1e0] sm:$0xff]
    %v2027 = vld [vmem:[#allocation4 + $0x1e8] sm:$0xff]
    %v2028 = vld [vmem:[#allocation4 + $0x1f0] sm:$0xff]
    %v2029 = vld [vmem:[#allocation4 + $0x1f8] sm:$0xff]
    %2030 = vmatprep.subr.mxu0 %v2027
    %2031 = vmatpush1.msra.mxu0 %v2026
    %2032 = vmatprep.subr.mxu0 %v2023
    %2033 = vmatpush1.msra.mxu0 %v2022
    %2034 = vmatprep.subr.mxu0 %v2019
    %2035 = vmatpush1.msra.mxu0 %v2018
    %2036 = vmatprep.subr.mxu0 %v2015
    %2037 = vmatpush1.msra.mxu0 %v2014
    %2038 = vmatprep.subr.mxu0 %v2011
    %2039 = vmatpush1.msra.mxu0 %v2010
    %2040 = vmatprep.subr.mxu0 %v2007
    %2041 = vmatpush1.msra.mxu0 %v2006
    %2042 = vmatprep.subr.mxu0 %v2003
    %2043 = vmatpush1.msra.mxu0 %v2002
    %2044 = vmatprep.subr.mxu0 %v1999
    %2045 = vmatpush1.msra.mxu0 %v1998
    %2046 = vmatprep.subr.mxu0 %v1995
    %2047 = vmatpush1.msra.mxu0 %v1994
    %2048 = vmatprep.subr.mxu0 %v1991
    %2049 = vmatpush1.msra.mxu0 %v1990
    %2050 = vmatprep.subr.mxu0 %v1987
    %2051 = vmatpush1.msra.mxu0 %v1986
    %2052 = vmatprep.subr.mxu0 %v1983
    %2053 = vmatpush1.msra.mxu0 %v1982
    %2054 = vmatprep.subr.mxu0 %v1979
    %2055 = vmatpush1.msra.mxu0 %v1978
    %2056 = vmatprep.subr.mxu0 %v1975
    %2057 = vmatpush1.msra.mxu0 %v1974
    %2058 = vmatprep.subr.mxu0 %v1971
    %2059 = vmatpush1.msra.mxu0 %v1970
    %2060 = vmatprep.subr.mxu0 %v1967
    %2061 = vmatpush1.msra.mxu0 %v1966
    %2062 = vmatprep.subr.mxu0 0.0
    %2063 = vmatpush2.msra.mxu0 0.0
    %2064 = vmatprep.subr.mxu0 0.0
    %2065 = vmatpush2.msra.mxu0 0.0
    %2066 = vmatprep.subr.mxu0 0.0
    %2067 = vmatpush2.msra.mxu0 0.0
    %2068 = vmatprep.subr.mxu0 0.0
    %2069 = vmatpush2.msra.mxu0 0.0
    %2070 = vmatprep.subr.mxu0 0.0
    %2071 = vmatpush2.msra.mxu0 0.0
    %2072 = vmatprep.subr.mxu0 0.0
    %2073 = vmatpush2.msra.mxu0 0.0
    %2074 = vmatprep.subr.mxu0 0.0
    %2075 = vmatpush2.msra.mxu0 0.0
    %2076 = vmatprep.subr.mxu0 0.0
    %2077 = vmatpush2.msra.mxu0 0.0
    %2078 = vmatprep.subr.mxu0 0.0
    %2079 = vmatpush2.msra.mxu0 0.0
    %2080 = vmatprep.subr.mxu0 0.0
    %2081 = vmatpush2.msra.mxu0 0.0
    %2082 = vmatprep.subr.mxu0 0.0
    %2083 = vmatpush2.msra.mxu0 0.0
    %2084 = vmatprep.subr.mxu0 0.0
    %2085 = vmatpush2.msra.mxu0 0.0
    %2086 = vmatprep.subr.mxu0 0.0
    %2087 = vmatpush2.msra.mxu0 0.0
    %2088 = vmatprep.subr.mxu0 0.0
    %2089 = vmatpush2.msra.mxu0 0.0
    %2090 = vmatprep.subr.mxu0 0.0
    %2091 = vmatpush2.msra.mxu0 0.0
    %2092 = vmatprep.subr.mxu0 0.0
    %2093 = vmatpush2.msra.mxu0 0.0
    %2094 = vmatprep.mubr.f32.mxu0 0.0
    %2095 = vmatmul.mubr.f32.gmra.mxu0 %v1956
    %v2096 = vpop.f32.mrf.mxu0
    %v2097 = vadd.f32 0.0, %v2096
    %v2098 = vpop.f32.mrf.mxu0
    %v2099 = vadd.f32 0.0, %v2098
    %2100 = vdwg.mxu0
    %2101 = vmatprep.subr.mxu0 %v2029
    %2102 = vmatpush1.msra.mxu0 %v2028
    %2103 = vmatprep.subr.mxu0 %v2025
    %2104 = vmatpush1.msra.mxu0 %v2024
    %2105 = vmatprep.subr.mxu0 %v2021
    %2106 = vmatpush1.msra.mxu0 %v2020
    %2107 = vmatprep.subr.mxu0 %v2017
    %2108 = vmatpush1.msra.mxu0 %v2016
    %2109 = vmatprep.subr.mxu0 %v2013
    %2110 = vmatpush1.msra.mxu0 %v2012
    %2111 = vmatprep.subr.mxu0 %v2009
    %2112 = vmatpush1.msra.mxu0 %v2008
    %2113 = vmatprep.subr.mxu0 %v2005
    %2114 = vmatpush1.msra.mxu0 %v2004
    %2115 = vmatprep.subr.mxu0 %v2001
    %2116 = vmatpush1.msra.mxu0 %v2000
    %2117 = vmatprep.subr.mxu0 %v1997
    %2118 = vmatpush1.msra.mxu0 %v1996
    %2119 = vmatprep.subr.mxu0 %v1993
    %2120 = vmatpush1.msra.mxu0 %v1992
    %2121 = vmatprep.subr.mxu0 %v1989
    %2122 = vmatpush1.msra.mxu0 %v1988
    %2123 = vmatprep.subr.mxu0 %v1985
    %2124 = vmatpush1.msra.mxu0 %v1984
    %2125 = vmatprep.subr.mxu0 %v1981
    %2126 = vmatpush1.msra.mxu0 %v1980
    %2127 = vmatprep.subr.mxu0 %v1977
    %2128 = vmatpush1.msra.mxu0 %v1976
    %2129 = vmatprep.subr.mxu0 %v1973
    %2130 = vmatpush1.msra.mxu0 %v1972
    %2131 = vmatprep.subr.mxu0 %v1969
    %2132 = vmatpush1.msra.mxu0 %v1968
    %2133 = vmatprep.subr.mxu0 0.0
    %2134 = vmatpush2.msra.mxu0 0.0
    %2135 = vmatprep.subr.mxu0 0.0
    %2136 = vmatpush2.msra.mxu0 0.0
    %2137 = vmatprep.subr.mxu0 0.0
    %2138 = vmatpush2.msra.mxu0 0.0
    %2139 = vmatprep.subr.mxu0 0.0
    %2140 = vmatpush2.msra.mxu0 0.0
    %2141 = vmatprep.subr.mxu0 0.0
    %2142 = vmatpush2.msra.mxu0 0.0
    %2143 = vmatprep.subr.mxu0 0.0
    %2144 = vmatpush2.msra.mxu0 0.0
    %2145 = vmatprep.subr.mxu0 0.0
    %2146 = vmatpush2.msra.mxu0 0.0
    %2147 = vmatprep.subr.mxu0 0.0
    %2148 = vmatpush2.msra.mxu0 0.0
    %2149 = vmatprep.subr.mxu0 0.0
    %2150 = vmatpush2.msra.mxu0 0.0
    %2151 = vmatprep.subr.mxu0 0.0
    %2152 = vmatpush2.msra.mxu0 0.0
    %2153 = vmatprep.subr.mxu0 0.0
    %2154 = vmatpush2.msra.mxu0 0.0
    %2155 = vmatprep.subr.mxu0 0.0
    %2156 = vmatpush2.msra.mxu0 0.0
    %2157 = vmatprep.subr.mxu0 0.0
    %2158 = vmatpush2.msra.mxu0 0.0
    %2159 = vmatprep.subr.mxu0 0.0
    %2160 = vmatpush2.msra.mxu0 0.0
    %2161 = vmatprep.subr.mxu0 0.0
    %2162 = vmatpush2.msra.mxu0 0.0
    %2163 = vmatprep.subr.mxu0 0.0
    %2164 = vmatpush2.msra.mxu0 0.0
    %2165 = vmatprep.mubr.f32.mxu0 0.0
    %2166 = vmatmul.mubr.f32.gmra.mxu0 %v1956
    %v2167 = vpop.f32.mrf.mxu0
    %v2168 = vadd.f32 0.0, %v2167
    %v2169 = vpop.f32.mrf.mxu0
    %v2170 = vadd.f32 0.0, %v2169
    %2171 = vdwg.mxu0
    %v2172 = vadd.f32 %v1962, %v2097
    %v2173 = vadd.f32 %v1963, %v2099
    %v2174 = vadd.f32 %v1964, %v2168
    %v2175 = vadd.f32 %v1965, %v2170
    %v2176 = vtanh.pop %v2172
    %v2177 = vxor.u32 %v2175, 2147483648
    %v2178 = vmul.f32 %v2177, 1.442695
    %v2179 = vpow.pop %v2178
    %v2180 = vadd.f32 %v2179, 1.0
    %v2181 = vrcp.pop %v2180
    %v2182 = vmul.f32 1.0, %v2181
    %v2183 = vadd.f32 %v2174, %v1942
    %v2184 = vmax.f32 %v2183, %v2173
    %v2185 = vsub.f32 %v2173, %v2184
    %v2186 = vmul.f32 %v2185, 1.442695
    %v2187 = vpow.pop %v2186
    %v2188 = vsub.f32 %v2183, %v2184
    %v2189 = vmul.f32 %v2188, 1.442695
    %v2190 = vpow.pop %v2189
    %v2191 = vmul.f32 %v2190, %v1951
    %v2192 = vmul.f32 %v2187, %v2176
    %v2193 = vadd.f32 %v2191, %v2192
    %v2194 = vmul.f32 %v2190, %v1953
    %v2195 = vadd.f32 %v2194, %v2187
    %v2196 = vmul.f32 %v2182, %v2193
    %v2197 = vrcp.pop %v2195
    %v2198 = vmul.f32 %v2196, %v2197
    %s2199 = scalar_lea.vmem [#allocation11], 48
    %2200 = vst [vmem:[%s2199] sm:$0xff] %v2198
    %s2201 = smul.u32 7, 4
    %s2202 = smul.addr %s2201, 8
    %s2203 = scalar_lea.vmem [#allocation12], %s2202
    %v2204 = vld [vmem:[%s2203] sm:$0xff]
    %v2205 = vld [vmem:[%s2203 + $0x8] sm:$0xff]
    %v2206 = vld [vmem:[%s2203 + $0x10] sm:$0xff]
    %v2207 = vld [vmem:[%s2203 + $0x18] sm:$0xff]
    %v2208 = vld [vmem:[#allocation4] sm:$0xff]
    %v2209 = vld [vmem:[#allocation4 + $0x8] sm:$0xff]
    %v2210 = vld [vmem:[#allocation4 + $0x10] sm:$0xff]
    %v2211 = vld [vmem:[#allocation4 + $0x18] sm:$0xff]
    %v2212 = vld [vmem:[#allocation4 + $0x20] sm:$0xff]
    %v2213 = vld [vmem:[#allocation4 + $0x28] sm:$0xff]
    %v2214 = vld [vmem:[#allocation4 + $0x30] sm:$0xff]
    %v2215 = vld [vmem:[#allocation4 + $0x38] sm:$0xff]
    %v2216 = vld [vmem:[#allocation4 + $0x40] sm:$0xff]
    %v2217 = vld [vmem:[#allocation4 + $0x48] sm:$0xff]
    %v2218 = vld [vmem:[#allocation4 + $0x50] sm:$0xff]
    %v2219 = vld [vmem:[#allocation4 + $0x58] sm:$0xff]
    %v2220 = vld [vmem:[#allocation4 + $0x60] sm:$0xff]
    %v2221 = vld [vmem:[#allocation4 + $0x68] sm:$0xff]
    %v2222 = vld [vmem:[#allocation4 + $0x70] sm:$0xff]
    %v2223 = vld [vmem:[#allocation4 + $0x78] sm:$0xff]
    %v2224 = vld [vmem:[#allocation4 + $0x80] sm:$0xff]
    %v2225 = vld [vmem:[#allocation4 + $0x88] sm:$0xff]
    %v2226 = vld [vmem:[#allocation4 + $0x90] sm:$0xff]
    %v2227 = vld [vmem:[#allocation4 + $0x98] sm:$0xff]
    %v2228 = vld [vmem:[#allocation4 + $0xa0] sm:$0xff]
    %v2229 = vld [vmem:[#allocation4 + $0xa8] sm:$0xff]
    %v2230 = vld [vmem:[#allocation4 + $0xb0] sm:$0xff]
    %v2231 = vld [vmem:[#allocation4 + $0xb8] sm:$0xff]
    %v2232 = vld [vmem:[#allocation4 + $0xc0] sm:$0xff]
    %v2233 = vld [vmem:[#allocation4 + $0xc8] sm:$0xff]
    %v2234 = vld [vmem:[#allocation4 + $0xd0] sm:$0xff]
    %v2235 = vld [vmem:[#allocation4 + $0xd8] sm:$0xff]
    %v2236 = vld [vmem:[#allocation4 + $0xe0] sm:$0xff]
    %v2237 = vld [vmem:[#allocation4 + $0xe8] sm:$0xff]
    %v2238 = vld [vmem:[#allocation4 + $0xf0] sm:$0xff]
    %v2239 = vld [vmem:[#allocation4 + $0xf8] sm:$0xff]
    %v2240 = vld [vmem:[#allocation4 + $0x100] sm:$0xff]
    %v2241 = vld [vmem:[#allocation4 + $0x108] sm:$0xff]
    %v2242 = vld [vmem:[#allocation4 + $0x110] sm:$0xff]
    %v2243 = vld [vmem:[#allocation4 + $0x118] sm:$0xff]
    %v2244 = vld [vmem:[#allocation4 + $0x120] sm:$0xff]
    %v2245 = vld [vmem:[#allocation4 + $0x128] sm:$0xff]
    %v2246 = vld [vmem:[#allocation4 + $0x130] sm:$0xff]
    %v2247 = vld [vmem:[#allocation4 + $0x138] sm:$0xff]
    %v2248 = vld [vmem:[#allocation4 + $0x140] sm:$0xff]
    %v2249 = vld [vmem:[#allocation4 + $0x148] sm:$0xff]
    %v2250 = vld [vmem:[#allocation4 + $0x150] sm:$0xff]
    %v2251 = vld [vmem:[#allocation4 + $0x158] sm:$0xff]
    %v2252 = vld [vmem:[#allocation4 + $0x160] sm:$0xff]
    %v2253 = vld [vmem:[#allocation4 + $0x168] sm:$0xff]
    %v2254 = vld [vmem:[#allocation4 + $0x170] sm:$0xff]
    %v2255 = vld [vmem:[#allocation4 + $0x178] sm:$0xff]
    %v2256 = vld [vmem:[#allocation4 + $0x180] sm:$0xff]
    %v2257 = vld [vmem:[#allocation4 + $0x188] sm:$0xff]
    %v2258 = vld [vmem:[#allocation4 + $0x190] sm:$0xff]
    %v2259 = vld [vmem:[#allocation4 + $0x198] sm:$0xff]
    %v2260 = vld [vmem:[#allocation4 + $0x1a0] sm:$0xff]
    %v2261 = vld [vmem:[#allocation4 + $0x1a8] sm:$0xff]
    %v2262 = vld [vmem:[#allocation4 + $0x1b0] sm:$0xff]
    %v2263 = vld [vmem:[#allocation4 + $0x1b8] sm:$0xff]
    %v2264 = vld [vmem:[#allocation4 + $0x1c0] sm:$0xff]
    %v2265 = vld [vmem:[#allocation4 + $0x1c8] sm:$0xff]
    %v2266 = vld [vmem:[#allocation4 + $0x1d0] sm:$0xff]
    %v2267 = vld [vmem:[#allocation4 + $0x1d8] sm:$0xff]
    %v2268 = vld [vmem:[#allocation4 + $0x1e0] sm:$0xff]
    %v2269 = vld [vmem:[#allocation4 + $0x1e8] sm:$0xff]
    %v2270 = vld [vmem:[#allocation4 + $0x1f0] sm:$0xff]
    %v2271 = vld [vmem:[#allocation4 + $0x1f8] sm:$0xff]
    %2272 = vmatprep.subr.mxu0 %v2269
    %2273 = vmatpush1.msra.mxu0 %v2268
    %2274 = vmatprep.subr.mxu0 %v2265
    %2275 = vmatpush1.msra.mxu0 %v2264
    %2276 = vmatprep.subr.mxu0 %v2261
    %2277 = vmatpush1.msra.mxu0 %v2260
    %2278 = vmatprep.subr.mxu0 %v2257
    %2279 = vmatpush1.msra.mxu0 %v2256
    %2280 = vmatprep.subr.mxu0 %v2253
    %2281 = vmatpush1.msra.mxu0 %v2252
    %2282 = vmatprep.subr.mxu0 %v2249
    %2283 = vmatpush1.msra.mxu0 %v2248
    %2284 = vmatprep.subr.mxu0 %v2245
    %2285 = vmatpush1.msra.mxu0 %v2244
    %2286 = vmatprep.subr.mxu0 %v2241
    %2287 = vmatpush1.msra.mxu0 %v2240
    %2288 = vmatprep.subr.mxu0 %v2237
    %2289 = vmatpush1.msra.mxu0 %v2236
    %2290 = vmatprep.subr.mxu0 %v2233
    %2291 = vmatpush1.msra.mxu0 %v2232
    %2292 = vmatprep.subr.mxu0 %v2229
    %2293 = vmatpush1.msra.mxu0 %v2228
    %2294 = vmatprep.subr.mxu0 %v2225
    %2295 = vmatpush1.msra.mxu0 %v2224
    %2296 = vmatprep.subr.mxu0 %v2221
    %2297 = vmatpush1.msra.mxu0 %v2220
    %2298 = vmatprep.subr.mxu0 %v2217
    %2299 = vmatpush1.msra.mxu0 %v2216
    %2300 = vmatprep.subr.mxu0 %v2213
    %2301 = vmatpush1.msra.mxu0 %v2212
    %2302 = vmatprep.subr.mxu0 %v2209
    %2303 = vmatpush1.msra.mxu0 %v2208
    %2304 = vmatprep.subr.mxu0 0.0
    %2305 = vmatpush2.msra.mxu0 0.0
    %2306 = vmatprep.subr.mxu0 0.0
    %2307 = vmatpush2.msra.mxu0 0.0
    %2308 = vmatprep.subr.mxu0 0.0
    %2309 = vmatpush2.msra.mxu0 0.0
    %2310 = vmatprep.subr.mxu0 0.0
    %2311 = vmatpush2.msra.mxu0 0.0
    %2312 = vmatprep.subr.mxu0 0.0
    %2313 = vmatpush2.msra.mxu0 0.0
    %2314 = vmatprep.subr.mxu0 0.0
    %2315 = vmatpush2.msra.mxu0 0.0
    %2316 = vmatprep.subr.mxu0 0.0
    %2317 = vmatpush2.msra.mxu0 0.0
    %2318 = vmatprep.subr.mxu0 0.0
    %2319 = vmatpush2.msra.mxu0 0.0
    %2320 = vmatprep.subr.mxu0 0.0
    %2321 = vmatpush2.msra.mxu0 0.0
    %2322 = vmatprep.subr.mxu0 0.0
    %2323 = vmatpush2.msra.mxu0 0.0
    %2324 = vmatprep.subr.mxu0 0.0
    %2325 = vmatpush2.msra.mxu0 0.0
    %2326 = vmatprep.subr.mxu0 0.0
    %2327 = vmatpush2.msra.mxu0 0.0
    %2328 = vmatprep.subr.mxu0 0.0
    %2329 = vmatpush2.msra.mxu0 0.0
    %2330 = vmatprep.subr.mxu0 0.0
    %2331 = vmatpush2.msra.mxu0 0.0
    %2332 = vmatprep.subr.mxu0 0.0
    %2333 = vmatpush2.msra.mxu0 0.0
    %2334 = vmatprep.subr.mxu0 0.0
    %2335 = vmatpush2.msra.mxu0 0.0
    %2336 = vmatprep.mubr.f32.mxu0 0.0
    %2337 = vmatmul.mubr.f32.gmra.mxu0 %v2198
    %v2338 = vpop.f32.mrf.mxu0
    %v2339 = vadd.f32 0.0, %v2338
    %v2340 = vpop.f32.mrf.mxu0
    %v2341 = vadd.f32 0.0, %v2340
    %2342 = vdwg.mxu0
    %2343 = vmatprep.subr.mxu0 %v2271
    %2344 = vmatpush1.msra.mxu0 %v2270
    %2345 = vmatprep.subr.mxu0 %v2267
    %2346 = vmatpush1.msra.mxu0 %v2266
    %2347 = vmatprep.subr.mxu0 %v2263
    %2348 = vmatpush1.msra.mxu0 %v2262
    %2349 = vmatprep.subr.mxu0 %v2259
    %2350 = vmatpush1.msra.mxu0 %v2258
    %2351 = vmatprep.subr.mxu0 %v2255
    %2352 = vmatpush1.msra.mxu0 %v2254
    %2353 = vmatprep.subr.mxu0 %v2251
    %2354 = vmatpush1.msra.mxu0 %v2250
    %2355 = vmatprep.subr.mxu0 %v2247
    %2356 = vmatpush1.msra.mxu0 %v2246
    %2357 = vmatprep.subr.mxu0 %v2243
    %2358 = vmatpush1.msra.mxu0 %v2242
    %2359 = vmatprep.subr.mxu0 %v2239
    %2360 = vmatpush1.msra.mxu0 %v2238
    %2361 = vmatprep.subr.mxu0 %v2235
    %2362 = vmatpush1.msra.mxu0 %v2234
    %2363 = vmatprep.subr.mxu0 %v2231
    %2364 = vmatpush1.msra.mxu0 %v2230
    %2365 = vmatprep.subr.mxu0 %v2227
    %2366 = vmatpush1.msra.mxu0 %v2226
    %2367 = vmatprep.subr.mxu0 %v2223
    %2368 = vmatpush1.msra.mxu0 %v2222
    %2369 = vmatprep.subr.mxu0 %v2219
    %2370 = vmatpush1.msra.mxu0 %v2218
    %2371 = vmatprep.subr.mxu0 %v2215
    %2372 = vmatpush1.msra.mxu0 %v2214
    %2373 = vmatprep.subr.mxu0 %v2211
    %2374 = vmatpush1.msra.mxu0 %v2210
    %2375 = vmatprep.subr.mxu0 0.0
    %2376 = vmatpush2.msra.mxu0 0.0
    %2377 = vmatprep.subr.mxu0 0.0
    %2378 = vmatpush2.msra.mxu0 0.0
    %2379 = vmatprep.subr.mxu0 0.0
    %2380 = vmatpush2.msra.mxu0 0.0
    %2381 = vmatprep.subr.mxu0 0.0
    %2382 = vmatpush2.msra.mxu0 0.0
    %2383 = vmatprep.subr.mxu0 0.0
    %2384 = vmatpush2.msra.mxu0 0.0
    %2385 = vmatprep.subr.mxu0 0.0
    %2386 = vmatpush2.msra.mxu0 0.0
    %2387 = vmatprep.subr.mxu0 0.0
    %2388 = vmatpush2.msra.mxu0 0.0
    %2389 = vmatprep.subr.mxu0 0.0
    %2390 = vmatpush2.msra.mxu0 0.0
    %2391 = vmatprep.subr.mxu0 0.0
    %2392 = vmatpush2.msra.mxu0 0.0
    %2393 = vmatprep.subr.mxu0 0.0
    %2394 = vmatpush2.msra.mxu0 0.0
    %2395 = vmatprep.subr.mxu0 0.0
    %2396 = vmatpush2.msra.mxu0 0.0
    %2397 = vmatprep.subr.mxu0 0.0
    %2398 = vmatpush2.msra.mxu0 0.0
    %2399 = vmatprep.subr.mxu0 0.0
    %2400 = vmatpush2.msra.mxu0 0.0
    %2401 = vmatprep.subr.mxu0 0.0
    %2402 = vmatpush2.msra.mxu0 0.0
    %2403 = vmatprep.subr.mxu0 0.0
    %2404 = vmatpush2.msra.mxu0 0.0
    %2405 = vmatprep.subr.mxu0 0.0
    %2406 = vmatpush2.msra.mxu0 0.0
    %2407 = vmatprep.mubr.f32.mxu0 0.0
    %2408 = vmatmul.mubr.f32.gmra.mxu0 %v2198
    %v2409 = vpop.f32.mrf.mxu0
    %v2410 = vadd.f32 0.0, %v2409
    %v2411 = vpop.f32.mrf.mxu0
    %v2412 = vadd.f32 0.0, %v2411
    %2413 = vdwg.mxu0
    %v2414 = vadd.f32 %v2204, %v2339
    %v2415 = vadd.f32 %v2205, %v2341
    %v2416 = vadd.f32 %v2206, %v2410
    %v2417 = vadd.f32 %v2207, %v2412
    %v2418 = vtanh.pop %v2414
    %v2419 = vxor.u32 %v2417, 2147483648
    %v2420 = vmul.f32 %v2419, 1.442695
    %v2421 = vpow.pop %v2420
    %v2422 = vadd.f32 %v2421, 1.0
    %v2423 = vrcp.pop %v2422
    %v2424 = vmul.f32 1.0, %v2423
    %v2425 = vadd.f32 %v2416, %v2184
    %v2426 = vmax.f32 %v2425, %v2415
    %v2427 = vsub.f32 %v2415, %v2426
    %v2428 = vmul.f32 %v2427, 1.442695
    %v2429 = vpow.pop %v2428
    %v2430 = vsub.f32 %v2425, %v2426
    %v2431 = vmul.f32 %v2430, 1.442695
    %v2432 = vpow.pop %v2431
    %v2433 = vmul.f32 %v2432, %v2193
    %v2434 = vmul.f32 %v2429, %v2418
    %v2435 = vadd.f32 %v2433, %v2434
    %v2436 = vmul.f32 %v2432, %v2195
    %v2437 = vadd.f32 %v2436, %v2429
    %v2438 = vmul.f32 %v2424, %v2435
    %v2439 = vrcp.pop %v2437
    %v2440 = vmul.f32 %v2438, %v2439
    %s2441 = scalar_lea.vmem [#allocation11], 56
    %2442 = vst [vmem:[%s2441] sm:$0xff] %v2440
    %2443 = vst [vmem:[#allocation7] sm:$0xff] %v2440
    %2444 = vst [vmem:[#allocation8] sm:$0xff] %v2435
    %2445 = vst [vmem:[#allocation9] sm:$0xff] %v2437
    %2446 = vst [vmem:[#allocation10] sm:$0xff] %v2426
    %v2447 = vld [vmem:[#allocation11] sm:$0xff]
    %v2448 = vld [vmem:[#allocation11 + $0x8] sm:$0xff]
    %v2449 = vld [vmem:[#allocation11 + $0x10] sm:$0xff]
    %v2450 = vld [vmem:[#allocation11 + $0x18] sm:$0xff]
    %v2451 = vld [vmem:[#allocation11 + $0x20] sm:$0xff]
    %v2452 = vld [vmem:[#allocation11 + $0x28] sm:$0xff]
    %v2453 = vld [vmem:[#allocation11 + $0x30] sm:$0xff]
    %v2454 = vld [vmem:[#allocation11 + $0x38] sm:$0xff]
    %s2455 = scalar_lea.vmem [#allocation2], 512
    %v2456 = vld [vmem:[%s2455] sm:$0xff]
    %v2457 = vld [vmem:[%s2455 + $0x8] sm:$0xff]
    %v2458 = vld [vmem:[%s2455 + $0x10] sm:$0xff]
    %v2459 = vld [vmem:[%s2455 + $0x18] sm:$0xff]
    %v2460 = vld [vmem:[%s2455 + $0x20] sm:$0xff]
    %v2461 = vld [vmem:[%s2455 + $0x28] sm:$0xff]
    %v2462 = vld [vmem:[%s2455 + $0x30] sm:$0xff]
    %v2463 = vld [vmem:[%s2455 + $0x38] sm:$0xff]
    %v2464 = vld [vmem:[%s2455 + $0x40] sm:$0xff]
    %v2465 = vld [vmem:[%s2455 + $0x48] sm:$0xff]
    %v2466 = vld [vmem:[%s2455 + $0x50] sm:$0xff]
    %v2467 = vld [vmem:[%s2455 + $0x58] sm:$0xff]
    %v2468 = vld [vmem:[%s2455 + $0x60] sm:$0xff]
    %v2469 = vld [vmem:[%s2455 + $0x68] sm:$0xff]
    %v2470 = vld [vmem:[%s2455 + $0x70] sm:$0xff]
    %v2471 = vld [vmem:[%s2455 + $0x78] sm:$0xff]
    %v2472 = vld [vmem:[%s2455 + $0x80] sm:$0xff]
    %v2473 = vld [vmem:[%s2455 + $0x88] sm:$0xff]
    %v2474 = vld [vmem:[%s2455 + $0x90] sm:$0xff]
    %v2475 = vld [vmem:[%s2455 + $0x98] sm:$0xff]
    %v2476 = vld [vmem:[%s2455 + $0xa0] sm:$0xff]
    %v2477 = vld [vmem:[%s2455 + $0xa8] sm:$0xff]
    %v2478 = vld [vmem:[%s2455 + $0xb0] sm:$0xff]
    %v2479 = vld [vmem:[%s2455 + $0xb8] sm:$0xff]
    %v2480 = vld [vmem:[%s2455 + $0xc0] sm:$0xff]
    %v2481 = vld [vmem:[%s2455 + $0xc8] sm:$0xff]
    %v2482 = vld [vmem:[%s2455 + $0xd0] sm:$0xff]
    %v2483 = vld [vmem:[%s2455 + $0xd8] sm:$0xff]
    %v2484 = vld [vmem:[%s2455 + $0xe0] sm:$0xff]
    %v2485 = vld [vmem:[%s2455 + $0xe8] sm:$0xff]
    %v2486 = vld [vmem:[%s2455 + $0xf0] sm:$0xff]
    %v2487 = vld [vmem:[%s2455 + $0xf8] sm:$0xff]
    %v2488 = vld [vmem:[%s2455 + $0x100] sm:$0xff]
    %v2489 = vld [vmem:[%s2455 + $0x108] sm:$0xff]
    %v2490 = vld [vmem:[%s2455 + $0x110] sm:$0xff]
    %v2491 = vld [vmem:[%s2455 + $0x118] sm:$0xff]
    %v2492 = vld [vmem:[%s2455 + $0x120] sm:$0xff]
    %v2493 = vld [vmem:[%s2455 + $0x128] sm:$0xff]
    %v2494 = vld [vmem:[%s2455 + $0x130] sm:$0xff]
    %v2495 = vld [vmem:[%s2455 + $0x138] sm:$0xff]
    %v2496 = vld [vmem:[%s2455 + $0x140] sm:$0xff]
    %v2497 = vld [vmem:[%s2455 + $0x148] sm:$0xff]
    %v2498 = vld [vmem:[%s2455 + $0x150] sm:$0xff]
    %v2499 = vld [vmem:[%s2455 + $0x158] sm:$0xff]
    %v2500 = vld [vmem:[%s2455 + $0x160] sm:$0xff]
    %v2501 = vld [vmem:[%s2455 + $0x168] sm:$0xff]
    %v2502 = vld [vmem:[%s2455 + $0x170] sm:$0xff]
    %v2503 = vld [vmem:[%s2455 + $0x178] sm:$0xff]
    %v2504 = vld [vmem:[%s2455 + $0x180] sm:$0xff]
    %v2505 = vld [vmem:[%s2455 + $0x188] sm:$0xff]
    %v2506 = vld [vmem:[%s2455 + $0x190] sm:$0xff]
    %v2507 = vld [vmem:[%s2455 + $0x198] sm:$0xff]
    %v2508 = vld [vmem:[%s2455 + $0x1a0] sm:$0xff]
    %v2509 = vld [vmem:[%s2455 + $0x1a8] sm:$0xff]
    %v2510 = vld [vmem:[%s2455 + $0x1b0] sm:$0xff]
    %v2511 = vld [vmem:[%s2455 + $0x1b8] sm:$0xff]
    %v2512 = vld [vmem:[%s2455 + $0x1c0] sm:$0xff]
    %v2513 = vld [vmem:[%s2455 + $0x1c8] sm:$0xff]
    %v2514 = vld [vmem:[%s2455 + $0x1d0] sm:$0xff]
    %v2515 = vld [vmem:[%s2455 + $0x1d8] sm:$0xff]
    %v2516 = vld [vmem:[%s2455 + $0x1e0] sm:$0xff]
    %v2517 = vld [vmem:[%s2455 + $0x1e8] sm:$0xff]
    %v2518 = vld [vmem:[%s2455 + $0x1f0] sm:$0xff]
    %v2519 = vld [vmem:[%s2455 + $0x1f8] sm:$0xff]
    %s2520 = scalar_lea.vmem [#allocation3], 4
    %v2521 = vld [vmem:[%s2520] sm:$0xf]
    %v2523 = vlaneseq
    %v2524 = vshrl.u32 %v2523, 7
    %v2525 = vsub.s32 0, %v2524
    %v2526 = vrot.slane %v2521, %v2525
    %v2527 = vlaneseq
    %v2528 = vshrl.u32 %v2527, 7
    %v2529 = vsub.s32 1, %v2528
    %v2530 = vrot.slane %v2521, %v2529
    %v2531 = vlaneseq
    %v2532 = vshrl.u32 %v2531, 7
    %v2533 = vsub.s32 2, %v2532
    %v2534 = vrot.slane %v2521, %v2533
    %v2535 = vlaneseq
    %v2536 = vshrl.u32 %v2535, 7
    %v2537 = vsub.s32 3, %v2536
    %v2538 = vrot.slane %v2521, %v2537
    %2543 = vmatprep.subr.mxu0 %v2517
    %2544 = vmatpush1.msra.mxu0 %v2516
    %2545 = vmatprep.subr.mxu0 %v2513
    %2546 = vmatpush1.msra.mxu0 %v2512
    %2547 = vmatprep.subr.mxu0 %v2509
    %2548 = vmatpush1.msra.mxu0 %v2508
    %2549 = vmatprep.subr.mxu0 %v2505
    %2550 = vmatpush1.msra.mxu0 %v2504
    %2551 = vmatprep.subr.mxu0 %v2501
    %2552 = vmatpush1.msra.mxu0 %v2500
    %2553 = vmatprep.subr.mxu0 %v2497
    %2554 = vmatpush1.msra.mxu0 %v2496
    %2555 = vmatprep.subr.mxu0 %v2493
    %2556 = vmatpush1.msra.mxu0 %v2492
    %2557 = vmatprep.subr.mxu0 %v2489
    %2558 = vmatpush1.msra.mxu0 %v2488
    %2559 = vmatprep.subr.mxu0 %v2485
    %2560 = vmatpush1.msra.mxu0 %v2484
    %2561 = vmatprep.subr.mxu0 %v2481
    %2562 = vmatpush1.msra.mxu0 %v2480
    %2563 = vmatprep.subr.mxu0 %v2477
    %2564 = vmatpush1.msra.mxu0 %v2476
    %2565 = vmatprep.subr.mxu0 %v2473
    %2566 = vmatpush1.msra.mxu0 %v2472
    %2567 = vmatprep.subr.mxu0 %v2469
    %2568 = vmatpush1.msra.mxu0 %v2468
    %2569 = vmatprep.subr.mxu0 %v2465
    %2570 = vmatpush1.msra.mxu0 %v2464
    %2571 = vmatprep.subr.mxu0 %v2461
    %2572 = vmatpush1.msra.mxu0 %v2460
    %2573 = vmatprep.subr.mxu0 %v2457
    %2574 = vmatpush1.msra.mxu0 %v2456
    %2575 = vmatprep.subr.mxu0 0.0
    %2576 = vmatpush2.msra.mxu0 0.0
    %2577 = vmatprep.subr.mxu0 0.0
    %2578 = vmatpush2.msra.mxu0 0.0
    %2579 = vmatprep.subr.mxu0 0.0
    %2580 = vmatpush2.msra.mxu0 0.0
    %2581 = vmatprep.subr.mxu0 0.0
    %2582 = vmatpush2.msra.mxu0 0.0
    %2583 = vmatprep.subr.mxu0 0.0
    %2584 = vmatpush2.msra.mxu0 0.0
    %2585 = vmatprep.subr.mxu0 0.0
    %2586 = vmatpush2.msra.mxu0 0.0
    %2587 = vmatprep.subr.mxu0 0.0
    %2588 = vmatpush2.msra.mxu0 0.0
    %2589 = vmatprep.subr.mxu0 0.0
    %2590 = vmatpush2.msra.mxu0 0.0
    %2591 = vmatprep.subr.mxu0 0.0
    %2592 = vmatpush2.msra.mxu0 0.0
    %2593 = vmatprep.subr.mxu0 0.0
    %2594 = vmatpush2.msra.mxu0 0.0
    %2595 = vmatprep.subr.mxu0 0.0
    %2596 = vmatpush2.msra.mxu0 0.0
    %2597 = vmatprep.subr.mxu0 0.0
    %2598 = vmatpush2.msra.mxu0 0.0
    %2599 = vmatprep.subr.mxu0 0.0
    %2600 = vmatpush2.msra.mxu0 0.0
    %2601 = vmatprep.subr.mxu0 0.0
    %2602 = vmatpush2.msra.mxu0 0.0
    %2603 = vmatprep.subr.mxu0 0.0
    %2604 = vmatpush2.msra.mxu0 0.0
    %2605 = vmatprep.subr.mxu0 0.0
    %2606 = vmatpush2.msra.mxu0 0.0
    %2607 = vmatprep.mubr.f32.mxu0 0.0
    %2608 = vmatmul.mubr.f32.gmra.mxu0 %v2447
    %v2609 = vpop.f32.mrf.mxu0
    %v2610 = vadd.f32 %v2526, %v2609
    %v2611 = vpop.f32.mrf.mxu0
    %v2612 = vadd.f32 %v2530, %v2611
    %2613 = vmatprep.mubr.f32.mxu0 0.0
    %2614 = vmatmul.mubr.f32.gmra.mxu0 %v2448
    %v2615 = vpop.f32.mrf.mxu0
    %v2616 = vadd.f32 %v2526, %v2615
    %v2617 = vpop.f32.mrf.mxu0
    %v2618 = vadd.f32 %v2530, %v2617
    %2619 = vmatprep.mubr.f32.mxu0 0.0
    %2620 = vmatmul.mubr.f32.gmra.mxu0 %v2449
    %v2621 = vpop.f32.mrf.mxu0
    %v2622 = vadd.f32 %v2526, %v2621
    %v2623 = vpop.f32.mrf.mxu0
    %v2624 = vadd.f32 %v2530, %v2623
    %2625 = vmatprep.mubr.f32.mxu0 0.0
    %2626 = vmatmul.mubr.f32.gmra.mxu0 %v2450
    %v2627 = vpop.f32.mrf.mxu0
    %v2628 = vadd.f32 %v2526, %v2627
    %v2629 = vpop.f32.mrf.mxu0
    %v2630 = vadd.f32 %v2530, %v2629
    %2631 = vmatprep.mubr.f32.mxu0 0.0
    %2632 = vmatmul.mubr.f32.gmra.mxu0 %v2451
    %v2633 = vpop.f32.mrf.mxu0
    %v2634 = vadd.f32 %v2526, %v2633
    %v2635 = vpop.f32.mrf.mxu0
    %v2636 = vadd.f32 %v2530, %v2635
    %2637 = vmatprep.mubr.f32.mxu0 0.0
    %2638 = vmatmul.mubr.f32.gmra.mxu0 %v2452
    %v2639 = vpop.f32.mrf.mxu0
    %v2640 = vadd.f32 %v2526, %v2639
    %v2641 = vpop.f32.mrf.mxu0
    %v2642 = vadd.f32 %v2530, %v2641
    %2643 = vmatprep.mubr.f32.mxu0 0.0
    %2644 = vmatmul.mubr.f32.gmra.mxu0 %v2453
    %v2645 = vpop.f32.mrf.mxu0
    %v2646 = vadd.f32 %v2526, %v2645
    %v2647 = vpop.f32.mrf.mxu0
    %v2648 = vadd.f32 %v2530, %v2647
    %2649 = vmatprep.mubr.f32.mxu0 0.0
    %2650 = vmatmul.mubr.f32.gmra.mxu0 %v2454
    %v2651 = vpop.f32.mrf.mxu0
    %v2652 = vadd.f32 %v2526, %v2651
    %v2653 = vpop.f32.mrf.mxu0
    %v2654 = vadd.f32 %v2530, %v2653
    %2655 = vdwg.mxu0
    %2656 = vmatprep.subr.mxu0 %v2519
    %2657 = vmatpush1.msra.mxu0 %v2518
    %2658 = vmatprep.subr.mxu0 %v2515
    %2659 = vmatpush1.msra.mxu0 %v2514
    %2660 = vmatprep.subr.mxu0 %v2511
    %2661 = vmatpush1.msra.mxu0 %v2510
    %2662 = vmatprep.subr.mxu0 %v2507
    %2663 = vmatpush1.msra.mxu0 %v2506
    %2664 = vmatprep.subr.mxu0 %v2503
    %2665 = vmatpush1.msra.mxu0 %v2502
    %2666 = vmatprep.subr.mxu0 %v2499
    %2667 = vmatpush1.msra.mxu0 %v2498
    %2668 = vmatprep.subr.mxu0 %v2495
    %2669 = vmatpush1.msra.mxu0 %v2494
    %2670 = vmatprep.subr.mxu0 %v2491
    %2671 = vmatpush1.msra.mxu0 %v2490
    %2672 = vmatprep.subr.mxu0 %v2487
    %2673 = vmatpush1.msra.mxu0 %v2486
    %2674 = vmatprep.subr.mxu0 %v2483
    %2675 = vmatpush1.msra.mxu0 %v2482
    %2676 = vmatprep.subr.mxu0 %v2479
    %2677 = vmatpush1.msra.mxu0 %v2478
    %2678 = vmatprep.subr.mxu0 %v2475
    %2679 = vmatpush1.msra.mxu0 %v2474
    %2680 = vmatprep.subr.mxu0 %v2471
    %2681 = vmatpush1.msra.mxu0 %v2470
    %2682 = vmatprep.subr.mxu0 %v2467
    %2683 = vmatpush1.msra.mxu0 %v2466
    %2684 = vmatprep.subr.mxu0 %v2463
    %2685 = vmatpush1.msra.mxu0 %v2462
    %2686 = vmatprep.subr.mxu0 %v2459
    %2687 = vmatpush1.msra.mxu0 %v2458
    %2688 = vmatprep.subr.mxu0 0.0
    %2689 = vmatpush2.msra.mxu0 0.0
    %2690 = vmatprep.subr.mxu0 0.0
    %2691 = vmatpush2.msra.mxu0 0.0
    %2692 = vmatprep.subr.mxu0 0.0
    %2693 = vmatpush2.msra.mxu0 0.0
    %2694 = vmatprep.subr.mxu0 0.0
    %2695 = vmatpush2.msra.mxu0 0.0
    %2696 = vmatprep.subr.mxu0 0.0
    %2697 = vmatpush2.msra.mxu0 0.0
    %2698 = vmatprep.subr.mxu0 0.0
    %2699 = vmatpush2.msra.mxu0 0.0
    %2700 = vmatprep.subr.mxu0 0.0
    %2701 = vmatpush2.msra.mxu0 0.0
    %2702 = vmatprep.subr.mxu0 0.0
    %2703 = vmatpush2.msra.mxu0 0.0
    %2704 = vmatprep.subr.mxu0 0.0
    %2705 = vmatpush2.msra.mxu0 0.0
    %2706 = vmatprep.subr.mxu0 0.0
    %2707 = vmatpush2.msra.mxu0 0.0
    %2708 = vmatprep.subr.mxu0 0.0
    %2709 = vmatpush2.msra.mxu0 0.0
    %2710 = vmatprep.subr.mxu0 0.0
    %2711 = vmatpush2.msra.mxu0 0.0
    %2712 = vmatprep.subr.mxu0 0.0
    %2713 = vmatpush2.msra.mxu0 0.0
    %2714 = vmatprep.subr.mxu0 0.0
    %2715 = vmatpush2.msra.mxu0 0.0
    %2716 = vmatprep.subr.mxu0 0.0
    %2717 = vmatpush2.msra.mxu0 0.0
    %2718 = vmatprep.subr.mxu0 0.0
    %2719 = vmatpush2.msra.mxu0 0.0
    %2720 = vmatprep.mubr.f32.mxu0 0.0
    %2721 = vmatmul.mubr.f32.gmra.mxu0 %v2447
    %v2722 = vpop.f32.mrf.mxu0
    %v2723 = vadd.f32 %v2534, %v2722
    %v2724 = vpop.f32.mrf.mxu0
    %v2725 = vadd.f32 %v2538, %v2724
    %2726 = vmatprep.mubr.f32.mxu0 0.0
    %2727 = vmatmul.mubr.f32.gmra.mxu0 %v2448
    %v2728 = vpop.f32.mrf.mxu0
    %v2729 = vadd.f32 %v2534, %v2728
    %v2730 = vpop.f32.mrf.mxu0
    %v2731 = vadd.f32 %v2538, %v2730
    %2732 = vmatprep.mubr.f32.mxu0 0.0
    %2733 = vmatmul.mubr.f32.gmra.mxu0 %v2449
    %v2734 = vpop.f32.mrf.mxu0
    %v2735 = vadd.f32 %v2534, %v2734
    %v2736 = vpop.f32.mrf.mxu0
    %v2737 = vadd.f32 %v2538, %v2736
    %2738 = vmatprep.mubr.f32.mxu0 0.0
    %2739 = vmatmul.mubr.f32.gmra.mxu0 %v2450
    %v2740 = vpop.f32.mrf.mxu0
    %v2741 = vadd.f32 %v2534, %v2740
    %v2742 = vpop.f32.mrf.mxu0
    %v2743 = vadd.f32 %v2538, %v2742
    %2744 = vmatprep.mubr.f32.mxu0 0.0
    %2745 = vmatmul.mubr.f32.gmra.mxu0 %v2451
    %v2746 = vpop.f32.mrf.mxu0
    %v2747 = vadd.f32 %v2534, %v2746
    %v2748 = vpop.f32.mrf.mxu0
    %v2749 = vadd.f32 %v2538, %v2748
    %2750 = vmatprep.mubr.f32.mxu0 0.0
    %2751 = vmatmul.mubr.f32.gmra.mxu0 %v2452
    %v2752 = vpop.f32.mrf.mxu0
    %v2753 = vadd.f32 %v2534, %v2752
    %v2754 = vpop.f32.mrf.mxu0
    %v2755 = vadd.f32 %v2538, %v2754
    %2756 = vmatprep.mubr.f32.mxu0 0.0
    %2757 = vmatmul.mubr.f32.gmra.mxu0 %v2453
    %v2758 = vpop.f32.mrf.mxu0
    %v2759 = vadd.f32 %v2534, %v2758
    %v2760 = vpop.f32.mrf.mxu0
    %v2761 = vadd.f32 %v2538, %v2760
    %2762 = vmatprep.mubr.f32.mxu0 0.0
    %2763 = vmatmul.mubr.f32.gmra.mxu0 %v2454
    %v2764 = vpop.f32.mrf.mxu0
    %v2765 = vadd.f32 %v2534, %v2764
    %v2766 = vpop.f32.mrf.mxu0
    %v2767 = vadd.f32 %v2538, %v2766
    %2768 = vdwg.mxu0
    %2769 = vst [vmem:[#allocation12] sm:$0xff] %v2610
    %2770 = vst [vmem:[#allocation12 + $0x8] sm:$0xff] %v2612
    %2771 = vst [vmem:[#allocation12 + $0x10] sm:$0xff] %v2723
    %2772 = vst [vmem:[#allocation12 + $0x18] sm:$0xff] %v2725
    %2773 = vst [vmem:[#allocation12 + $0x20] sm:$0xff] %v2616
    %2774 = vst [vmem:[#allocation12 + $0x28] sm:$0xff] %v2618
    %2775 = vst [vmem:[#allocation12 + $0x30] sm:$0xff] %v2729
    %2776 = vst [vmem:[#allocation12 + $0x38] sm:$0xff] %v2731
    %2777 = vst [vmem:[#allocation12 + $0x40] sm:$0xff] %v2622
    %2778 = vst [vmem:[#allocation12 + $0x48] sm:$0xff] %v2624
    %2779 = vst [vmem:[#allocation12 + $0x50] sm:$0xff] %v2735
    %2780 = vst [vmem:[#allocation12 + $0x58] sm:$0xff] %v2737
    %2781 = vst [vmem:[#allocation12 + $0x60] sm:$0xff] %v2628
    %2782 = vst [vmem:[#allocation12 + $0x68] sm:$0xff] %v2630
    %2783 = vst [vmem:[#allocation12 + $0x70] sm:$0xff] %v2741
    %2784 = vst [vmem:[#allocation12 + $0x78] sm:$0xff] %v2743
    %2785 = vst [vmem:[#allocation12 + $0x80] sm:$0xff] %v2634
    %2786 = vst [vmem:[#allocation12 + $0x88] sm:$0xff] %v2636
    %2787 = vst [vmem:[#allocation12 + $0x90] sm:$0xff] %v2747
    %2788 = vst [vmem:[#allocation12 + $0x98] sm:$0xff] %v2749
    %2789 = vst [vmem:[#allocation12 + $0xa0] sm:$0xff] %v2640
    %2790 = vst [vmem:[#allocation12 + $0xa8] sm:$0xff] %v2642
    %2791 = vst [vmem:[#allocation12 + $0xb0] sm:$0xff] %v2753
    %2792 = vst [vmem:[#allocation12 + $0xb8] sm:$0xff] %v2755
    %2793 = vst [vmem:[#allocation12 + $0xc0] sm:$0xff] %v2646
    %2794 = vst [vmem:[#allocation12 + $0xc8] sm:$0xff] %v2648
    %2795 = vst [vmem:[#allocation12 + $0xd0] sm:$0xff] %v2759
    %2796 = vst [vmem:[#allocation12 + $0xd8] sm:$0xff] %v2761
    %2797 = vst [vmem:[#allocation12 + $0xe0] sm:$0xff] %v2652
    %2798 = vst [vmem:[#allocation12 + $0xe8] sm:$0xff] %v2654
    %2799 = vst [vmem:[#allocation12 + $0xf0] sm:$0xff] %v2765
    %2800 = vst [vmem:[#allocation12 + $0xf8] sm:$0xff] %v2767
    %s2801 = scalar_lea.vmem [#allocation7], 8
    %v2802 = vld [vmem:[%s2801] sm:$0xff]
    %s2803 = scalar_lea.vmem [#allocation8], 8
    %v2804 = vld [vmem:[%s2803] sm:$0xff]
    %s2805 = scalar_lea.vmem [#allocation9], 8
    %v2806 = vld [vmem:[%s2805] sm:$0xff]
    %s2807 = scalar_lea.vmem [#allocation10], 8
    %v2808 = vld [vmem:[%s2807] sm:$0xff]
    %v2809 = vld [vmem:[%s510] sm:$0xff]
    %v2810 = vld [vmem:[%s510 + $0x8] sm:$0xff]
    %v2811 = vld [vmem:[%s510 + $0x10] sm:$0xff]
    %v2812 = vld [vmem:[%s510 + $0x18] sm:$0xff]
    %s2813 = scalar_lea.vmem [#allocation4], 512
    %v2814 = vld [vmem:[%s2813] sm:$0xff]
    %v2815 = vld [vmem:[%s2813 + $0x8] sm:$0xff]
    %v2816 = vld [vmem:[%s2813 + $0x10] sm:$0xff]
    %v2817 = vld [vmem:[%s2813 + $0x18] sm:$0xff]
    %v2818 = vld [vmem:[%s2813 + $0x20] sm:$0xff]
    %v2819 = vld [vmem:[%s2813 + $0x28] sm:$0xff]
    %v2820 = vld [vmem:[%s2813 + $0x30] sm:$0xff]
    %v2821 = vld [vmem:[%s2813 + $0x38] sm:$0xff]
    %v2822 = vld [vmem:[%s2813 + $0x40] sm:$0xff]
    %v2823 = vld [vmem:[%s2813 + $0x48] sm:$0xff]
    %v2824 = vld [vmem:[%s2813 + $0x50] sm:$0xff]
    %v2825 = vld [vmem:[%s2813 + $0x58] sm:$0xff]
    %v2826 = vld [vmem:[%s2813 + $0x60] sm:$0xff]
    %v2827 = vld [vmem:[%s2813 + $0x68] sm:$0xff]
    %v2828 = vld [vmem:[%s2813 + $0x70] sm:$0xff]
    %v2829 = vld [vmem:[%s2813 + $0x78] sm:$0xff]
    %v2830 = vld [vmem:[%s2813 + $0x80] sm:$0xff]
    %v2831 = vld [vmem:[%s2813 + $0x88] sm:$0xff]
    %v2832 = vld [vmem:[%s2813 + $0x90] sm:$0xff]
    %v2833 = vld [vmem:[%s2813 + $0x98] sm:$0xff]
    %v2834 = vld [vmem:[%s2813 + $0xa0] sm:$0xff]
    %v2835 = vld [vmem:[%s2813 + $0xa8] sm:$0xff]
    %v2836 = vld [vmem:[%s2813 + $0xb0] sm:$0xff]
    %v2837 = vld [vmem:[%s2813 + $0xb8] sm:$0xff]
    %v2838 = vld [vmem:[%s2813 + $0xc0] sm:$0xff]
    %v2839 = vld [vmem:[%s2813 + $0xc8] sm:$0xff]
    %v2840 = vld [vmem:[%s2813 + $0xd0] sm:$0xff]
    %v2841 = vld [vmem:[%s2813 + $0xd8] sm:$0xff]
    %v2842 = vld [vmem:[%s2813 + $0xe0] sm:$0xff]
    %v2843 = vld [vmem:[%s2813 + $0xe8] sm:$0xff]
    %v2844 = vld [vmem:[%s2813 + $0xf0] sm:$0xff]
    %v2845 = vld [vmem:[%s2813 + $0xf8] sm:$0xff]
    %v2846 = vld [vmem:[%s2813 + $0x100] sm:$0xff]
    %v2847 = vld [vmem:[%s2813 + $0x108] sm:$0xff]
    %v2848 = vld [vmem:[%s2813 + $0x110] sm:$0xff]
    %v2849 = vld [vmem:[%s2813 + $0x118] sm:$0xff]
    %v2850 = vld [vmem:[%s2813 + $0x120] sm:$0xff]
    %v2851 = vld [vmem:[%s2813 + $0x128] sm:$0xff]
    %v2852 = vld [vmem:[%s2813 + $0x130] sm:$0xff]
    %v2853 = vld [vmem:[%s2813 + $0x138] sm:$0xff]
    %v2854 = vld [vmem:[%s2813 + $0x140] sm:$0xff]
    %v2855 = vld [vmem:[%s2813 + $0x148] sm:$0xff]
    %v2856 = vld [vmem:[%s2813 + $0x150] sm:$0xff]
    %v2857 = vld [vmem:[%s2813 + $0x158] sm:$0xff]
    %v2858 = vld [vmem:[%s2813 + $0x160] sm:$0xff]
    %v2859 = vld [vmem:[%s2813 + $0x168] sm:$0xff]
    %v2860 = vld [vmem:[%s2813 + $0x170] sm:$0xff]
    %v2861 = vld [vmem:[%s2813 + $0x178] sm:$0xff]
    %v2862 = vld [vmem:[%s2813 + $0x180] sm:$0xff]
    %v2863 = vld [vmem:[%s2813 + $0x188] sm:$0xff]
    %v2864 = vld [vmem:[%s2813 + $0x190] sm:$0xff]
    %v2865 = vld [vmem:[%s2813 + $0x198] sm:$0xff]
    %v2866 = vld [vmem:[%s2813 + $0x1a0] sm:$0xff]
    %v2867 = vld [vmem:[%s2813 + $0x1a8] sm:$0xff]
    %v2868 = vld [vmem:[%s2813 + $0x1b0] sm:$0xff]
    %v2869 = vld [vmem:[%s2813 + $0x1b8] sm:$0xff]
    %v2870 = vld [vmem:[%s2813 + $0x1c0] sm:$0xff]
    %v2871 = vld [vmem:[%s2813 + $0x1c8] sm:$0xff]
    %v2872 = vld [vmem:[%s2813 + $0x1d0] sm:$0xff]
    %v2873 = vld [vmem:[%s2813 + $0x1d8] sm:$0xff]
    %v2874 = vld [vmem:[%s2813 + $0x1e0] sm:$0xff]
    %v2875 = vld [vmem:[%s2813 + $0x1e8] sm:$0xff]
    %v2876 = vld [vmem:[%s2813 + $0x1f0] sm:$0xff]
    %v2877 = vld [vmem:[%s2813 + $0x1f8] sm:$0xff]
    %2878 = vmatprep.subr.mxu0 %v2875
    %2879 = vmatpush1.msra.mxu0 %v2874
    %2880 = vmatprep.subr.mxu0 %v2871
    %2881 = vmatpush1.msra.mxu0 %v2870
    %2882 = vmatprep.subr.mxu0 %v2867
    %2883 = vmatpush1.msra.mxu0 %v2866
    %2884 = vmatprep.subr.mxu0 %v2863
    %2885 = vmatpush1.msra.mxu0 %v2862
    %2886 = vmatprep.subr.mxu0 %v2859
    %2887 = vmatpush1.msra.mxu0 %v2858
    %2888 = vmatprep.subr.mxu0 %v2855
    %2889 = vmatpush1.msra.mxu0 %v2854
    %2890 = vmatprep.subr.mxu0 %v2851
    %2891 = vmatpush1.msra.mxu0 %v2850
    %2892 = vmatprep.subr.mxu0 %v2847
    %2893 = vmatpush1.msra.mxu0 %v2846
    %2894 = vmatprep.subr.mxu0 %v2843
    %2895 = vmatpush1.msra.mxu0 %v2842
    %2896 = vmatprep.subr.mxu0 %v2839
    %2897 = vmatpush1.msra.mxu0 %v2838
    %2898 = vmatprep.subr.mxu0 %v2835
    %2899 = vmatpush1.msra.mxu0 %v2834
    %2900 = vmatprep.subr.mxu0 %v2831
    %2901 = vmatpush1.msra.mxu0 %v2830
    %2902 = vmatprep.subr.mxu0 %v2827
    %2903 = vmatpush1.msra.mxu0 %v2826
    %2904 = vmatprep.subr.mxu0 %v2823
    %2905 = vmatpush1.msra.mxu0 %v2822
    %2906 = vmatprep.subr.mxu0 %v2819
    %2907 = vmatpush1.msra.mxu0 %v2818
    %2908 = vmatprep.subr.mxu0 %v2815
    %2909 = vmatpush1.msra.mxu0 %v2814
    %2910 = vmatprep.subr.mxu0 0.0
    %2911 = vmatpush2.msra.mxu0 0.0
    %2912 = vmatprep.subr.mxu0 0.0
    %2913 = vmatpush2.msra.mxu0 0.0
    %2914 = vmatprep.subr.mxu0 0.0
    %2915 = vmatpush2.msra.mxu0 0.0
    %2916 = vmatprep.subr.mxu0 0.0
    %2917 = vmatpush2.msra.mxu0 0.0
    %2918 = vmatprep.subr.mxu0 0.0
    %2919 = vmatpush2.msra.mxu0 0.0
    %2920 = vmatprep.subr.mxu0 0.0
    %2921 = vmatpush2.msra.mxu0 0.0
    %2922 = vmatprep.subr.mxu0 0.0
    %2923 = vmatpush2.msra.mxu0 0.0
    %2924 = vmatprep.subr.mxu0 0.0
    %2925 = vmatpush2.msra.mxu0 0.0
    %2926 = vmatprep.subr.mxu0 0.0
    %2927 = vmatpush2.msra.mxu0 0.0
    %2928 = vmatprep.subr.mxu0 0.0
    %2929 = vmatpush2.msra.mxu0 0.0
    %2930 = vmatprep.subr.mxu0 0.0
    %2931 = vmatpush2.msra.mxu0 0.0
    %2932 = vmatprep.subr.mxu0 0.0
    %2933 = vmatpush2.msra.mxu0 0.0
    %2934 = vmatprep.subr.mxu0 0.0
    %2935 = vmatpush2.msra.mxu0 0.0
    %2936 = vmatprep.subr.mxu0 0.0
    %2937 = vmatpush2.msra.mxu0 0.0
    %2938 = vmatprep.subr.mxu0 0.0
    %2939 = vmatpush2.msra.mxu0 0.0
    %2940 = vmatprep.subr.mxu0 0.0
    %2941 = vmatpush2.msra.mxu0 0.0
    %2942 = vmatprep.mubr.f32.mxu0 0.0
    %2943 = vmatmul.mubr.f32.gmra.mxu0 %v2802
    %v2944 = vpop.f32.mrf.mxu0
    %v2945 = vadd.f32 0.0, %v2944
    %v2946 = vpop.f32.mrf.mxu0
    %v2947 = vadd.f32 0.0, %v2946
    %2948 = vdwg.mxu0
    %2949 = vmatprep.subr.mxu0 %v2877
    %2950 = vmatpush1.msra.mxu0 %v2876
    %2951 = vmatprep.subr.mxu0 %v2873
    %2952 = vmatpush1.msra.mxu0 %v2872
    %2953 = vmatprep.subr.mxu0 %v2869
    %2954 = vmatpush1.msra.mxu0 %v2868
    %2955 = vmatprep.subr.mxu0 %v2865
    %2956 = vmatpush1.msra.mxu0 %v2864
    %2957 = vmatprep.subr.mxu0 %v2861
    %2958 = vmatpush1.msra.mxu0 %v2860
    %2959 = vmatprep.subr.mxu0 %v2857
    %2960 = vmatpush1.msra.mxu0 %v2856
    %2961 = vmatprep.subr.mxu0 %v2853
    %2962 = vmatpush1.msra.mxu0 %v2852
    %2963 = vmatprep.subr.mxu0 %v2849
    %2964 = vmatpush1.msra.mxu0 %v2848
    %2965 = vmatprep.subr.mxu0 %v2845
    %2966 = vmatpush1.msra.mxu0 %v2844
    %2967 = vmatprep.subr.mxu0 %v2841
    %2968 = vmatpush1.msra.mxu0 %v2840
    %2969 = vmatprep.subr.mxu0 %v2837
    %2970 = vmatpush1.msra.mxu0 %v2836
    %2971 = vmatprep.subr.mxu0 %v2833
    %2972 = vmatpush1.msra.mxu0 %v2832
    %2973 = vmatprep.subr.mxu0 %v2829
    %2974 = vmatpush1.msra.mxu0 %v2828
    %2975 = vmatprep.subr.mxu0 %v2825
    %2976 = vmatpush1.msra.mxu0 %v2824
    %2977 = vmatprep.subr.mxu0 %v2821
    %2978 = vmatpush1.msra.mxu0 %v2820
    %2979 = vmatprep.subr.mxu0 %v2817
    %2980 = vmatpush1.msra.mxu0 %v2816
    %2981 = vmatprep.subr.mxu0 0.0
    %2982 = vmatpush2.msra.mxu0 0.0
    %2983 = vmatprep.subr.mxu0 0.0
    %2984 = vmatpush2.msra.mxu0 0.0
    %2985 = vmatprep.subr.mxu0 0.0
    %2986 = vmatpush2.msra.mxu0 0.0
    %2987 = vmatprep.subr.mxu0 0.0
    %2988 = vmatpush2.msra.mxu0 0.0
    %2989 = vmatprep.subr.mxu0 0.0
    %2990 = vmatpush2.msra.mxu0 0.0
    %2991 = vmatprep.subr.mxu0 0.0
    %2992 = vmatpush2.msra.mxu0 0.0
    %2993 = vmatprep.subr.mxu0 0.0
    %2994 = vmatpush2.msra.mxu0 0.0
    %2995 = vmatprep.subr.mxu0 0.0
    %2996 = vmatpush2.msra.mxu0 0.0
    %2997 = vmatprep.subr.mxu0 0.0
    %2998 = vmatpush2.msra.mxu0 0.0
    %2999 = vmatprep.subr.mxu0 0.0
    %3000 = vmatpush2.msra.mxu0 0.0
    %3001 = vmatprep.subr.mxu0 0.0
    %3002 = vmatpush2.msra.mxu0 0.0
    %3003 = vmatprep.subr.mxu0 0.0
    %3004 = vmatpush2.msra.mxu0 0.0
    %3005 = vmatprep.subr.mxu0 0.0
    %3006 = vmatpush2.msra.mxu0 0.0
    %3007 = vmatprep.subr.mxu0 0.0
    %3008 = vmatpush2.msra.mxu0 0.0
    %3009 = vmatprep.subr.mxu0 0.0
    %3010 = vmatpush2.msra.mxu0 0.0
    %3011 = vmatprep.subr.mxu0 0.0
    %3012 = vmatpush2.msra.mxu0 0.0
    %3013 = vmatprep.mubr.f32.mxu0 0.0
    %3014 = vmatmul.mubr.f32.gmra.mxu0 %v2802
    %v3015 = vpop.f32.mrf.mxu0
    %v3016 = vadd.f32 0.0, %v3015
    %v3017 = vpop.f32.mrf.mxu0
    %v3018 = vadd.f32 0.0, %v3017
    %3019 = vdwg.mxu0
    %v3020 = vadd.f32 %v2809, %v2945
    %v3021 = vadd.f32 %v2810, %v2947
    %v3022 = vadd.f32 %v2811, %v3016
    %v3023 = vadd.f32 %v2812, %v3018
    %v3024 = vtanh.pop %v3020
    %v3025 = vxor.u32 %v3023, 2147483648
    %v3026 = vmul.f32 %v3025, 1.442695
    %v3027 = vpow.pop %v3026
    %v3028 = vadd.f32 %v3027, 1.0
    %v3029 = vrcp.pop %v3028
    %v3030 = vmul.f32 1.0, %v3029
    %v3031 = vadd.f32 %v3022, %v2808
    %v3032 = vmax.f32 %v3031, %v3021
    %v3033 = vsub.f32 %v3021, %v3032
    %v3034 = vmul.f32 %v3033, 1.442695
    %v3035 = vpow.pop %v3034
    %v3036 = vsub.f32 %v3031, %v3032
    %v3037 = vmul.f32 %v3036, 1.442695
    %v3038 = vpow.pop %v3037
    %v3039 = vmul.f32 %v3038, %v2804
    %v3040 = vmul.f32 %v3035, %v3024
    %v3041 = vadd.f32 %v3039, %v3040
    %v3042 = vmul.f32 %v3038, %v2806
    %v3043 = vadd.f32 %v3042, %v3035
    %v3044 = vmul.f32 %v3030, %v3041
    %v3045 = vrcp.pop %v3043
    %v3046 = vmul.f32 %v3044, %v3045
    %v3047 = vld [vmem:[%s751] sm:$0xff]
    %v3048 = vld [vmem:[%s751 + $0x8] sm:$0xff]
    %v3049 = vld [vmem:[%s751 + $0x10] sm:$0xff]
    %v3050 = vld [vmem:[%s751 + $0x18] sm:$0xff]
    %3051 = vmatprep.subr.mxu0 %v2875
    %3052 = vmatpush1.msra.mxu0 %v2874
    %3053 = vmatprep.subr.mxu0 %v2871
    %3054 = vmatpush1.msra.mxu0 %v2870
    %3055 = vmatprep.subr.mxu0 %v2867
    %3056 = vmatpush1.msra.mxu0 %v2866
    %3057 = vmatprep.subr.mxu0 %v2863
    %3058 = vmatpush1.msra.mxu0 %v2862
    %3059 = vmatprep.subr.mxu0 %v2859
    %3060 = vmatpush1.msra.mxu0 %v2858
    %3061 = vmatprep.subr.mxu0 %v2855
    %3062 = vmatpush1.msra.mxu0 %v2854
    %3063 = vmatprep.subr.mxu0 %v2851
    %3064 = vmatpush1.msra.mxu0 %v2850
    %3065 = vmatprep.subr.mxu0 %v2847
    %3066 = vmatpush1.msra.mxu0 %v2846
    %3067 = vmatprep.subr.mxu0 %v2843
    %3068 = vmatpush1.msra.mxu0 %v2842
    %3069 = vmatprep.subr.mxu0 %v2839
    %3070 = vmatpush1.msra.mxu0 %v2838
    %3071 = vmatprep.subr.mxu0 %v2835
    %3072 = vmatpush1.msra.mxu0 %v2834
    %3073 = vmatprep.subr.mxu0 %v2831
    %3074 = vmatpush1.msra.mxu0 %v2830
    %3075 = vmatprep.subr.mxu0 %v2827
    %3076 = vmatpush1.msra.mxu0 %v2826
    %3077 = vmatprep.subr.mxu0 %v2823
    %3078 = vmatpush1.msra.mxu0 %v2822
    %3079 = vmatprep.subr.mxu0 %v2819
    %3080 = vmatpush1.msra.mxu0 %v2818
    %3081 = vmatprep.subr.mxu0 %v2815
    %3082 = vmatpush1.msra.mxu0 %v2814
    %3083 = vmatprep.subr.mxu0 0.0
    %3084 = vmatpush2.msra.mxu0 0.0
    %3085 = vmatprep.subr.mxu0 0.0
    %3086 = vmatpush2.msra.mxu0 0.0
    %3087 = vmatprep.subr.mxu0 0.0
    %3088 = vmatpush2.msra.mxu0 0.0
    %3089 = vmatprep.subr.mxu0 0.0
    %3090 = vmatpush2.msra.mxu0 0.0
    %3091 = vmatprep.subr.mxu0 0.0
    %3092 = vmatpush2.msra.mxu0 0.0
    %3093 = vmatprep.subr.mxu0 0.0
    %3094 = vmatpush2.msra.mxu0 0.0
    %3095 = vmatprep.subr.mxu0 0.0
    %3096 = vmatpush2.msra.mxu0 0.0
    %3097 = vmatprep.subr.mxu0 0.0
    %3098 = vmatpush2.msra.mxu0 0.0
    %3099 = vmatprep.subr.mxu0 0.0
    %3100 = vmatpush2.msra.mxu0 0.0
    %3101 = vmatprep.subr.mxu0 0.0
    %3102 = vmatpush2.msra.mxu0 0.0
    %3103 = vmatprep.subr.mxu0 0.0
    %3104 = vmatpush2.msra.mxu0 0.0
    %3105 = vmatprep.subr.mxu0 0.0
    %3106 = vmatpush2.msra.mxu0 0.0
    %3107 = vmatprep.subr.mxu0 0.0
    %3108 = vmatpush2.msra.mxu0 0.0
    %3109 = vmatprep.subr.mxu0 0.0
    %3110 = vmatpush2.msra.mxu0 0.0
    %3111 = vmatprep.subr.mxu0 0.0
    %3112 = vmatpush2.msra.mxu0 0.0
    %3113 = vmatprep.subr.mxu0 0.0
    %3114 = vmatpush2.msra.mxu0 0.0
    %3115 = vmatprep.mubr.f32.mxu0 0.0
    %3116 = vmatmul.mubr.f32.gmra.mxu0 %v3046
    %v3117 = vpop.f32.mrf.mxu0
    %v3118 = vadd.f32 0.0, %v3117
    %v3119 = vpop.f32.mrf.mxu0
    %v3120 = vadd.f32 0.0, %v3119
    %3121 = vdwg.mxu0
    %3122 = vmatprep.subr.mxu0 %v2877
    %3123 = vmatpush1.msra.mxu0 %v2876
    %3124 = vmatprep.subr.mxu0 %v2873
    %3125 = vmatpush1.msra.mxu0 %v2872
    %3126 = vmatprep.subr.mxu0 %v2869
    %3127 = vmatpush1.msra.mxu0 %v2868
    %3128 = vmatprep.subr.mxu0 %v2865
    %3129 = vmatpush1.msra.mxu0 %v2864
    %3130 = vmatprep.subr.mxu0 %v2861
    %3131 = vmatpush1.msra.mxu0 %v2860
    %3132 = vmatprep.subr.mxu0 %v2857
    %3133 = vmatpush1.msra.mxu0 %v2856
    %3134 = vmatprep.subr.mxu0 %v2853
    %3135 = vmatpush1.msra.mxu0 %v2852
    %3136 = vmatprep.subr.mxu0 %v2849
    %3137 = vmatpush1.msra.mxu0 %v2848
    %3138 = vmatprep.subr.mxu0 %v2845
    %3139 = vmatpush1.msra.mxu0 %v2844
    %3140 = vmatprep.subr.mxu0 %v2841
    %3141 = vmatpush1.msra.mxu0 %v2840
    %3142 = vmatprep.subr.mxu0 %v2837
    %3143 = vmatpush1.msra.mxu0 %v2836
    %3144 = vmatprep.subr.mxu0 %v2833
    %3145 = vmatpush1.msra.mxu0 %v2832
    %3146 = vmatprep.subr.mxu0 %v2829
    %3147 = vmatpush1.msra.mxu0 %v2828
    %3148 = vmatprep.subr.mxu0 %v2825
    %3149 = vmatpush1.msra.mxu0 %v2824
    %3150 = vmatprep.subr.mxu0 %v2821
    %3151 = vmatpush1.msra.mxu0 %v2820
    %3152 = vmatprep.subr.mxu0 %v2817
    %3153 = vmatpush1.msra.mxu0 %v2816
    %3154 = vmatprep.subr.mxu0 0.0
    %3155 = vmatpush2.msra.mxu0 0.0
    %3156 = vmatprep.subr.mxu0 0.0
    %3157 = vmatpush2.msra.mxu0 0.0
    %3158 = vmatprep.subr.mxu0 0.0
    %3159 = vmatpush2.msra.mxu0 0.0
    %3160 = vmatprep.subr.mxu0 0.0
    %3161 = vmatpush2.msra.mxu0 0.0
    %3162 = vmatprep.subr.mxu0 0.0
    %3163 = vmatpush2.msra.mxu0 0.0
    %3164 = vmatprep.subr.mxu0 0.0
    %3165 = vmatpush2.msra.mxu0 0.0
    %3166 = vmatprep.subr.mxu0 0.0
    %3167 = vmatpush2.msra.mxu0 0.0
    %3168 = vmatprep.subr.mxu0 0.0
    %3169 = vmatpush2.msra.mxu0 0.0
    %3170 = vmatprep.subr.mxu0 0.0
    %3171 = vmatpush2.msra.mxu0 0.0
    %3172 = vmatprep.subr.mxu0 0.0
    %3173 = vmatpush2.msra.mxu0 0.0
    %3174 = vmatprep.subr.mxu0 0.0
    %3175 = vmatpush2.msra.mxu0 0.0
    %3176 = vmatprep.subr.mxu0 0.0
    %3177 = vmatpush2.msra.mxu0 0.0
    %3178 = vmatprep.subr.mxu0 0.0
    %3179 = vmatpush2.msra.mxu0 0.0
    %3180 = vmatprep.subr.mxu0 0.0
    %3181 = vmatpush2.msra.mxu0 0.0
    %3182 = vmatprep.subr.mxu0 0.0
    %3183 = vmatpush2.msra.mxu0 0.0
    %3184 = vmatprep.subr.mxu0 0.0
    %3185 = vmatpush2.msra.mxu0 0.0
    %3186 = vmatprep.mubr.f32.mxu0 0.0
    %3187 = vmatmul.mubr.f32.gmra.mxu0 %v3046
    %v3188 = vpop.f32.mrf.mxu0
    %v3189 = vadd.f32 0.0, %v3188
    %v3190 = vpop.f32.mrf.mxu0
    %v3191 = vadd.f32 0.0, %v3190
    %3192 = vdwg.mxu0
    %v3193 = vadd.f32 %v3047, %v3118
    %v3194 = vadd.f32 %v3048, %v3120
    %v3195 = vadd.f32 %v3049, %v3189
    %v3196 = vadd.f32 %v3050, %v3191
    %v3197 = vtanh.pop %v3193
    %v3198 = vxor.u32 %v3196, 2147483648
    %v3199 = vmul.f32 %v3198, 1.442695
    %v3200 = vpow.pop %v3199
    %v3201 = vadd.f32 %v3200, 1.0
    %v3202 = vrcp.pop %v3201
    %v3203 = vmul.f32 1.0, %v3202
    %v3204 = vadd.f32 %v3195, %v3032
    %v3205 = vmax.f32 %v3204, %v3194
    %v3206 = vsub.f32 %v3194, %v3205
    %v3207 = vmul.f32 %v3206, 1.442695
    %v3208 = vpow.pop %v3207
    %v3209 = vsub.f32 %v3204, %v3205
    %v3210 = vmul.f32 %v3209, 1.442695
    %v3211 = vpow.pop %v3210
    %v3212 = vmul.f32 %v3211, %v3041
    %v3213 = vmul.f32 %v3208, %v3197
    %v3214 = vadd.f32 %v3212, %v3213
    %v3215 = vmul.f32 %v3211, %v3043
    %v3216 = vadd.f32 %v3215, %v3208
    %v3217 = vmul.f32 %v3203, %v3214
    %v3218 = vrcp.pop %v3216
    %v3219 = vmul.f32 %v3217, %v3218
    %v3220 = vld [vmem:[%s993] sm:$0xff]
    %v3221 = vld [vmem:[%s993 + $0x8] sm:$0xff]
    %v3222 = vld [vmem:[%s993 + $0x10] sm:$0xff]
    %v3223 = vld [vmem:[%s993 + $0x18] sm:$0xff]
    %3224 = vmatprep.subr.mxu0 %v2875
    %3225 = vmatpush1.msra.mxu0 %v2874
    %3226 = vmatprep.subr.mxu0 %v2871
    %3227 = vmatpush1.msra.mxu0 %v2870
    %3228 = vmatprep.subr.mxu0 %v2867
    %3229 = vmatpush1.msra.mxu0 %v2866
    %3230 = vmatprep.subr.mxu0 %v2863
    %3231 = vmatpush1.msra.mxu0 %v2862
    %3232 = vmatprep.subr.mxu0 %v2859
    %3233 = vmatpush1.msra.mxu0 %v2858
    %3234 = vmatprep.subr.mxu0 %v2855
    %3235 = vmatpush1.msra.mxu0 %v2854
    %3236 = vmatprep.subr.mxu0 %v2851
    %3237 = vmatpush1.msra.mxu0 %v2850
    %3238 = vmatprep.subr.mxu0 %v2847
    %3239 = vmatpush1.msra.mxu0 %v2846
    %3240 = vmatprep.subr.mxu0 %v2843
    %3241 = vmatpush1.msra.mxu0 %v2842
    %3242 = vmatprep.subr.mxu0 %v2839
    %3243 = vmatpush1.msra.mxu0 %v2838
    %3244 = vmatprep.subr.mxu0 %v2835
    %3245 = vmatpush1.msra.mxu0 %v2834
    %3246 = vmatprep.subr.mxu0 %v2831
    %3247 = vmatpush1.msra.mxu0 %v2830
    %3248 = vmatprep.subr.mxu0 %v2827
    %3249 = vmatpush1.msra.mxu0 %v2826
    %3250 = vmatprep.subr.mxu0 %v2823
    %3251 = vmatpush1.msra.mxu0 %v2822
    %3252 = vmatprep.subr.mxu0 %v2819
    %3253 = vmatpush1.msra.mxu0 %v2818
    %3254 = vmatprep.subr.mxu0 %v2815
    %3255 = vmatpush1.msra.mxu0 %v2814
    %3256 = vmatprep.subr.mxu0 0.0
    %3257 = vmatpush2.msra.mxu0 0.0
    %3258 = vmatprep.subr.mxu0 0.0
    %3259 = vmatpush2.msra.mxu0 0.0
    %3260 = vmatprep.subr.mxu0 0.0
    %3261 = vmatpush2.msra.mxu0 0.0
    %3262 = vmatprep.subr.mxu0 0.0
    %3263 = vmatpush2.msra.mxu0 0.0
    %3264 = vmatprep.subr.mxu0 0.0
    %3265 = vmatpush2.msra.mxu0 0.0
    %3266 = vmatprep.subr.mxu0 0.0
    %3267 = vmatpush2.msra.mxu0 0.0
    %3268 = vmatprep.subr.mxu0 0.0
    %3269 = vmatpush2.msra.mxu0 0.0
    %3270 = vmatprep.subr.mxu0 0.0
    %3271 = vmatpush2.msra.mxu0 0.0
    %3272 = vmatprep.subr.mxu0 0.0
    %3273 = vmatpush2.msra.mxu0 0.0
    %3274 = vmatprep.subr.mxu0 0.0
    %3275 = vmatpush2.msra.mxu0 0.0
    %3276 = vmatprep.subr.mxu0 0.0
    %3277 = vmatpush2.msra.mxu0 0.0
    %3278 = vmatprep.subr.mxu0 0.0
    %3279 = vmatpush2.msra.mxu0 0.0
    %3280 = vmatprep.subr.mxu0 0.0
    %3281 = vmatpush2.msra.mxu0 0.0
    %3282 = vmatprep.subr.mxu0 0.0
    %3283 = vmatpush2.msra.mxu0 0.0
    %3284 = vmatprep.subr.mxu0 0.0
    %3285 = vmatpush2.msra.mxu0 0.0
    %3286 = vmatprep.subr.mxu0 0.0
    %3287 = vmatpush2.msra.mxu0 0.0
    %3288 = vmatprep.mubr.f32.mxu0 0.0
    %3289 = vmatmul.mubr.f32.gmra.mxu0 %v3219
    %v3290 = vpop.f32.mrf.mxu0
    %v3291 = vadd.f32 0.0, %v3290
    %v3292 = vpop.f32.mrf.mxu0
    %v3293 = vadd.f32 0.0, %v3292
    %3294 = vdwg.mxu0
    %3295 = vmatprep.subr.mxu0 %v2877
    %3296 = vmatpush1.msra.mxu0 %v2876
    %3297 = vmatprep.subr.mxu0 %v2873
    %3298 = vmatpush1.msra.mxu0 %v2872
    %3299 = vmatprep.subr.mxu0 %v2869
    %3300 = vmatpush1.msra.mxu0 %v2868
    %3301 = vmatprep.subr.mxu0 %v2865
    %3302 = vmatpush1.msra.mxu0 %v2864
    %3303 = vmatprep.subr.mxu0 %v2861
    %3304 = vmatpush1.msra.mxu0 %v2860
    %3305 = vmatprep.subr.mxu0 %v2857
    %3306 = vmatpush1.msra.mxu0 %v2856
    %3307 = vmatprep.subr.mxu0 %v2853
    %3308 = vmatpush1.msra.mxu0 %v2852
    %3309 = vmatprep.subr.mxu0 %v2849
    %3310 = vmatpush1.msra.mxu0 %v2848
    %3311 = vmatprep.subr.mxu0 %v2845
    %3312 = vmatpush1.msra.mxu0 %v2844
    %3313 = vmatprep.subr.mxu0 %v2841
    %3314 = vmatpush1.msra.mxu0 %v2840
    %3315 = vmatprep.subr.mxu0 %v2837
    %3316 = vmatpush1.msra.mxu0 %v2836
    %3317 = vmatprep.subr.mxu0 %v2833
    %3318 = vmatpush1.msra.mxu0 %v2832
    %3319 = vmatprep.subr.mxu0 %v2829
    %3320 = vmatpush1.msra.mxu0 %v2828
    %3321 = vmatprep.subr.mxu0 %v2825
    %3322 = vmatpush1.msra.mxu0 %v2824
    %3323 = vmatprep.subr.mxu0 %v2821
    %3324 = vmatpush1.msra.mxu0 %v2820
    %3325 = vmatprep.subr.mxu0 %v2817
    %3326 = vmatpush1.msra.mxu0 %v2816
    %3327 = vmatprep.subr.mxu0 0.0
    %3328 = vmatpush2.msra.mxu0 0.0
    %3329 = vmatprep.subr.mxu0 0.0
    %3330 = vmatpush2.msra.mxu0 0.0
    %3331 = vmatprep.subr.mxu0 0.0
    %3332 = vmatpush2.msra.mxu0 0.0
    %3333 = vmatprep.subr.mxu0 0.0
    %3334 = vmatpush2.msra.mxu0 0.0
    %3335 = vmatprep.subr.mxu0 0.0
    %3336 = vmatpush2.msra.mxu0 0.0
    %3337 = vmatprep.subr.mxu0 0.0
    %3338 = vmatpush2.msra.mxu0 0.0
    %3339 = vmatprep.subr.mxu0 0.0
    %3340 = vmatpush2.msra.mxu0 0.0
    %3341 = vmatprep.subr.mxu0 0.0
    %3342 = vmatpush2.msra.mxu0 0.0
    %3343 = vmatprep.subr.mxu0 0.0
    %3344 = vmatpush2.msra.mxu0 0.0
    %3345 = vmatprep.subr.mxu0 0.0
    %3346 = vmatpush2.msra.mxu0 0.0
    %3347 = vmatprep.subr.mxu0 0.0
    %3348 = vmatpush2.msra.mxu0 0.0
    %3349 = vmatprep.subr.mxu0 0.0
    %3350 = vmatpush2.msra.mxu0 0.0
    %3351 = vmatprep.subr.mxu0 0.0
    %3352 = vmatpush2.msra.mxu0 0.0
    %3353 = vmatprep.subr.mxu0 0.0
    %3354 = vmatpush2.msra.mxu0 0.0
    %3355 = vmatprep.subr.mxu0 0.0
    %3356 = vmatpush2.msra.mxu0 0.0
    %3357 = vmatprep.subr.mxu0 0.0
    %3358 = vmatpush2.msra.mxu0 0.0
    %3359 = vmatprep.mubr.f32.mxu0 0.0
    %3360 = vmatmul.mubr.f32.gmra.mxu0 %v3219
    %v3361 = vpop.f32.mrf.mxu0
    %v3362 = vadd.f32 0.0, %v3361
    %v3363 = vpop.f32.mrf.mxu0
    %v3364 = vadd.f32 0.0, %v3363
    %3365 = vdwg.mxu0
    %v3366 = vadd.f32 %v3220, %v3291
    %v3367 = vadd.f32 %v3221, %v3293
    %v3368 = vadd.f32 %v3222, %v3362
    %v3369 = vadd.f32 %v3223, %v3364
    %v3370 = vtanh.pop %v3366
    %v3371 = vxor.u32 %v3369, 2147483648
    %v3372 = vmul.f32 %v3371, 1.442695
    %v3373 = vpow.pop %v3372
    %v3374 = vadd.f32 %v3373, 1.0
    %v3375 = vrcp.pop %v3374
    %v3376 = vmul.f32 1.0, %v3375
    %v3377 = vadd.f32 %v3368, %v3205
    %v3378 = vmax.f32 %v3377, %v3367
    %v3379 = vsub.f32 %v3367, %v3378
    %v3380 = vmul.f32 %v3379, 1.442695
    %v3381 = vpow.pop %v3380
    %v3382 = vsub.f32 %v3377, %v3378
    %v3383 = vmul.f32 %v3382, 1.442695
    %v3384 = vpow.pop %v3383
    %v3385 = vmul.f32 %v3384, %v3214
    %v3386 = vmul.f32 %v3381, %v3370
    %v3387 = vadd.f32 %v3385, %v3386
    %v3388 = vmul.f32 %v3384, %v3216
    %v3389 = vadd.f32 %v3388, %v3381
    %v3390 = vmul.f32 %v3376, %v3387
    %v3391 = vrcp.pop %v3389
    %v3392 = vmul.f32 %v3390, %v3391
    %v3393 = vld [vmem:[%s1235] sm:$0xff]
    %v3394 = vld [vmem:[%s1235 + $0x8] sm:$0xff]
    %v3395 = vld [vmem:[%s1235 + $0x10] sm:$0xff]
    %v3396 = vld [vmem:[%s1235 + $0x18] sm:$0xff]
    %3397 = vmatprep.subr.mxu0 %v2875
    %3398 = vmatpush1.msra.mxu0 %v2874
    %3399 = vmatprep.subr.mxu0 %v2871
    %3400 = vmatpush1.msra.mxu0 %v2870
    %3401 = vmatprep.subr.mxu0 %v2867
    %3402 = vmatpush1.msra.mxu0 %v2866
    %3403 = vmatprep.subr.mxu0 %v2863
    %3404 = vmatpush1.msra.mxu0 %v2862
    %3405 = vmatprep.subr.mxu0 %v2859
    %3406 = vmatpush1.msra.mxu0 %v2858
    %3407 = vmatprep.subr.mxu0 %v2855
    %3408 = vmatpush1.msra.mxu0 %v2854
    %3409 = vmatprep.subr.mxu0 %v2851
    %3410 = vmatpush1.msra.mxu0 %v2850
    %3411 = vmatprep.subr.mxu0 %v2847
    %3412 = vmatpush1.msra.mxu0 %v2846
    %3413 = vmatprep.subr.mxu0 %v2843
    %3414 = vmatpush1.msra.mxu0 %v2842
    %3415 = vmatprep.subr.mxu0 %v2839
    %3416 = vmatpush1.msra.mxu0 %v2838
    %3417 = vmatprep.subr.mxu0 %v2835
    %3418 = vmatpush1.msra.mxu0 %v2834
    %3419 = vmatprep.subr.mxu0 %v2831
    %3420 = vmatpush1.msra.mxu0 %v2830
    %3421 = vmatprep.subr.mxu0 %v2827
    %3422 = vmatpush1.msra.mxu0 %v2826
    %3423 = vmatprep.subr.mxu0 %v2823
    %3424 = vmatpush1.msra.mxu0 %v2822
    %3425 = vmatprep.subr.mxu0 %v2819
    %3426 = vmatpush1.msra.mxu0 %v2818
    %3427 = vmatprep.subr.mxu0 %v2815
    %3428 = vmatpush1.msra.mxu0 %v2814
    %3429 = vmatprep.subr.mxu0 0.0
    %3430 = vmatpush2.msra.mxu0 0.0
    %3431 = vmatprep.subr.mxu0 0.0
    %3432 = vmatpush2.msra.mxu0 0.0
    %3433 = vmatprep.subr.mxu0 0.0
    %3434 = vmatpush2.msra.mxu0 0.0
    %3435 = vmatprep.subr.mxu0 0.0
    %3436 = vmatpush2.msra.mxu0 0.0
    %3437 = vmatprep.subr.mxu0 0.0
    %3438 = vmatpush2.msra.mxu0 0.0
    %3439 = vmatprep.subr.mxu0 0.0
    %3440 = vmatpush2.msra.mxu0 0.0
    %3441 = vmatprep.subr.mxu0 0.0
    %3442 = vmatpush2.msra.mxu0 0.0
    %3443 = vmatprep.subr.mxu0 0.0
    %3444 = vmatpush2.msra.mxu0 0.0
    %3445 = vmatprep.subr.mxu0 0.0
    %3446 = vmatpush2.msra.mxu0 0.0
    %3447 = vmatprep.subr.mxu0 0.0
    %3448 = vmatpush2.msra.mxu0 0.0
    %3449 = vmatprep.subr.mxu0 0.0
    %3450 = vmatpush2.msra.mxu0 0.0
    %3451 = vmatprep.subr.mxu0 0.0
    %3452 = vmatpush2.msra.mxu0 0.0
    %3453 = vmatprep.subr.mxu0 0.0
    %3454 = vmatpush2.msra.mxu0 0.0
    %3455 = vmatprep.subr.mxu0 0.0
    %3456 = vmatpush2.msra.mxu0 0.0
    %3457 = vmatprep.subr.mxu0 0.0
    %3458 = vmatpush2.msra.mxu0 0.0
    %3459 = vmatprep.subr.mxu0 0.0
    %3460 = vmatpush2.msra.mxu0 0.0
    %3461 = vmatprep.mubr.f32.mxu0 0.0
    %3462 = vmatmul.mubr.f32.gmra.mxu0 %v3392
    %v3463 = vpop.f32.mrf.mxu0
    %v3464 = vadd.f32 0.0, %v3463
    %v3465 = vpop.f32.mrf.mxu0
    %v3466 = vadd.f32 0.0, %v3465
    %3467 = vdwg.mxu0
    %3468 = vmatprep.subr.mxu0 %v2877
    %3469 = vmatpush1.msra.mxu0 %v2876
    %3470 = vmatprep.subr.mxu0 %v2873
    %3471 = vmatpush1.msra.mxu0 %v2872
    %3472 = vmatprep.subr.mxu0 %v2869
    %3473 = vmatpush1.msra.mxu0 %v2868
    %3474 = vmatprep.subr.mxu0 %v2865
    %3475 = vmatpush1.msra.mxu0 %v2864
    %3476 = vmatprep.subr.mxu0 %v2861
    %3477 = vmatpush1.msra.mxu0 %v2860
    %3478 = vmatprep.subr.mxu0 %v2857
    %3479 = vmatpush1.msra.mxu0 %v2856
    %3480 = vmatprep.subr.mxu0 %v2853
    %3481 = vmatpush1.msra.mxu0 %v2852
    %3482 = vmatprep.subr.mxu0 %v2849
    %3483 = vmatpush1.msra.mxu0 %v2848
    %3484 = vmatprep.subr.mxu0 %v2845
    %3485 = vmatpush1.msra.mxu0 %v2844
    %3486 = vmatprep.subr.mxu0 %v2841
    %3487 = vmatpush1.msra.mxu0 %v2840
    %3488 = vmatprep.subr.mxu0 %v2837
    %3489 = vmatpush1.msra.mxu0 %v2836
    %3490 = vmatprep.subr.mxu0 %v2833
    %3491 = vmatpush1.msra.mxu0 %v2832
    %3492 = vmatprep.subr.mxu0 %v2829
    %3493 = vmatpush1.msra.mxu0 %v2828
    %3494 = vmatprep.subr.mxu0 %v2825
    %3495 = vmatpush1.msra.mxu0 %v2824
    %3496 = vmatprep.subr.mxu0 %v2821
    %3497 = vmatpush1.msra.mxu0 %v2820
    %3498 = vmatprep.subr.mxu0 %v2817
    %3499 = vmatpush1.msra.mxu0 %v2816
    %3500 = vmatprep.subr.mxu0 0.0
    %3501 = vmatpush2.msra.mxu0 0.0
    %3502 = vmatprep.subr.mxu0 0.0
    %3503 = vmatpush2.msra.mxu0 0.0
    %3504 = vmatprep.subr.mxu0 0.0
    %3505 = vmatpush2.msra.mxu0 0.0
    %3506 = vmatprep.subr.mxu0 0.0
    %3507 = vmatpush2.msra.mxu0 0.0
    %3508 = vmatprep.subr.mxu0 0.0
    %3509 = vmatpush2.msra.mxu0 0.0
    %3510 = vmatprep.subr.mxu0 0.0
    %3511 = vmatpush2.msra.mxu0 0.0
    %3512 = vmatprep.subr.mxu0 0.0
    %3513 = vmatpush2.msra.mxu0 0.0
    %3514 = vmatprep.subr.mxu0 0.0
    %3515 = vmatpush2.msra.mxu0 0.0
    %3516 = vmatprep.subr.mxu0 0.0
    %3517 = vmatpush2.msra.mxu0 0.0
    %3518 = vmatprep.subr.mxu0 0.0
    %3519 = vmatpush2.msra.mxu0 0.0
    %3520 = vmatprep.subr.mxu0 0.0
    %3521 = vmatpush2.msra.mxu0 0.0
    %3522 = vmatprep.subr.mxu0 0.0
    %3523 = vmatpush2.msra.mxu0 0.0
    %3524 = vmatprep.subr.mxu0 0.0
    %3525 = vmatpush2.msra.mxu0 0.0
    %3526 = vmatprep.subr.mxu0 0.0
    %3527 = vmatpush2.msra.mxu0 0.0
    %3528 = vmatprep.subr.mxu0 0.0
    %3529 = vmatpush2.msra.mxu0 0.0
    %3530 = vmatprep.subr.mxu0 0.0
    %3531 = vmatpush2.msra.mxu0 0.0
    %3532 = vmatprep.mubr.f32.mxu0 0.0
    %3533 = vmatmul.mubr.f32.gmra.mxu0 %v3392
    %v3534 = vpop.f32.mrf.mxu0
    %v3535 = vadd.f32 0.0, %v3534
    %v3536 = vpop.f32.mrf.mxu0
    %v3537 = vadd.f32 0.0, %v3536
    %3538 = vdwg.mxu0
    %v3539 = vadd.f32 %v3393, %v3464
    %v3540 = vadd.f32 %v3394, %v3466
    %v3541 = vadd.f32 %v3395, %v3535
    %v3542 = vadd.f32 %v3396, %v3537
    %v3543 = vtanh.pop %v3539
    %v3544 = vxor.u32 %v3542, 2147483648
    %v3545 = vmul.f32 %v3544, 1.442695
    %v3546 = vpow.pop %v3545
    %v3547 = vadd.f32 %v3546, 1.0
    %v3548 = vrcp.pop %v3547
    %v3549 = vmul.f32 1.0, %v3548
    %v3550 = vadd.f32 %v3541, %v3378
    %v3551 = vmax.f32 %v3550, %v3540
    %v3552 = vsub.f32 %v3540, %v3551
    %v3553 = vmul.f32 %v3552, 1.442695
    %v3554 = vpow.pop %v3553
    %v3555 = vsub.f32 %v3550, %v3551
    %v3556 = vmul.f32 %v3555, 1.442695
    %v3557 = vpow.pop %v3556
    %v3558 = vmul.f32 %v3557, %v3387
    %v3559 = vmul.f32 %v3554, %v3543
    %v3560 = vadd.f32 %v3558, %v3559
    %v3561 = vmul.f32 %v3557, %v3389
    %v3562 = vadd.f32 %v3561, %v3554
    %v3563 = vmul.f32 %v3549, %v3560
    %v3564 = vrcp.pop %v3562
    %v3565 = vmul.f32 %v3563, %v3564
    %v3566 = vld [vmem:[%s1477] sm:$0xff]
    %v3567 = vld [vmem:[%s1477 + $0x8] sm:$0xff]
    %v3568 = vld [vmem:[%s1477 + $0x10] sm:$0xff]
    %v3569 = vld [vmem:[%s1477 + $0x18] sm:$0xff]
    %3570 = vmatprep.subr.mxu0 %v2875
    %3571 = vmatpush1.msra.mxu0 %v2874
    %3572 = vmatprep.subr.mxu0 %v2871
    %3573 = vmatpush1.msra.mxu0 %v2870
    %3574 = vmatprep.subr.mxu0 %v2867
    %3575 = vmatpush1.msra.mxu0 %v2866
    %3576 = vmatprep.subr.mxu0 %v2863
    %3577 = vmatpush1.msra.mxu0 %v2862
    %3578 = vmatprep.subr.mxu0 %v2859
    %3579 = vmatpush1.msra.mxu0 %v2858
    %3580 = vmatprep.subr.mxu0 %v2855
    %3581 = vmatpush1.msra.mxu0 %v2854
    %3582 = vmatprep.subr.mxu0 %v2851
    %3583 = vmatpush1.msra.mxu0 %v2850
    %3584 = vmatprep.subr.mxu0 %v2847
    %3585 = vmatpush1.msra.mxu0 %v2846
    %3586 = vmatprep.subr.mxu0 %v2843
    %3587 = vmatpush1.msra.mxu0 %v2842
    %3588 = vmatprep.subr.mxu0 %v2839
    %3589 = vmatpush1.msra.mxu0 %v2838
    %3590 = vmatprep.subr.mxu0 %v2835
    %3591 = vmatpush1.msra.mxu0 %v2834
    %3592 = vmatprep.subr.mxu0 %v2831
    %3593 = vmatpush1.msra.mxu0 %v2830
    %3594 = vmatprep.subr.mxu0 %v2827
    %3595 = vmatpush1.msra.mxu0 %v2826
    %3596 = vmatprep.subr.mxu0 %v2823
    %3597 = vmatpush1.msra.mxu0 %v2822
    %3598 = vmatprep.subr.mxu0 %v2819
    %3599 = vmatpush1.msra.mxu0 %v2818
    %3600 = vmatprep.subr.mxu0 %v2815
    %3601 = vmatpush1.msra.mxu0 %v2814
    %3602 = vmatprep.subr.mxu0 0.0
    %3603 = vmatpush2.msra.mxu0 0.0
    %3604 = vmatprep.subr.mxu0 0.0
    %3605 = vmatpush2.msra.mxu0 0.0
    %3606 = vmatprep.subr.mxu0 0.0
    %3607 = vmatpush2.msra.mxu0 0.0
    %3608 = vmatprep.subr.mxu0 0.0
    %3609 = vmatpush2.msra.mxu0 0.0
    %3610 = vmatprep.subr.mxu0 0.0
    %3611 = vmatpush2.msra.mxu0 0.0
    %3612 = vmatprep.subr.mxu0 0.0
    %3613 = vmatpush2.msra.mxu0 0.0
    %3614 = vmatprep.subr.mxu0 0.0
    %3615 = vmatpush2.msra.mxu0 0.0
    %3616 = vmatprep.subr.mxu0 0.0
    %3617 = vmatpush2.msra.mxu0 0.0
    %3618 = vmatprep.subr.mxu0 0.0
    %3619 = vmatpush2.msra.mxu0 0.0
    %3620 = vmatprep.subr.mxu0 0.0
    %3621 = vmatpush2.msra.mxu0 0.0
    %3622 = vmatprep.subr.mxu0 0.0
    %3623 = vmatpush2.msra.mxu0 0.0
    %3624 = vmatprep.subr.mxu0 0.0
    %3625 = vmatpush2.msra.mxu0 0.0
    %3626 = vmatprep.subr.mxu0 0.0
    %3627 = vmatpush2.msra.mxu0 0.0
    %3628 = vmatprep.subr.mxu0 0.0
    %3629 = vmatpush2.msra.mxu0 0.0
    %3630 = vmatprep.subr.mxu0 0.0
    %3631 = vmatpush2.msra.mxu0 0.0
    %3632 = vmatprep.subr.mxu0 0.0
    %3633 = vmatpush2.msra.mxu0 0.0
    %3634 = vmatprep.mubr.f32.mxu0 0.0
    %3635 = vmatmul.mubr.f32.gmra.mxu0 %v3565
    %v3636 = vpop.f32.mrf.mxu0
    %v3637 = vadd.f32 0.0, %v3636
    %v3638 = vpop.f32.mrf.mxu0
    %v3639 = vadd.f32 0.0, %v3638
    %3640 = vdwg.mxu0
    %3641 = vmatprep.subr.mxu0 %v2877
    %3642 = vmatpush1.msra.mxu0 %v2876
    %3643 = vmatprep.subr.mxu0 %v2873
    %3644 = vmatpush1.msra.mxu0 %v2872
    %3645 = vmatprep.subr.mxu0 %v2869
    %3646 = vmatpush1.msra.mxu0 %v2868
    %3647 = vmatprep.subr.mxu0 %v2865
    %3648 = vmatpush1.msra.mxu0 %v2864
    %3649 = vmatprep.subr.mxu0 %v2861
    %3650 = vmatpush1.msra.mxu0 %v2860
    %3651 = vmatprep.subr.mxu0 %v2857
    %3652 = vmatpush1.msra.mxu0 %v2856
    %3653 = vmatprep.subr.mxu0 %v2853
    %3654 = vmatpush1.msra.mxu0 %v2852
    %3655 = vmatprep.subr.mxu0 %v2849
    %3656 = vmatpush1.msra.mxu0 %v2848
    %3657 = vmatprep.subr.mxu0 %v2845
    %3658 = vmatpush1.msra.mxu0 %v2844
    %3659 = vmatprep.subr.mxu0 %v2841
    %3660 = vmatpush1.msra.mxu0 %v2840
    %3661 = vmatprep.subr.mxu0 %v2837
    %3662 = vmatpush1.msra.mxu0 %v2836
    %3663 = vmatprep.subr.mxu0 %v2833
    %3664 = vmatpush1.msra.mxu0 %v2832
    %3665 = vmatprep.subr.mxu0 %v2829
    %3666 = vmatpush1.msra.mxu0 %v2828
    %3667 = vmatprep.subr.mxu0 %v2825
    %3668 = vmatpush1.msra.mxu0 %v2824
    %3669 = vmatprep.subr.mxu0 %v2821
    %3670 = vmatpush1.msra.mxu0 %v2820
    %3671 = vmatprep.subr.mxu0 %v2817
    %3672 = vmatpush1.msra.mxu0 %v2816
    %3673 = vmatprep.subr.mxu0 0.0
    %3674 = vmatpush2.msra.mxu0 0.0
    %3675 = vmatprep.subr.mxu0 0.0
    %3676 = vmatpush2.msra.mxu0 0.0
    %3677 = vmatprep.subr.mxu0 0.0
    %3678 = vmatpush2.msra.mxu0 0.0
    %3679 = vmatprep.subr.mxu0 0.0
    %3680 = vmatpush2.msra.mxu0 0.0
    %3681 = vmatprep.subr.mxu0 0.0
    %3682 = vmatpush2.msra.mxu0 0.0
    %3683 = vmatprep.subr.mxu0 0.0
    %3684 = vmatpush2.msra.mxu0 0.0
    %3685 = vmatprep.subr.mxu0 0.0
    %3686 = vmatpush2.msra.mxu0 0.0
    %3687 = vmatprep.subr.mxu0 0.0
    %3688 = vmatpush2.msra.mxu0 0.0
    %3689 = vmatprep.subr.mxu0 0.0
    %3690 = vmatpush2.msra.mxu0 0.0
    %3691 = vmatprep.subr.mxu0 0.0
    %3692 = vmatpush2.msra.mxu0 0.0
    %3693 = vmatprep.subr.mxu0 0.0
    %3694 = vmatpush2.msra.mxu0 0.0
    %3695 = vmatprep.subr.mxu0 0.0
    %3696 = vmatpush2.msra.mxu0 0.0
    %3697 = vmatprep.subr.mxu0 0.0
    %3698 = vmatpush2.msra.mxu0 0.0
    %3699 = vmatprep.subr.mxu0 0.0
    %3700 = vmatpush2.msra.mxu0 0.0
    %3701 = vmatprep.subr.mxu0 0.0
    %3702 = vmatpush2.msra.mxu0 0.0
    %3703 = vmatprep.subr.mxu0 0.0
    %3704 = vmatpush2.msra.mxu0 0.0
    %3705 = vmatprep.mubr.f32.mxu0 0.0
    %3706 = vmatmul.mubr.f32.gmra.mxu0 %v3565
    %v3707 = vpop.f32.mrf.mxu0
    %v3708 = vadd.f32 0.0, %v3707
    %v3709 = vpop.f32.mrf.mxu0
    %v3710 = vadd.f32 0.0, %v3709
    %3711 = vdwg.mxu0
    %v3712 = vadd.f32 %v3566, %v3637
    %v3713 = vadd.f32 %v3567, %v3639
    %v3714 = vadd.f32 %v3568, %v3708
    %v3715 = vadd.f32 %v3569, %v3710
    %v3716 = vtanh.pop %v3712
    %v3717 = vxor.u32 %v3715, 2147483648
    %v3718 = vmul.f32 %v3717, 1.442695
    %v3719 = vpow.pop %v3718
    %v3720 = vadd.f32 %v3719, 1.0
    %v3721 = vrcp.pop %v3720
    %v3722 = vmul.f32 1.0, %v3721
    %v3723 = vadd.f32 %v3714, %v3551
    %v3724 = vmax.f32 %v3723, %v3713
    %v3725 = vsub.f32 %v3713, %v3724
    %v3726 = vmul.f32 %v3725, 1.442695
    %v3727 = vpow.pop %v3726
    %v3728 = vsub.f32 %v3723, %v3724
    %v3729 = vmul.f32 %v3728, 1.442695
    %v3730 = vpow.pop %v3729
    %v3731 = vmul.f32 %v3730, %v3560
    %v3732 = vmul.f32 %v3727, %v3716
    %v3733 = vadd.f32 %v3731, %v3732
    %v3734 = vmul.f32 %v3730, %v3562
    %v3735 = vadd.f32 %v3734, %v3727
    %v3736 = vmul.f32 %v3722, %v3733
    %v3737 = vrcp.pop %v3735
    %v3738 = vmul.f32 %v3736, %v3737
    %v3739 = vld [vmem:[%s1719] sm:$0xff]
    %v3740 = vld [vmem:[%s1719 + $0x8] sm:$0xff]
    %v3741 = vld [vmem:[%s1719 + $0x10] sm:$0xff]
    %v3742 = vld [vmem:[%s1719 + $0x18] sm:$0xff]
    %3743 = vmatprep.subr.mxu0 %v2875
    %3744 = vmatpush1.msra.mxu0 %v2874
    %3745 = vmatprep.subr.mxu0 %v2871
    %3746 = vmatpush1.msra.mxu0 %v2870
    %3747 = vmatprep.subr.mxu0 %v2867
    %3748 = vmatpush1.msra.mxu0 %v2866
    %3749 = vmatprep.subr.mxu0 %v2863
    %3750 = vmatpush1.msra.mxu0 %v2862
    %3751 = vmatprep.subr.mxu0 %v2859
    %3752 = vmatpush1.msra.mxu0 %v2858
    %3753 = vmatprep.subr.mxu0 %v2855
    %3754 = vmatpush1.msra.mxu0 %v2854
    %3755 = vmatprep.subr.mxu0 %v2851
    %3756 = vmatpush1.msra.mxu0 %v2850
    %3757 = vmatprep.subr.mxu0 %v2847
    %3758 = vmatpush1.msra.mxu0 %v2846
    %3759 = vmatprep.subr.mxu0 %v2843
    %3760 = vmatpush1.msra.mxu0 %v2842
    %3761 = vmatprep.subr.mxu0 %v2839
    %3762 = vmatpush1.msra.mxu0 %v2838
    %3763 = vmatprep.subr.mxu0 %v2835
    %3764 = vmatpush1.msra.mxu0 %v2834
    %3765 = vmatprep.subr.mxu0 %v2831
    %3766 = vmatpush1.msra.mxu0 %v2830
    %3767 = vmatprep.subr.mxu0 %v2827
    %3768 = vmatpush1.msra.mxu0 %v2826
    %3769 = vmatprep.subr.mxu0 %v2823
    %3770 = vmatpush1.msra.mxu0 %v2822
    %3771 = vmatprep.subr.mxu0 %v2819
    %3772 = vmatpush1.msra.mxu0 %v2818
    %3773 = vmatprep.subr.mxu0 %v2815
    %3774 = vmatpush1.msra.mxu0 %v2814
    %3775 = vmatprep.subr.mxu0 0.0
    %3776 = vmatpush2.msra.mxu0 0.0
    %3777 = vmatprep.subr.mxu0 0.0
    %3778 = vmatpush2.msra.mxu0 0.0
    %3779 = vmatprep.subr.mxu0 0.0
    %3780 = vmatpush2.msra.mxu0 0.0
    %3781 = vmatprep.subr.mxu0 0.0
    %3782 = vmatpush2.msra.mxu0 0.0
    %3783 = vmatprep.subr.mxu0 0.0
    %3784 = vmatpush2.msra.mxu0 0.0
    %3785 = vmatprep.subr.mxu0 0.0
    %3786 = vmatpush2.msra.mxu0 0.0
    %3787 = vmatprep.subr.mxu0 0.0
    %3788 = vmatpush2.msra.mxu0 0.0
    %3789 = vmatprep.subr.mxu0 0.0
    %3790 = vmatpush2.msra.mxu0 0.0
    %3791 = vmatprep.subr.mxu0 0.0
    %3792 = vmatpush2.msra.mxu0 0.0
    %3793 = vmatprep.subr.mxu0 0.0
    %3794 = vmatpush2.msra.mxu0 0.0
    %3795 = vmatprep.subr.mxu0 0.0
    %3796 = vmatpush2.msra.mxu0 0.0
    %3797 = vmatprep.subr.mxu0 0.0
    %3798 = vmatpush2.msra.mxu0 0.0
    %3799 = vmatprep.subr.mxu0 0.0
    %3800 = vmatpush2.msra.mxu0 0.0
    %3801 = vmatprep.subr.mxu0 0.0
    %3802 = vmatpush2.msra.mxu0 0.0
    %3803 = vmatprep.subr.mxu0 0.0
    %3804 = vmatpush2.msra.mxu0 0.0
    %3805 = vmatprep.subr.mxu0 0.0
    %3806 = vmatpush2.msra.mxu0 0.0
    %3807 = vmatprep.mubr.f32.mxu0 0.0
    %3808 = vmatmul.mubr.f32.gmra.mxu0 %v3738
    %v3809 = vpop.f32.mrf.mxu0
    %v3810 = vadd.f32 0.0, %v3809
    %v3811 = vpop.f32.mrf.mxu0
    %v3812 = vadd.f32 0.0, %v3811
    %3813 = vdwg.mxu0
    %3814 = vmatprep.subr.mxu0 %v2877
    %3815 = vmatpush1.msra.mxu0 %v2876
    %3816 = vmatprep.subr.mxu0 %v2873
    %3817 = vmatpush1.msra.mxu0 %v2872
    %3818 = vmatprep.subr.mxu0 %v2869
    %3819 = vmatpush1.msra.mxu0 %v2868
    %3820 = vmatprep.subr.mxu0 %v2865
    %3821 = vmatpush1.msra.mxu0 %v2864
    %3822 = vmatprep.subr.mxu0 %v2861
    %3823 = vmatpush1.msra.mxu0 %v2860
    %3824 = vmatprep.subr.mxu0 %v2857
    %3825 = vmatpush1.msra.mxu0 %v2856
    %3826 = vmatprep.subr.mxu0 %v2853
    %3827 = vmatpush1.msra.mxu0 %v2852
    %3828 = vmatprep.subr.mxu0 %v2849
    %3829 = vmatpush1.msra.mxu0 %v2848
    %3830 = vmatprep.subr.mxu0 %v2845
    %3831 = vmatpush1.msra.mxu0 %v2844
    %3832 = vmatprep.subr.mxu0 %v2841
    %3833 = vmatpush1.msra.mxu0 %v2840
    %3834 = vmatprep.subr.mxu0 %v2837
    %3835 = vmatpush1.msra.mxu0 %v2836
    %3836 = vmatprep.subr.mxu0 %v2833
    %3837 = vmatpush1.msra.mxu0 %v2832
    %3838 = vmatprep.subr.mxu0 %v2829
    %3839 = vmatpush1.msra.mxu0 %v2828
    %3840 = vmatprep.subr.mxu0 %v2825
    %3841 = vmatpush1.msra.mxu0 %v2824
    %3842 = vmatprep.subr.mxu0 %v2821
    %3843 = vmatpush1.msra.mxu0 %v2820
    %3844 = vmatprep.subr.mxu0 %v2817
    %3845 = vmatpush1.msra.mxu0 %v2816
    %3846 = vmatprep.subr.mxu0 0.0
    %3847 = vmatpush2.msra.mxu0 0.0
    %3848 = vmatprep.subr.mxu0 0.0
    %3849 = vmatpush2.msra.mxu0 0.0
    %3850 = vmatprep.subr.mxu0 0.0
    %3851 = vmatpush2.msra.mxu0 0.0
    %3852 = vmatprep.subr.mxu0 0.0
    %3853 = vmatpush2.msra.mxu0 0.0
    %3854 = vmatprep.subr.mxu0 0.0
    %3855 = vmatpush2.msra.mxu0 0.0
    %3856 = vmatprep.subr.mxu0 0.0
    %3857 = vmatpush2.msra.mxu0 0.0
    %3858 = vmatprep.subr.mxu0 0.0
    %3859 = vmatpush2.msra.mxu0 0.0
    %3860 = vmatprep.subr.mxu0 0.0
    %3861 = vmatpush2.msra.mxu0 0.0
    %3862 = vmatprep.subr.mxu0 0.0
    %3863 = vmatpush2.msra.mxu0 0.0
    %3864 = vmatprep.subr.mxu0 0.0
    %3865 = vmatpush2.msra.mxu0 0.0
    %3866 = vmatprep.subr.mxu0 0.0
    %3867 = vmatpush2.msra.mxu0 0.0
    %3868 = vmatprep.subr.mxu0 0.0
    %3869 = vmatpush2.msra.mxu0 0.0
    %3870 = vmatprep.subr.mxu0 0.0
    %3871 = vmatpush2.msra.mxu0 0.0
    %3872 = vmatprep.subr.mxu0 0.0
    %3873 = vmatpush2.msra.mxu0 0.0
    %3874 = vmatprep.subr.mxu0 0.0
    %3875 = vmatpush2.msra.mxu0 0.0
    %3876 = vmatprep.subr.mxu0 0.0
    %3877 = vmatpush2.msra.mxu0 0.0
    %3878 = vmatprep.mubr.f32.mxu0 0.0
    %3879 = vmatmul.mubr.f32.gmra.mxu0 %v3738
    %v3880 = vpop.f32.mrf.mxu0
    %v3881 = vadd.f32 0.0, %v3880
    %v3882 = vpop.f32.mrf.mxu0
    %v3883 = vadd.f32 0.0, %v3882
    %3884 = vdwg.mxu0
    %v3885 = vadd.f32 %v3739, %v3810
    %v3886 = vadd.f32 %v3740, %v3812
    %v3887 = vadd.f32 %v3741, %v3881
    %v3888 = vadd.f32 %v3742, %v3883
    %v3889 = vtanh.pop %v3885
    %v3890 = vxor.u32 %v3888, 2147483648
    %v3891 = vmul.f32 %v3890, 1.442695
    %v3892 = vpow.pop %v3891
    %v3893 = vadd.f32 %v3892, 1.0
    %v3894 = vrcp.pop %v3893
    %v3895 = vmul.f32 1.0, %v3894
    %v3896 = vadd.f32 %v3887, %v3724
    %v3897 = vmax.f32 %v3896, %v3886
    %v3898 = vsub.f32 %v3886, %v3897
    %v3899 = vmul.f32 %v3898, 1.442695
    %v3900 = vpow.pop %v3899
    %v3901 = vsub.f32 %v3896, %v3897
    %v3902 = vmul.f32 %v3901, 1.442695
    %v3903 = vpow.pop %v3902
    %v3904 = vmul.f32 %v3903, %v3733
    %v3905 = vmul.f32 %v3900, %v3889
    %v3906 = vadd.f32 %v3904, %v3905
    %v3907 = vmul.f32 %v3903, %v3735
    %v3908 = vadd.f32 %v3907, %v3900
    %v3909 = vmul.f32 %v3895, %v3906
    %v3910 = vrcp.pop %v3908
    %v3911 = vmul.f32 %v3909, %v3910
    %v3912 = vld [vmem:[%s1961] sm:$0xff]
    %v3913 = vld [vmem:[%s1961 + $0x8] sm:$0xff]
    %v3914 = vld [vmem:[%s1961 + $0x10] sm:$0xff]
    %v3915 = vld [vmem:[%s1961 + $0x18] sm:$0xff]
    %3916 = vmatprep.subr.mxu0 %v2875
    %3917 = vmatpush1.msra.mxu0 %v2874
    %3918 = vmatprep.subr.mxu0 %v2871
    %3919 = vmatpush1.msra.mxu0 %v2870
    %3920 = vmatprep.subr.mxu0 %v2867
    %3921 = vmatpush1.msra.mxu0 %v2866
    %3922 = vmatprep.subr.mxu0 %v2863
    %3923 = vmatpush1.msra.mxu0 %v2862
    %3924 = vmatprep.subr.mxu0 %v2859
    %3925 = vmatpush1.msra.mxu0 %v2858
    %3926 = vmatprep.subr.mxu0 %v2855
    %3927 = vmatpush1.msra.mxu0 %v2854
    %3928 = vmatprep.subr.mxu0 %v2851
    %3929 = vmatpush1.msra.mxu0 %v2850
    %3930 = vmatprep.subr.mxu0 %v2847
    %3931 = vmatpush1.msra.mxu0 %v2846
    %3932 = vmatprep.subr.mxu0 %v2843
    %3933 = vmatpush1.msra.mxu0 %v2842
    %3934 = vmatprep.subr.mxu0 %v2839
    %3935 = vmatpush1.msra.mxu0 %v2838
    %3936 = vmatprep.subr.mxu0 %v2835
    %3937 = vmatpush1.msra.mxu0 %v2834
    %3938 = vmatprep.subr.mxu0 %v2831
    %3939 = vmatpush1.msra.mxu0 %v2830
    %3940 = vmatprep.subr.mxu0 %v2827
    %3941 = vmatpush1.msra.mxu0 %v2826
    %3942 = vmatprep.subr.mxu0 %v2823
    %3943 = vmatpush1.msra.mxu0 %v2822
    %3944 = vmatprep.subr.mxu0 %v2819
    %3945 = vmatpush1.msra.mxu0 %v2818
    %3946 = vmatprep.subr.mxu0 %v2815
    %3947 = vmatpush1.msra.mxu0 %v2814
    %3948 = vmatprep.subr.mxu0 0.0
    %3949 = vmatpush2.msra.mxu0 0.0
    %3950 = vmatprep.subr.mxu0 0.0
    %3951 = vmatpush2.msra.mxu0 0.0
    %3952 = vmatprep.subr.mxu0 0.0
    %3953 = vmatpush2.msra.mxu0 0.0
    %3954 = vmatprep.subr.mxu0 0.0
    %3955 = vmatpush2.msra.mxu0 0.0
    %3956 = vmatprep.subr.mxu0 0.0
    %3957 = vmatpush2.msra.mxu0 0.0
    %3958 = vmatprep.subr.mxu0 0.0
    %3959 = vmatpush2.msra.mxu0 0.0
    %3960 = vmatprep.subr.mxu0 0.0
    %3961 = vmatpush2.msra.mxu0 0.0
    %3962 = vmatprep.subr.mxu0 0.0
    %3963 = vmatpush2.msra.mxu0 0.0
    %3964 = vmatprep.subr.mxu0 0.0
    %3965 = vmatpush2.msra.mxu0 0.0
    %3966 = vmatprep.subr.mxu0 0.0
    %3967 = vmatpush2.msra.mxu0 0.0
    %3968 = vmatprep.subr.mxu0 0.0
    %3969 = vmatpush2.msra.mxu0 0.0
    %3970 = vmatprep.subr.mxu0 0.0
    %3971 = vmatpush2.msra.mxu0 0.0
    %3972 = vmatprep.subr.mxu0 0.0
    %3973 = vmatpush2.msra.mxu0 0.0
    %3974 = vmatprep.subr.mxu0 0.0
    %3975 = vmatpush2.msra.mxu0 0.0
    %3976 = vmatprep.subr.mxu0 0.0
    %3977 = vmatpush2.msra.mxu0 0.0
    %3978 = vmatprep.subr.mxu0 0.0
    %3979 = vmatpush2.msra.mxu0 0.0
    %3980 = vmatprep.mubr.f32.mxu0 0.0
    %3981 = vmatmul.mubr.f32.gmra.mxu0 %v3911
    %v3982 = vpop.f32.mrf.mxu0
    %v3983 = vadd.f32 0.0, %v3982
    %v3984 = vpop.f32.mrf.mxu0
    %v3985 = vadd.f32 0.0, %v3984
    %3986 = vdwg.mxu0
    %3987 = vmatprep.subr.mxu0 %v2877
    %3988 = vmatpush1.msra.mxu0 %v2876
    %3989 = vmatprep.subr.mxu0 %v2873
    %3990 = vmatpush1.msra.mxu0 %v2872
    %3991 = vmatprep.subr.mxu0 %v2869
    %3992 = vmatpush1.msra.mxu0 %v2868
    %3993 = vmatprep.subr.mxu0 %v2865
    %3994 = vmatpush1.msra.mxu0 %v2864
    %3995 = vmatprep.subr.mxu0 %v2861
    %3996 = vmatpush1.msra.mxu0 %v2860
    %3997 = vmatprep.subr.mxu0 %v2857
    %3998 = vmatpush1.msra.mxu0 %v2856
    %3999 = vmatprep.subr.mxu0 %v2853
    %4000 = vmatpush1.msra.mxu0 %v2852
    %4001 = vmatprep.subr.mxu0 %v2849
    %4002 = vmatpush1.msra.mxu0 %v2848
    %4003 = vmatprep.subr.mxu0 %v2845
    %4004 = vmatpush1.msra.mxu0 %v2844
    %4005 = vmatprep.subr.mxu0 %v2841
    %4006 = vmatpush1.msra.mxu0 %v2840
    %4007 = vmatprep.subr.mxu0 %v2837
    %4008 = vmatpush1.msra.mxu0 %v2836
    %4009 = vmatprep.subr.mxu0 %v2833
    %4010 = vmatpush1.msra.mxu0 %v2832
    %4011 = vmatprep.subr.mxu0 %v2829
    %4012 = vmatpush1.msra.mxu0 %v2828
    %4013 = vmatprep.subr.mxu0 %v2825
    %4014 = vmatpush1.msra.mxu0 %v2824
    %4015 = vmatprep.subr.mxu0 %v2821
    %4016 = vmatpush1.msra.mxu0 %v2820
    %4017 = vmatprep.subr.mxu0 %v2817
    %4018 = vmatpush1.msra.mxu0 %v2816
    %4019 = vmatprep.subr.mxu0 0.0
    %4020 = vmatpush2.msra.mxu0 0.0
    %4021 = vmatprep.subr.mxu0 0.0
    %4022 = vmatpush2.msra.mxu0 0.0
    %4023 = vmatprep.subr.mxu0 0.0
    %4024 = vmatpush2.msra.mxu0 0.0
    %4025 = vmatprep.subr.mxu0 0.0
    %4026 = vmatpush2.msra.mxu0 0.0
    %4027 = vmatprep.subr.mxu0 0.0
    %4028 = vmatpush2.msra.mxu0 0.0
    %4029 = vmatprep.subr.mxu0 0.0
    %4030 = vmatpush2.msra.mxu0 0.0
    %4031 = vmatprep.subr.mxu0 0.0
    %4032 = vmatpush2.msra.mxu0 0.0
    %4033 = vmatprep.subr.mxu0 0.0
    %4034 = vmatpush2.msra.mxu0 0.0
    %4035 = vmatprep.subr.mxu0 0.0
    %4036 = vmatpush2.msra.mxu0 0.0
    %4037 = vmatprep.subr.mxu0 0.0
    %4038 = vmatpush2.msra.mxu0 0.0
    %4039 = vmatprep.subr.mxu0 0.0
    %4040 = vmatpush2.msra.mxu0 0.0
    %4041 = vmatprep.subr.mxu0 0.0
    %4042 = vmatpush2.msra.mxu0 0.0
    %4043 = vmatprep.subr.mxu0 0.0
    %4044 = vmatpush2.msra.mxu0 0.0
    %4045 = vmatprep.subr.mxu0 0.0
    %4046 = vmatpush2.msra.mxu0 0.0
    %4047 = vmatprep.subr.mxu0 0.0
    %4048 = vmatpush2.msra.mxu0 0.0
    %4049 = vmatprep.subr.mxu0 0.0
    %4050 = vmatpush2.msra.mxu0 0.0
    %4051 = vmatprep.mubr.f32.mxu0 0.0
    %4052 = vmatmul.mubr.f32.gmra.mxu0 %v3911
    %v4053 = vpop.f32.mrf.mxu0
    %v4054 = vadd.f32 0.0, %v4053
    %v4055 = vpop.f32.mrf.mxu0
    %v4056 = vadd.f32 0.0, %v4055
    %4057 = vdwg.mxu0
    %v4058 = vadd.f32 %v3912, %v3983
    %v4059 = vadd.f32 %v3913, %v3985
    %v4060 = vadd.f32 %v3914, %v4054
    %v4061 = vadd.f32 %v3915, %v4056
    %v4062 = vtanh.pop %v4058
    %v4063 = vxor.u32 %v4061, 2147483648
    %v4064 = vmul.f32 %v4063, 1.442695
    %v4065 = vpow.pop %v4064
    %v4066 = vadd.f32 %v4065, 1.0
    %v4067 = vrcp.pop %v4066
    %v4068 = vmul.f32 1.0, %v4067
    %v4069 = vadd.f32 %v4060, %v3897
    %v4070 = vmax.f32 %v4069, %v4059
    %v4071 = vsub.f32 %v4059, %v4070
    %v4072 = vmul.f32 %v4071, 1.442695
    %v4073 = vpow.pop %v4072
    %v4074 = vsub.f32 %v4069, %v4070
    %v4075 = vmul.f32 %v4074, 1.442695
    %v4076 = vpow.pop %v4075
    %v4077 = vmul.f32 %v4076, %v3906
    %v4078 = vmul.f32 %v4073, %v4062
    %v4079 = vadd.f32 %v4077, %v4078
    %v4080 = vmul.f32 %v4076, %v3908
    %v4081 = vadd.f32 %v4080, %v4073
    %v4082 = vmul.f32 %v4068, %v4079
    %v4083 = vrcp.pop %v4081
    %v4084 = vmul.f32 %v4082, %v4083
    %v4085 = vld [vmem:[%s2203] sm:$0xff]
    %v4086 = vld [vmem:[%s2203 + $0x8] sm:$0xff]
    %v4087 = vld [vmem:[%s2203 + $0x10] sm:$0xff]
    %v4088 = vld [vmem:[%s2203 + $0x18] sm:$0xff]
    %4089 = vmatprep.subr.mxu0 %v2875
    %4090 = vmatpush1.msra.mxu0 %v2874
    %4091 = vmatprep.subr.mxu0 %v2871
    %4092 = vmatpush1.msra.mxu0 %v2870
    %4093 = vmatprep.subr.mxu0 %v2867
    %4094 = vmatpush1.msra.mxu0 %v2866
    %4095 = vmatprep.subr.mxu0 %v2863
    %4096 = vmatpush1.msra.mxu0 %v2862
    %4097 = vmatprep.subr.mxu0 %v2859
    %4098 = vmatpush1.msra.mxu0 %v2858
    %4099 = vmatprep.subr.mxu0 %v2855
    %4100 = vmatpush1.msra.mxu0 %v2854
    %4101 = vmatprep.subr.mxu0 %v2851
    %4102 = vmatpush1.msra.mxu0 %v2850
    %4103 = vmatprep.subr.mxu0 %v2847
    %4104 = vmatpush1.msra.mxu0 %v2846
    %4105 = vmatprep.subr.mxu0 %v2843
    %4106 = vmatpush1.msra.mxu0 %v2842
    %4107 = vmatprep.subr.mxu0 %v2839
    %4108 = vmatpush1.msra.mxu0 %v2838
    %4109 = vmatprep.subr.mxu0 %v2835
    %4110 = vmatpush1.msra.mxu0 %v2834
    %4111 = vmatprep.subr.mxu0 %v2831
    %4112 = vmatpush1.msra.mxu0 %v2830
    %4113 = vmatprep.subr.mxu0 %v2827
    %4114 = vmatpush1.msra.mxu0 %v2826
    %4115 = vmatprep.subr.mxu0 %v2823
    %4116 = vmatpush1.msra.mxu0 %v2822
    %4117 = vmatprep.subr.mxu0 %v2819
    %4118 = vmatpush1.msra.mxu0 %v2818
    %4119 = vmatprep.subr.mxu0 %v2815
    %4120 = vmatpush1.msra.mxu0 %v2814
    %4121 = vmatprep.subr.mxu0 0.0
    %4122 = vmatpush2.msra.mxu0 0.0
    %4123 = vmatprep.subr.mxu0 0.0
    %4124 = vmatpush2.msra.mxu0 0.0
    %4125 = vmatprep.subr.mxu0 0.0
    %4126 = vmatpush2.msra.mxu0 0.0
    %4127 = vmatprep.subr.mxu0 0.0
    %4128 = vmatpush2.msra.mxu0 0.0
    %4129 = vmatprep.subr.mxu0 0.0
    %4130 = vmatpush2.msra.mxu0 0.0
    %4131 = vmatprep.subr.mxu0 0.0
    %4132 = vmatpush2.msra.mxu0 0.0
    %4133 = vmatprep.subr.mxu0 0.0
    %4134 = vmatpush2.msra.mxu0 0.0
    %4135 = vmatprep.subr.mxu0 0.0
    %4136 = vmatpush2.msra.mxu0 0.0
    %4137 = vmatprep.subr.mxu0 0.0
    %4138 = vmatpush2.msra.mxu0 0.0
    %4139 = vmatprep.subr.mxu0 0.0
    %4140 = vmatpush2.msra.mxu0 0.0
    %4141 = vmatprep.subr.mxu0 0.0
    %4142 = vmatpush2.msra.mxu0 0.0
    %4143 = vmatprep.subr.mxu0 0.0
    %4144 = vmatpush2.msra.mxu0 0.0
    %4145 = vmatprep.subr.mxu0 0.0
    %4146 = vmatpush2.msra.mxu0 0.0
    %4147 = vmatprep.subr.mxu0 0.0
    %4148 = vmatpush2.msra.mxu0 0.0
    %4149 = vmatprep.subr.mxu0 0.0
    %4150 = vmatpush2.msra.mxu0 0.0
    %4151 = vmatprep.subr.mxu0 0.0
    %4152 = vmatpush2.msra.mxu0 0.0
    %4153 = vmatprep.mubr.f32.mxu0 0.0
    %4154 = vmatmul.mubr.f32.gmra.mxu0 %v4084
    %v4155 = vpop.f32.mrf.mxu0
    %v4156 = vadd.f32 0.0, %v4155
    %v4157 = vpop.f32.mrf.mxu0
    %v4158 = vadd.f32 0.0, %v4157
    %4159 = vdwg.mxu0
    %4160 = vmatprep.subr.mxu0 %v2877
    %4161 = vmatpush1.msra.mxu0 %v2876
    %4162 = vmatprep.subr.mxu0 %v2873
    %4163 = vmatpush1.msra.mxu0 %v2872
    %4164 = vmatprep.subr.mxu0 %v2869
    %4165 = vmatpush1.msra.mxu0 %v2868
    %4166 = vmatprep.subr.mxu0 %v2865
    %4167 = vmatpush1.msra.mxu0 %v2864
    %4168 = vmatprep.subr.mxu0 %v2861
    %4169 = vmatpush1.msra.mxu0 %v2860
    %4170 = vmatprep.subr.mxu0 %v2857
    %4171 = vmatpush1.msra.mxu0 %v2856
    %4172 = vmatprep.subr.mxu0 %v2853
    %4173 = vmatpush1.msra.mxu0 %v2852
    %4174 = vmatprep.subr.mxu0 %v2849
    %4175 = vmatpush1.msra.mxu0 %v2848
    %4176 = vmatprep.subr.mxu0 %v2845
    %4177 = vmatpush1.msra.mxu0 %v2844
    %4178 = vmatprep.subr.mxu0 %v2841
    %4179 = vmatpush1.msra.mxu0 %v2840
    %4180 = vmatprep.subr.mxu0 %v2837
    %4181 = vmatpush1.msra.mxu0 %v2836
    %4182 = vmatprep.subr.mxu0 %v2833
    %4183 = vmatpush1.msra.mxu0 %v2832
    %4184 = vmatprep.subr.mxu0 %v2829
    %4185 = vmatpush1.msra.mxu0 %v2828
    %4186 = vmatprep.subr.mxu0 %v2825
    %4187 = vmatpush1.msra.mxu0 %v2824
    %4188 = vmatprep.subr.mxu0 %v2821
    %4189 = vmatpush1.msra.mxu0 %v2820
    %4190 = vmatprep.subr.mxu0 %v2817
    %4191 = vmatpush1.msra.mxu0 %v2816
    %4192 = vmatprep.subr.mxu0 0.0
    %4193 = vmatpush2.msra.mxu0 0.0
    %4194 = vmatprep.subr.mxu0 0.0
    %4195 = vmatpush2.msra.mxu0 0.0
    %4196 = vmatprep.subr.mxu0 0.0
    %4197 = vmatpush2.msra.mxu0 0.0
    %4198 = vmatprep.subr.mxu0 0.0
    %4199 = vmatpush2.msra.mxu0 0.0
    %4200 = vmatprep.subr.mxu0 0.0
    %4201 = vmatpush2.msra.mxu0 0.0
    %4202 = vmatprep.subr.mxu0 0.0
    %4203 = vmatpush2.msra.mxu0 0.0
    %4204 = vmatprep.subr.mxu0 0.0
    %4205 = vmatpush2.msra.mxu0 0.0
    %4206 = vmatprep.subr.mxu0 0.0
    %4207 = vmatpush2.msra.mxu0 0.0
    %4208 = vmatprep.subr.mxu0 0.0
    %4209 = vmatpush2.msra.mxu0 0.0
    %4210 = vmatprep.subr.mxu0 0.0
    %4211 = vmatpush2.msra.mxu0 0.0
    %4212 = vmatprep.subr.mxu0 0.0
    %4213 = vmatpush2.msra.mxu0 0.0
    %4214 = vmatprep.subr.mxu0 0.0
    %4215 = vmatpush2.msra.mxu0 0.0
    %4216 = vmatprep.subr.mxu0 0.0
    %4217 = vmatpush2.msra.mxu0 0.0
    %4218 = vmatprep.subr.mxu0 0.0
    %4219 = vmatpush2.msra.mxu0 0.0
    %4220 = vmatprep.subr.mxu0 0.0
    %4221 = vmatpush2.msra.mxu0 0.0
    %4222 = vmatprep.subr.mxu0 0.0
    %4223 = vmatpush2.msra.mxu0 0.0
    %4224 = vmatprep.mubr.f32.mxu0 0.0
    %4225 = vmatmul.mubr.f32.gmra.mxu0 %v4084
    %v4226 = vpop.f32.mrf.mxu0
    %v4227 = vadd.f32 0.0, %v4226
    %v4228 = vpop.f32.mrf.mxu0
    %v4229 = vadd.f32 0.0, %v4228
    %4230 = vdwg.mxu0
    %v4231 = vadd.f32 %v4085, %v4156
    %v4232 = vadd.f32 %v4086, %v4158
    %v4233 = vadd.f32 %v4087, %v4227
    %v4234 = vadd.f32 %v4088, %v4229
    %v4235 = vtanh.pop %v4231
    %v4236 = vxor.u32 %v4234, 2147483648
    %v4237 = vmul.f32 %v4236, 1.442695
    %v4238 = vpow.pop %v4237
    %v4239 = vadd.f32 %v4238, 1.0
    %v4240 = vrcp.pop %v4239
    %v4241 = vmul.f32 1.0, %v4240
    %v4242 = vadd.f32 %v4233, %v4070
    %v4243 = vmax.f32 %v4242, %v4232
    %v4244 = vsub.f32 %v4232, %v4243
    %v4245 = vmul.f32 %v4244, 1.442695
    %v4246 = vpow.pop %v4245
    %v4247 = vsub.f32 %v4242, %v4243
    %v4248 = vmul.f32 %v4247, 1.442695
    %v4249 = vpow.pop %v4248
    %v4250 = vmul.f32 %v4249, %v4079
    %v4251 = vmul.f32 %v4246, %v4235
    %v4252 = vadd.f32 %v4250, %v4251
    %v4253 = vmul.f32 %v4249, %v4081
    %v4254 = vadd.f32 %v4253, %v4246
    %v4255 = vmul.f32 %v4241, %v4252
    %v4256 = vrcp.pop %v4254
    %v4257 = vmul.f32 %v4255, %v4256
    %4258 = vst [vmem:[%s2801] sm:$0xff] %v4257
    %4259 = vst [vmem:[%s2803] sm:$0xff] %v4252
    %4260 = vst [vmem:[%s2805] sm:$0xff] %v4254
    %4261 = vst [vmem:[%s2807] sm:$0xff] %v4243
    // Predicated region
    $region60: #{tpu_custom_call.1} parent=1 // pred_check
      %p4262 = pneg %p28
    $region61: #{tpu_custom_call.1} parent=1 // pred_check_branch
      %4264 = sbr.rel (%p4262) target = $region63
    $region62: #{tpu_custom_call.1} parent=1 // pred_region
      %v4265 = vld [vmem:[%s2801] sm:$0xff]
      %v4266 = vld [vmem:[#allocation5] sm:$0xff]
      %v4267 = vld [vmem:[#allocation5 + $0x8] sm:$0xff]
      %v4268 = vld [vmem:[#allocation5 + $0x10] sm:$0xff]
      %v4269 = vld [vmem:[#allocation5 + $0x18] sm:$0xff]
      %v4270 = vld [vmem:[#allocation5 + $0x20] sm:$0xff]
      %v4271 = vld [vmem:[#allocation5 + $0x28] sm:$0xff]
      %v4272 = vld [vmem:[#allocation5 + $0x30] sm:$0xff]
      %v4273 = vld [vmem:[#allocation5 + $0x38] sm:$0xff]
      %v4274 = vld [vmem:[#allocation5 + $0x40] sm:$0xff]
      %v4275 = vld [vmem:[#allocation5 + $0x48] sm:$0xff]
      %v4276 = vld [vmem:[#allocation5 + $0x50] sm:$0xff]
      %v4277 = vld [vmem:[#allocation5 + $0x58] sm:$0xff]
      %v4278 = vld [vmem:[#allocation5 + $0x60] sm:$0xff]
      %v4279 = vld [vmem:[#allocation5 + $0x68] sm:$0xff]
      %v4280 = vld [vmem:[#allocation5 + $0x70] sm:$0xff]
      %v4281 = vld [vmem:[#allocation5 + $0x78] sm:$0xff]
      %v4282 = vld [vmem:[#allocation6] sm:$0x1]
      %v4284 = vlaneseq
      %v4285 = vshrl.u32 %v4284, 7
      %v4286 = vsub.s32 0, %v4285
      %v4287 = vrot.slane %v4282, %v4286
      %4289 = vmatprep.subr.mxu0 0.0
      %4290 = vmatpush1.msra.mxu0 %v4281
      %4291 = vmatprep.subr.mxu0 0.0
      %4292 = vmatpush1.msra.mxu0 %v4280
      %4293 = vmatprep.subr.mxu0 0.0
      %4294 = vmatpush1.msra.mxu0 %v4279
      %4295 = vmatprep.subr.mxu0 0.0
      %4296 = vmatpush1.msra.mxu0 %v4278
      %4297 = vmatprep.subr.mxu0 0.0
      %4298 = vmatpush1.msra.mxu0 %v4277
      %4299 = vmatprep.subr.mxu0 0.0
      %4300 = vmatpush1.msra.mxu0 %v4276
      %4301 = vmatprep.subr.mxu0 0.0
      %4302 = vmatpush1.msra.mxu0 %v4275
      %4303 = vmatprep.subr.mxu0 0.0
      %4304 = vmatpush1.msra.mxu0 %v4274
      %4305 = vmatprep.subr.mxu0 0.0
      %4306 = vmatpush1.msra.mxu0 %v4273
      %4307 = vmatprep.subr.mxu0 0.0
      %4308 = vmatpush1.msra.mxu0 %v4272
      %4309 = vmatprep.subr.mxu0 0.0
      %4310 = vmatpush1.msra.mxu0 %v4271
      %4311 = vmatprep.subr.mxu0 0.0
      %4312 = vmatpush1.msra.mxu0 %v4270
      %4313 = vmatprep.subr.mxu0 0.0
      %4314 = vmatpush1.msra.mxu0 %v4269
      %4315 = vmatprep.subr.mxu0 0.0
      %4316 = vmatpush1.msra.mxu0 %v4268
      %4317 = vmatprep.subr.mxu0 0.0
      %4318 = vmatpush1.msra.mxu0 %v4267
      %4319 = vmatprep.subr.mxu0 0.0
      %4320 = vmatpush1.msra.mxu0 %v4266
      %4321 = vmatprep.subr.mxu0 0.0
      %4322 = vmatpush2.msra.mxu0 0.0
      %4323 = vmatprep.subr.mxu0 0.0
      %4324 = vmatpush2.msra.mxu0 0.0
      %4325 = vmatprep.subr.mxu0 0.0
      %4326 = vmatpush2.msra.mxu0 0.0
      %4327 = vmatprep.subr.mxu0 0.0
      %4328 = vmatpush2.msra.mxu0 0.0
      %4329 = vmatprep.subr.mxu0 0.0
      %4330 = vmatpush2.msra.mxu0 0.0
      %4331 = vmatprep.subr.mxu0 0.0
      %4332 = vmatpush2.msra.mxu0 0.0
      %4333 = vmatprep.subr.mxu0 0.0
      %4334 = vmatpush2.msra.mxu0 0.0
      %4335 = vmatprep.subr.mxu0 0.0
      %4336 = vmatpush2.msra.mxu0 0.0
      %4337 = vmatprep.subr.mxu0 0.0
      %4338 = vmatpush2.msra.mxu0 0.0
      %4339 = vmatprep.subr.mxu0 0.0
      %4340 = vmatpush2.msra.mxu0 0.0
      %4341 = vmatprep.subr.mxu0 0.0
      %4342 = vmatpush2.msra.mxu0 0.0
      %4343 = vmatprep.subr.mxu0 0.0
      %4344 = vmatpush2.msra.mxu0 0.0
      %4345 = vmatprep.subr.mxu0 0.0
      %4346 = vmatpush2.msra.mxu0 0.0
      %4347 = vmatprep.subr.mxu0 0.0
      %4348 = vmatpush2.msra.mxu0 0.0
      %4349 = vmatprep.subr.mxu0 0.0
      %4350 = vmatpush2.msra.mxu0 0.0
      %4351 = vmatprep.subr.mxu0 0.0
      %4352 = vmatpush2.msra.mxu0 0.0
      %4353 = vmatprep.mubr.f32.mxu0 0.0
      %4354 = vmatmul.mubr.f32.gmra.mxu0 %v4265
      %v4355 = vpop.f32.mrf.mxu0
      %v4356 = vadd.f32 %v4287, %v4355
      %v4357 = vpop.f32.mrf.mxu0
      %4358 = vdwg.mxu0
      %4359 = vst [vmem:[#allocation17] sm:$0xff] %v4356
    $region63: #{tpu_custom_call.1} parent=1 // pred_fallthru
      _
    // Predicated region
    $region64: #{tpu_custom_call.1} parent=1 // pred_check
      _
    $region65: #{tpu_custom_call.1} parent=1 // pred_check_branch
      %4361 = sbr.rel (0) target = $region67
    $region66: #{tpu_custom_call.1} parent=1 // pred_region
      %s4363 = ssub.s32 128, 128
      %4364 = vsyncadd [#allocation16], %s4363
      %s4366 = sshll.u32 [#allocation17], 4
      %s4367 = int_to_ptr.vmem [resolvable:$true] %s4366
      %4369 = dma.vmem_to_hbm [thread:$0]  %s4367, 128, %s6, [#allocation16]
    $region67: #{tpu_custom_call.1} parent=1 // pred_fallthru
      _
    // Predicated region
    $region68: #{tpu_custom_call.1} parent=1 // pred_check
      _
    $region69: #{tpu_custom_call.1} parent=1 // pred_check_branch
      %4371 = sbr.rel (0) target = $region71
    $region70: #{tpu_custom_call.1} parent=1 // pred_region
      %4372 = dma.done [#allocation16], 128
    $region71: #{tpu_custom_call.1} parent=1 // pred_fallthru
      _
    %4373 = vsyncpa [#allocation15], 1
    %4374 = vsyncpa [#allocation16], 1
  %4375 = vsyncmov [#allocation13]
  %s4376 = vpop.sfrf %4375
  %p4377 = scmp.eq.s32.totalorder %s4376, 0
  %p4378 = pneg %p4377
  %4380 = shalt.err (%p4378)
  %s4381 = scalar_lea.sflag [#allocation13], 1
  %4382 = vsyncmov %s4381
  %s4383 = vpop.sfrf %4382
  %p4384 = scmp.eq.s32.totalorder %s4383, 0
  %p4385 = pneg %p4384
  %4387 = shalt.err (%p4385)
  %s4388 = scalar_lea.sflag [#allocation13], 2
  %4389 = vsyncmov %s4388
  %s4390 = vpop.sfrf %4389
  %p4391 = scmp.eq.s32.totalorder %s4390, 0
  %p4392 = pneg %p4391
  %4394 = shalt.err (%p4392)
  %s4395 = scalar_lea.sflag [#allocation13], 3
  %4396 = vsyncmov %s4395
  %s4397 = vpop.sfrf %4396
  %p4398 = scmp.eq.s32.totalorder %s4397, 0
  %p4399 = pneg %p4398
  %4401 = shalt.err (%p4399)
  %s4402 = scalar_lea.sflag [#allocation13], 4
  %4403 = vsyncmov %s4402
  %s4404 = vpop.sfrf %4403
  %p4405 = scmp.eq.s32.totalorder %s4404, 0
  %p4406 = pneg %p4405
  %4408 = shalt.err (%p4406)

</llo_original>
